<compile_context>
chip_gen: v7x
topology: tpu7x:2x2x1
jax: 0.10.0
libtpu: 0.0.40
codegen_flags: <defaults>
</compile_context>

<pallas_src>
import jax
import jax.numpy as jnp
from jax.experimental import pallas as pl
from jax.experimental.pallas import tpu as pltpu


_VMEM_LIMIT = 32 * 1024 * 1024  # bytes; >= default scoped limit on v5e/v6e/v7x


# --------------------------------------------------------------------------------------
# Kernels
# --------------------------------------------------------------------------------------
def _psan_body_kernel(
    x_ref,                                   # (Bt, HW, C)   matmul dtype
    w1_ref, wqr_ref, wvr_ref,                # (C,C) (C,1) (C,Cm)
    wu1_ref, wu2_ref,                        # (Cm,Cr) (Cr,C)
    wql_ref, wvl_ref,                        # (C,Cm) (C,Cm)
    w2_ref,                                  # (C,C)
    bC_ref,                                  # (3, C)  f32 : [b1(+BN1), bu2, b2(+BN2)]
    bCr_ref,                                 # (3, Cr) f32 : [bu1, ln_gamma, ln_beta]
    alphas_ref,                              # (2,)    f32 SMEM : PReLU a1, a2
    pooled_ref,                              # out (Bt, 1, C)
):
    Bt, HW, C = x_ref.shape
    Cm = wvr_ref.shape[1]
    md = w1_ref.dtype                        # matmul operand dtype (bf16 or f32)

    a1 = alphas_ref[0]
    a2 = alphas_ref[1]

    x2 = x_ref[...].reshape(Bt * HW, C)

    # ---- conv1 (1x1, BN1 folded into w1 / bC[0]) + PReLU1  [f32 epilogue] ----
    h = jnp.dot(x2, w1_ref[...], preferred_element_type=jnp.float32) + bC_ref[0:1, :]
    h = jnp.where(h >= 0, h, a1 * h)                                   # (Bt*HW, C) f32
    hm = h.astype(md)

    # ---- PSA_s channel-only branch (spatial_pool) ----
    v = jnp.dot(hm, wvr_ref[...], preferred_element_type=jnp.float32)  # (Bt*HW, Cm)
    q = jnp.dot(hm, wqr_ref[...], preferred_element_type=jnp.float32)  # (Bt*HW, 1)
    q3 = q.reshape(Bt, HW, 1)
    q3 = q3 - jnp.max(q3, axis=1, keepdims=True)                       # softmax over HW
    q3 = jnp.exp(q3)
    q3 = q3 * pl.reciprocal(jnp.sum(q3, axis=1, keepdims=True), approx=True)
    # context = V^T @ softmax(q).  q3 is a single softmax column, so the MXU form is an
    # M=1 GEMV needing a sublane->lane relayout; the VPU mul + XLU sublane-reduce is
    # cheaper here and stays off the MXU critical path.
    ctx = jnp.sum(v.reshape(Bt, HW, Cm) * q3, axis=1)                  # (Bt, Cm) f32

    # conv_up: 1x1 Cm->Cr, LayerNorm(Cr), ReLU, 1x1 Cr->C, sigmoid  (DeLightCMU PSA_s)
    u = jnp.dot(ctx.astype(md), wu1_ref[...],
                preferred_element_type=jnp.float32) + bCr_ref[0:1, :]  # (Bt, Cr)
    mu = jnp.mean(u, axis=1, keepdims=True)
    var = jnp.mean((u - mu) ** 2, axis=1, keepdims=True)
    u = (u - mu) * jax.lax.rsqrt(var + 1e-5)
    u = u * bCr_ref[1:2, :] + bCr_ref[2:3, :]
    u = jnp.maximum(u, 0.0)
    mch = jax.nn.sigmoid(
        jnp.dot(u.astype(md), wu2_ref[...],
                preferred_element_type=jnp.float32) + bC_ref[1:2, :])  # (Bt, C)
    hs3 = h.reshape(Bt, HW, C) * mch[:, None, :]                       # (Bt, HW, C) f32
    hs2 = hs3.reshape(Bt * HW, C).astype(md)

    # ---- PSA_s spatial-only branch (channel_pool) ----
    g = jnp.dot(hs2, wql_ref[...], preferred_element_type=jnp.float32)   # (Bt*HW, Cm)
    avg = jnp.mean(g.reshape(Bt, HW, Cm), axis=1, keepdims=True)         # (Bt, 1, Cm)
    avg = avg - jnp.max(avg, axis=-1, keepdims=True)                     # softmax over Cm
    avg = jnp.exp(avg)
    avg = avg * pl.reciprocal(jnp.sum(avg, axis=-1, keepdims=True), approx=True)
    th = jnp.dot(hs2, wvl_ref[...], preferred_element_type=jnp.float32)  # (Bt*HW, Cm)
    # spatial mask = theta @ softmax(q_pool)^T : batched MXU contraction over Cm.
    msp = jnp.einsum('bhc,boc->bho',
                     th.reshape(Bt, HW, Cm).astype(md), avg.astype(md),
                     preferred_element_type=jnp.float32)                 # (Bt, HW, 1)
    msp = jax.nn.sigmoid(msp)
    hc2 = (hs3 * msp).reshape(Bt * HW, C).astype(md)

    # ---- conv2 (1x1, BN2 folded) + PReLU2 ----
    h2 = jnp.dot(hc2, w2_ref[...], preferred_element_type=jnp.float32) + bC_ref[2:3, :]
    h2 = jnp.where(h2 >= 0, h2, a2 * h2)                                 # (Bt*HW, C)

    # ---- GAP over HW (per sample) ----
    pooled_ref[...] = jnp.mean(h2.reshape(Bt, HW, C), axis=1,
                               keepdims=True).astype(pooled_ref.dtype)   # (Bt, 1, C)


def _psan_head_kernel(pooled_ref, wf1_ref, bf1_ref, wf2_ref, bf2_ref, alphas_ref,
                      out_ref):
    # Linear(C,768)+BN+PReLU -> Linear(768,fd)+BN+PReLU, batched over all B rows.
    a3 = alphas_ref[0]
    a4 = alphas_ref[1]
    md = wf1_ref.dtype
    B = pooled_ref.shape[0]
    C = pooled_ref.shape[2]
    p = pooled_ref[...].reshape(B, C)
    f = jnp.dot(p, wf1_ref[...], preferred_element_type=jnp.float32) + bf1_ref[...]
    f = jnp.where(f >= 0, f, a3 * f)
    f = jnp.dot(f.astype(md), wf2_ref[...],
                preferred_element_type=jnp.float32) + bf2_ref[...]
    f = jnp.where(f >= 0, f, a4 * f)
    out_ref[...] = f.astype(out_ref.dtype)


# --------------------------------------------------------------------------------------
# Host wrapper
# --------------------------------------------------------------------------------------
def psan_forward(x_nchw, params, *, block_b=None, vmem_limit_bytes=_VMEM_LIMIT):
    B, C, H, W = x_nchw.shape
    HW = H * W
    md = params["w1"].dtype
    fd = params["wf2"].shape[1]

    # NCHW -> (B, HW, C) channels-last so 1x1 convs are plain MXU matmuls.
    # TODO(synk): in a real pipeline store activations NHWC upstream so this extra
    # HBM transpose pass disappears; kept only because the reference module is NCHW.
    x = jnp.transpose(x_nchw, (0, 2, 3, 1)).reshape(B, HW, C).astype(md)

    if block_b is None:
        # Keep >= 2 grid steps when possible (v7x: 2 TensorCores share the "parallel"
        # axis) and cap block_b so ~8 live (block_b*HW, C) f32 intermediates fit VMEM.
        cap = max(1, (24 * 1024 * 1024) // max(1, HW * C * 4 * 8))
        block_b = min(max(1, B // 2), cap)
        while B % block_b:
            block_b -= 1
    grid = (B // block_b,)

    body_params = [params[k] for k in
                   ("w1", "wqr", "wvr", "wu1", "wu2", "wql", "wvl", "w2", "bC", "bCr")]

    body_in_specs = (
        [pl.BlockSpec((block_b, HW, C), lambda i: (i, 0, 0))]
        + [pl.BlockSpec(p.shape, lambda i, _nd=p.ndim: (0,) * _nd) for p in body_params]
        + [pl.BlockSpec(memory_space=pltpu.MemorySpace.SMEM)]   # PReLU alphas (2,)
    )

    pooled = pl.pallas_call(
        _psan_body_kernel,
        out_shape=jax.ShapeDtypeStruct((B, 1, C), md),
        grid_spec=pltpu.PrefetchScalarGridSpec(
            num_scalar_prefetch=0,
            grid=grid,
            in_specs=body_in_specs,
            out_specs=pl.BlockSpec((block_b, 1, C), lambda i: (i, 0, 0)),
        ),
        compiler_params=pltpu.CompilerParams(
            dimension_semantics=("parallel",),
            vmem_limit_bytes=vmem_limit_bytes,
        ),
    )(x, *body_params, params["alphas12"])

    head_params = [params["wf1"], params["bf1"], params["wf2"], params["bf2"]]
    head_in_specs = (
        [pl.BlockSpec((B, 1, C), lambda i: (0, 0, 0))]
        + [pl.BlockSpec(p.shape, lambda i, _nd=p.ndim: (0,) * _nd) for p in head_params]
        + [pl.BlockSpec(memory_space=pltpu.MemorySpace.SMEM)]   # PReLU alphas (2,)
    )

    out = pl.pallas_call(
        _psan_head_kernel,
        out_shape=jax.ShapeDtypeStruct((B, fd), jnp.float32),
        grid_spec=pltpu.PrefetchScalarGridSpec(
            num_scalar_prefetch=0,
            grid=(1,),
            in_specs=head_in_specs,
            out_specs=pl.BlockSpec((B, fd), lambda i: (0, 0)),
        ),
        compiler_params=pltpu.CompilerParams(
            dimension_semantics=("arbitrary",),
            vmem_limit_bytes=vmem_limit_bytes,
        ),
    )(pooled, *head_params, params["alphas34"])
    return out


# --------------------------------------------------------------------------------------
# Parameters (PyTorch-style init, then host-side BN folding / packing / casting)
# --------------------------------------------------------------------------------------
def init_raw_params(key, C, feature_dim=512, hidden=768):
    Cm = C // 2                 # PSA inter_planes
    Cr = Cm // 4                # PSA conv_up bottleneck (ratio=4)
    assert Cr >= 1, "in_channels must be >= 8 for PSA_s (inter_planes // 4 >= 1)"
    ks = jax.random.split(key, 10)

    def kaiming(k, cin, cout):  # kaiming_normal_, mode='fan_out', relu, 1x1 conv
        std = (2.0 / cout) ** 0.5
        return (std * jax.random.normal(k, (cin, cout))).astype(jnp.float32)

    def linw(k, cin, cout):     # nn.init.normal_(weight, 0, 0.01)
        return (0.01 * jax.random.normal(k, (cin, cout))).astype(jnp.float32)

    bn = lambda n: dict(gamma=jnp.ones((n,), jnp.float32), beta=jnp.zeros((n,), jnp.float32),
                        mean=jnp.zeros((n,), jnp.float32), var=jnp.ones((n,), jnp.float32))
    z = lambda n: jnp.zeros((n,), jnp.float32)

    return {
        "w1": kaiming(ks[0], C, C), "b1": z(C), "bn1": bn(C), "a1": 0.25,
        "wqr": kaiming(ks[1], C, 1), "wvr": kaiming(ks[2], C, Cm),
        "wu1": kaiming(ks[3], Cm, Cr), "bu1": z(Cr),
        "ln_g": jnp.ones((Cr,), jnp.float32), "ln_b": z(Cr),
        "wu2": kaiming(ks[4], Cr, C), "bu2": z(C),
        "wql": kaiming(ks[5], C, Cm), "wvl": kaiming(ks[6], C, Cm),
        "w2": kaiming(ks[7], C, C), "b2": z(C), "bn2": bn(C), "a2": 0.25,
        "wf1": linw(ks[8], C, hidden), "bf1": z(hidden), "bnf1": bn(hidden), "a3": 0.25,
        "wf2": linw(ks[9], hidden, feature_dim), "bf2": z(feature_dim),
        "bnf2": bn(feature_dim), "a4": 0.25,
    }


def prepare_params(raw, matmul_dtype=jnp.bfloat16, eps=1e-5):
    """Fold eval-mode BatchNorm into the preceding 1x1 conv / Linear, pack the small
    per-channel vectors, and cast matmul operands to `matmul_dtype`."""
    def fold(w, b, bn):
        s = bn["gamma"] / jnp.sqrt(bn["var"] + eps)
        return w * s[None, :], b * s + bn["beta"] - bn["mean"] * s

    w1, b1 = fold(raw["w1"], raw["b1"], raw["bn1"])
    w2, b2 = fold(raw["w2"], raw["b2"], raw["bn2"])
    wf1, bf1 = fold(raw["wf1"], raw["bf1"], raw["bnf1"])
    wf2, bf2 = fold(raw["wf2"], raw["bf2"], raw["bnf2"])

    cast = lambda w: w.astype(matmul_dtype)
    f32 = jnp.float32
    return {
        # body kernel
        "w1": cast(w1), "wqr": cast(raw["wqr"]), "wvr": cast(raw["wvr"]),
        "wu1": cast(raw["wu1"]), "wu2": cast(raw["wu2"]),
        "wql": cast(raw["wql"]), "wvl": cast(raw["wvl"]), "w2": cast(w2),
        "bC": jnp.stack([b1, raw["bu2"], b2]).astype(f32),                    # (3, C)
        "bCr": jnp.stack([raw["bu1"], raw["ln_g"], raw["ln_b"]]).astype(f32), # (3, Cr)
        "alphas12": jnp.array([raw["a1"], raw["a2"]], f32),
        # head kernel
        "wf1": cast(wf1), "bf1": bf1.astype(f32)[None, :],
        "wf2": cast(wf2), "bf2": bf2.astype(f32)[None, :],
        "alphas34": jnp.array([raw["a3"], raw["a4"]], f32),
    }


# --------------------------------------------------------------------------------------
if __name__ == "__main__":
    B, C, H, W = 4, 16, 8, 8          # C >= 8 so the PSA bottleneck (Cm // 4) >= 1
    feature_dim, hidden = 512, 768

    key = jax.random.PRNGKey(0)
    kx, kp = jax.random.split(key)
    x = jax.random.normal(kx, (B, C, H, W), jnp.float32)

    raw = init_raw_params(kp, C, feature_dim=feature_dim, hidden=hidden)
    params = prepare_params(raw, matmul_dtype=jnp.bfloat16)

    out = jax.jit(psan_forward)(x, params)
    jax.block_until_ready(out)
    assert out.shape == (B, feature_dim)
    assert bool(jnp.all(jnp.isfinite(out)))
    print("KERNEL_OK")
</pallas_src>

<mosaic_0001>
module attributes {stable_mosaic.version = 11 : i64} {
  func.func @_psan_head_kernel(%arg0: i32, %arg1: memref<4x1x16xbf16, #tpu.memory_space<vmem>>, %arg2: memref<16x768xbf16, #tpu.memory_space<vmem>>, %arg3: memref<1x768xf32, #tpu.memory_space<vmem>>, %arg4: memref<768x512xbf16, #tpu.memory_space<vmem>>, %arg5: memref<1x512xf32, #tpu.memory_space<vmem>>, %arg6: memref<2xf32, #tpu.memory_space<smem>>, %arg7: memref<4x512xf32, #tpu.memory_space<vmem>>) attributes {dimension_semantics = [#tpu.dimension_semantics<arbitrary>], iteration_bounds = array<i64: 1>, scalar_prefetch = 0 : i64, scratch_operands = 0 : i64, tpu.core_type = #tpu.core_type<tc>, window_params = [{pipeline_mode = #tpu.pipeline_mode<synchronous>, transform_indices = @transform_0, window_bounds = array<i64: 4, 1, 16>}, {pipeline_mode = #tpu.pipeline_mode<synchronous>, transform_indices = @transform_1, window_bounds = array<i64: 16, 768>}, {pipeline_mode = #tpu.pipeline_mode<synchronous>, transform_indices = @transform_2, window_bounds = array<i64: 1, 768>}, {pipeline_mode = #tpu.pipeline_mode<synchronous>, transform_indices = @transform_3, window_bounds = array<i64: 768, 512>}, {pipeline_mode = #tpu.pipeline_mode<synchronous>, transform_indices = @transform_4, window_bounds = array<i64: 1, 512>}, {transform_indices = @transform_5, window_bounds = array<i64: 2>}, {pipeline_mode = #tpu.pipeline_mode<synchronous>, transform_indices = @transform_6, window_bounds = array<i64: 4, 512>}]} {
    %c0 = arith.constant 0 : index
    %0 = memref.load %arg6[%c0] : memref<2xf32, #tpu.memory_space<smem>>
    %c1 = arith.constant 1 : index
    %1 = memref.load %arg6[%c1] : memref<2xf32, #tpu.memory_space<smem>>
    %c0_0 = arith.constant 0 : index
    %c0_1 = arith.constant 0 : index
    %c0_2 = arith.constant 0 : index
    %2 = vector.load %arg1[%c0_0, %c0_1, %c0_2] : memref<4x1x16xbf16, #tpu.memory_space<vmem>>, vector<4x1x16xbf16>
    %3 = vector.shape_cast %2 : vector<4x1x16xbf16> to vector<4x16xbf16>
    %c0_3 = arith.constant 0 : index
    %c0_4 = arith.constant 0 : index
    %4 = vector.load %arg2[%c0_3, %c0_4] : memref<16x768xbf16, #tpu.memory_space<vmem>>, vector<16x768xbf16>
    %cst = arith.constant dense<0.000000e+00> : vector<4x768xf32>
    %5 = tpu.matmul %3, %4, %cst {dimension_numbers = #tpu.dot_dimension_numbers<[1], [0], [0], [1], [0, 0, 1, 1], [], []>} : vector<4x16xbf16>, vector<16x768xbf16>, vector<4x768xf32> -> vector<4x768xf32>
    %c0_5 = arith.constant 0 : index
    %c0_6 = arith.constant 0 : index
    %6 = vector.load %arg3[%c0_5, %c0_6] : memref<1x768xf32, #tpu.memory_space<vmem>>, vector<1x768xf32>
    %7 = vector.broadcast %6 : vector<1x768xf32> to vector<4x768xf32>
    %8 = arith.addf %5, %7 : vector<4x768xf32>
    %cst_7 = arith.constant 0.000000e+00 : f32
    %9 = vector.broadcast %cst_7 : f32 to vector<4x768xf32>
    %10 = arith.cmpf oge, %8, %9 : vector<4x768xf32>
    %11 = vector.broadcast %0 : f32 to vector<4x768xf32>
    %12 = arith.mulf %11, %8 : vector<4x768xf32>
    %13 = arith.select %10, %8, %12 : vector<4x768xi1>, vector<4x768xf32>
    %14 = arith.truncf %13 : vector<4x768xf32> to vector<4x768xbf16>
    %c0_8 = arith.constant 0 : index
    %c0_9 = arith.constant 0 : index
    %15 = vector.load %arg4[%c0_8, %c0_9] : memref<768x512xbf16, #tpu.memory_space<vmem>>, vector<768x512xbf16>
    %cst_10 = arith.constant dense<0.000000e+00> : vector<4x512xf32>
    %16 = tpu.matmul %14, %15, %cst_10 {dimension_numbers = #tpu.dot_dimension_numbers<[1], [0], [0], [1], [0, 0, 1, 1], [], []>} : vector<4x768xbf16>, vector<768x512xbf16>, vector<4x512xf32> -> vector<4x512xf32>
    %c0_11 = arith.constant 0 : index
    %c0_12 = arith.constant 0 : index
    %17 = vector.load %arg5[%c0_11, %c0_12] : memref<1x512xf32, #tpu.memory_space<vmem>>, vector<1x512xf32>
    %18 = vector.broadcast %17 : vector<1x512xf32> to vector<4x512xf32>
    %19 = arith.addf %16, %18 : vector<4x512xf32>
    %cst_13 = arith.constant 0.000000e+00 : f32
    %20 = vector.broadcast %cst_13 : f32 to vector<4x512xf32>
    %21 = arith.cmpf oge, %19, %20 : vector<4x512xf32>
    %22 = vector.broadcast %1 : f32 to vector<4x512xf32>
    %23 = arith.mulf %22, %19 : vector<4x512xf32>
    %24 = arith.select %21, %19, %23 : vector<4x512xi1>, vector<4x512xf32>
    %c0_14 = arith.constant 0 : index
    %c0_15 = arith.constant 0 : index
    %25 = vector.load %arg7[%c0_14, %c0_15] : memref<4x512xf32, #tpu.memory_space<vmem>>, vector<4x512xf32>
    tpu.vector_store %arg7[%c0_14, %c0_15], %24 {strides = array<i32>} : memref<4x512xf32, #tpu.memory_space<vmem>>, vector<4x512xf32>,
    return
  }
  func.func @transform_0(%arg0: i32) -> (i32, i32, i32) {
    %c0_i32 = arith.constant 0 : i32
    %c0_i32_0 = arith.constant 0 : i32
    %c0_i32_1 = arith.constant 0 : i32
    %c0_i32_2 = arith.constant 0 : i32
    return %c0_i32, %c0_i32_0, %c0_i32_1 : i32, i32, i32
  }
  func.func @transform_1(%arg0: i32) -> (i32, i32) {
    %c0_i32 = arith.constant 0 : i32
    %c0_i32_0 = arith.constant 0 : i32
    %c0_i32_1 = arith.constant 0 : i32
    return %c0_i32, %c0_i32_0 : i32, i32
  }
  func.func @transform_2(%arg0: i32) -> (i32, i32) {
    %c0_i32 = arith.constant 0 : i32
    %c0_i32_0 = arith.constant 0 : i32
    %c0_i32_1 = arith.constant 0 : i32
    return %c0_i32, %c0_i32_0 : i32, i32
  }
  func.func @transform_3(%arg0: i32) -> (i32, i32) {
    %c0_i32 = arith.constant 0 : i32
    %c0_i32_0 = arith.constant 0 : i32
    %c0_i32_1 = arith.constant 0 : i32
    return %c0_i32, %c0_i32_0 : i32, i32
  }
  func.func @transform_4(%arg0: i32) -> (i32, i32) {
    %c0_i32 = arith.constant 0 : i32
    %c0_i32_0 = arith.constant 0 : i32
    %c0_i32_1 = arith.constant 0 : i32
    return %c0_i32, %c0_i32_0 : i32, i32
  }
  func.func @transform_5(%arg0: i32) -> i32 {
    %c0_i32 = arith.constant 0 : i32
    %c0_i32_0 = arith.constant 0 : i32
    return %c0_i32 : i32
  }
  func.func @transform_6(%arg0: i32) -> (i32, i32) {
    %c0_i32 = arith.constant 0 : i32
    %c0_i32_0 = arith.constant 0 : i32
    %c0_i32_1 = arith.constant 0 : i32
    return %c0_i32, %c0_i32_0 : i32, i32
  }
}

module attributes {stable_mosaic.version = 11 : i64} {
  func.func @_psan_body_kernel(%arg0: i32, %arg1: memref<2x64x16xbf16, #tpu.memory_space<vmem>>, %arg2: memref<16x16xbf16, #tpu.memory_space<vmem>>, %arg3: memref<16x1xbf16, #tpu.memory_space<vmem>>, %arg4: memref<16x8xbf16, #tpu.memory_space<vmem>>, %arg5: memref<8x2xbf16, #tpu.memory_space<vmem>>, %arg6: memref<2x16xbf16, #tpu.memory_space<vmem>>, %arg7: memref<16x8xbf16, #tpu.memory_space<vmem>>, %arg8: memref<16x8xbf16, #tpu.memory_space<vmem>>, %arg9: memref<16x16xbf16, #tpu.memory_space<vmem>>, %arg10: memref<3x16xf32, #tpu.memory_space<vmem>>, %arg11: memref<3x2xf32, #tpu.memory_space<vmem>>, %arg12: memref<2xf32, #tpu.memory_space<smem>>, %arg13: memref<2x1x16xbf16, #tpu.memory_space<vmem>>) attributes {dimension_semantics = [#tpu.dimension_semantics<parallel>], iteration_bounds = array<i64: 2>, scalar_prefetch = 0 : i64, scratch_operands = 0 : i64, tpu.core_type = #tpu.core_type<tc>, window_params = [{transform_indices = @transform_0, window_bounds = array<i64: 2, 64, 16>}, {pipeline_mode = #tpu.pipeline_mode<synchronous>, transform_indices = @transform_1, window_bounds = array<i64: 16, 16>}, {pipeline_mode = #tpu.pipeline_mode<synchronous>, transform_indices = @transform_2, window_bounds = array<i64: 16, 1>}, {pipeline_mode = #tpu.pipeline_mode<synchronous>, transform_indices = @transform_3, window_bounds = array<i64: 16, 8>}, {pipeline_mode = #tpu.pipeline_mode<synchronous>, transform_indices = @transform_4, window_bounds = array<i64: 8, 2>}, {pipeline_mode = #tpu.pipeline_mode<synchronous>, transform_indices = @transform_5, window_bounds = array<i64: 2, 16>}, {pipeline_mode = #tpu.pipeline_mode<synchronous>, transform_indices = @transform_6, window_bounds = array<i64: 16, 8>}, {pipeline_mode = #tpu.pipeline_mode<synchronous>, transform_indices = @transform_7, window_bounds = array<i64: 16, 8>}, {pipeline_mode = #tpu.pipeline_mode<synchronous>, transform_indices = @transform_8, window_bounds = array<i64: 16, 16>}, {pipeline_mode = #tpu.pipeline_mode<synchronous>, transform_indices = @transform_9, window_bounds = array<i64: 3, 16>}, {pipeline_mode = #tpu.pipeline_mode<synchronous>, transform_indices = @transform_10, window_bounds = array<i64: 3, 2>}, {transform_indices = @transform_11, window_bounds = array<i64: 2>}, {transform_indices = @transform_12, window_bounds = array<i64: 2, 1, 16>}]} {
    %c0 = arith.constant 0 : index
    %0 = memref.load %arg12[%c0] : memref<2xf32, #tpu.memory_space<smem>>
    %c1 = arith.constant 1 : index
    %1 = memref.load %arg12[%c1] : memref<2xf32, #tpu.memory_space<smem>>
    %c0_0 = arith.constant 0 : index
    %c0_1 = arith.constant 0 : index
    %c0_2 = arith.constant 0 : index
    %2 = vector.load %arg1[%c0_0, %c0_1, %c0_2] : memref<2x64x16xbf16, #tpu.memory_space<vmem>>, vector<2x64x16xbf16>
    %3 = vector.shape_cast %2 : vector<2x64x16xbf16> to vector<128x16xbf16>
    %c0_3 = arith.constant 0 : index
    %c0_4 = arith.constant 0 : index
    %4 = vector.load %arg2[%c0_3, %c0_4] : memref<16x16xbf16, #tpu.memory_space<vmem>>, vector<16x16xbf16>
    %cst = arith.constant dense<0.000000e+00> : vector<128x16xf32>
    %5 = tpu.matmul %3, %4, %cst {dimension_numbers = #tpu.dot_dimension_numbers<[1], [0], [0], [1], [0, 0, 1, 1], [], []>} : vector<128x16xbf16>, vector<16x16xbf16>, vector<128x16xf32> -> vector<128x16xf32>
    %c0_5 = arith.constant 0 : index
    %c0_6 = arith.constant 0 : index
    %6 = vector.load %arg10[%c0_5, %c0_6] : memref<3x16xf32, #tpu.memory_space<vmem>>, vector<1x16xf32>
    %7 = vector.broadcast %6 : vector<1x16xf32> to vector<128x16xf32>
    %8 = arith.addf %5, %7 : vector<128x16xf32>
    %cst_7 = arith.constant 0.000000e+00 : f32
    %9 = vector.broadcast %cst_7 : f32 to vector<128x16xf32>
    %10 = arith.cmpf oge, %8, %9 : vector<128x16xf32>
    %11 = vector.broadcast %0 : f32 to vector<128x16xf32>
    %12 = arith.mulf %11, %8 : vector<128x16xf32>
    %13 = arith.select %10, %8, %12 : vector<128x16xi1>, vector<128x16xf32>
    %14 = arith.truncf %13 : vector<128x16xf32> to vector<128x16xbf16>
    %c0_8 = arith.constant 0 : index
    %c0_9 = arith.constant 0 : index
    %15 = vector.load %arg4[%c0_8, %c0_9] : memref<16x8xbf16, #tpu.memory_space<vmem>>, vector<16x8xbf16>
    %cst_10 = arith.constant dense<0.000000e+00> : vector<128x8xf32>
    %16 = tpu.matmul %14, %15, %cst_10 {dimension_numbers = #tpu.dot_dimension_numbers<[1], [0], [0], [1], [0, 0, 1, 1], [], []>} : vector<128x16xbf16>, vector<16x8xbf16>, vector<128x8xf32> -> vector<128x8xf32>
    %c0_11 = arith.constant 0 : index
    %c0_12 = arith.constant 0 : index
    %17 = vector.load %arg3[%c0_11, %c0_12] : memref<16x1xbf16, #tpu.memory_space<vmem>>, vector<16x1xbf16>
    %cst_13 = arith.constant dense<0.000000e+00> : vector<128x1xf32>
    %18 = tpu.matmul %14, %17, %cst_13 {dimension_numbers = #tpu.dot_dimension_numbers<[1], [0], [0], [1], [0, 0, 1, 1], [], []>} : vector<128x16xbf16>, vector<16x1xbf16>, vector<128x1xf32> -> vector<128x1xf32>
    %19 = vector.shape_cast %18 : vector<128x1xf32> to vector<2x64x1xf32>
    %cst_14 = arith.constant dense<0xFF800000> : vector<2x1xf32>
    %20 = vector.multi_reduction <maximumf>, %19, %cst_14 [1] : vector<2x64x1xf32> to vector<2x1xf32>
    %21 = vector.shape_cast %20 : vector<2x1xf32> to vector<2x1x1xf32>
    %22 = vector.broadcast %21 : vector<2x1x1xf32> to vector<2x64x1xf32>
    %23 = arith.subf %19, %22 : vector<2x64x1xf32>
    %24 = math.exp %23 : vector<2x64x1xf32>
    %cst_15 = arith.constant dense<0.000000e+00> : vector<2x1xf32>
    %25 = vector.multi_reduction <add>, %24, %cst_15 [1] : vector<2x64x1xf32> to vector<2x1xf32>
    %26 = vector.shape_cast %25 : vector<2x1xf32> to vector<2x1x1xf32>
    %27 = tpu.reciprocal %26 {approx = true} : vector<2x1x1xf32> -> vector<2x1x1xf32>
    %28 = vector.broadcast %27 : vector<2x1x1xf32> to vector<2x64x1xf32>
    %29 = arith.mulf %24, %28 : vector<2x64x1xf32>
    %30 = vector.shape_cast %16 : vector<128x8xf32> to vector<2x64x8xf32>
    %31 = vector.broadcast %29 : vector<2x64x1xf32> to vector<2x64x8xf32>
    %32 = arith.mulf %30, %31 : vector<2x64x8xf32>
    %cst_16 = arith.constant dense<0.000000e+00> : vector<2x8xf32>
    %33 = vector.multi_reduction <add>, %32, %cst_16 [1] : vector<2x64x8xf32> to vector<2x8xf32>
    %34 = arith.truncf %33 : vector<2x8xf32> to vector<2x8xbf16>
    %c0_17 = arith.constant 0 : index
    %c0_18 = arith.constant 0 : index
    %35 = vector.load %arg5[%c0_17, %c0_18] : memref<8x2xbf16, #tpu.memory_space<vmem>>, vector<8x2xbf16>
    %cst_19 = arith.constant dense<0.000000e+00> : vector<2x2xf32>
    %36 = tpu.matmul %34, %35, %cst_19 {dimension_numbers = #tpu.dot_dimension_numbers<[1], [0], [0], [1], [0, 0, 1, 1], [], []>} : vector<2x8xbf16>, vector<8x2xbf16>, vector<2x2xf32> -> vector<2x2xf32>
    %c0_20 = arith.constant 0 : index
    %c0_21 = arith.constant 0 : index
    %37 = vector.load %arg11[%c0_20, %c0_21] : memref<3x2xf32, #tpu.memory_space<vmem>>, vector<1x2xf32>
    %38 = vector.broadcast %37 : vector<1x2xf32> to vector<2x2xf32>
    %39 = arith.addf %36, %38 : vector<2x2xf32>
    %cst_22 = arith.constant dense<0.000000e+00> : vector<2xf32>
    %40 = vector.multi_reduction <add>, %39, %cst_22 [1] : vector<2x2xf32> to vector<2xf32>
    %41 = vector.shape_cast %40 : vector<2xf32> to vector<2x1xf32>
    %cst_23 = arith.constant 2.000000e+00 : f32
    %42 = vector.broadcast %cst_23 : f32 to vector<2x1xf32>
    %43 = arith.divf %41, %42 : vector<2x1xf32>
    %44 = vector.broadcast %43 : vector<2x1xf32> to vector<2x2xf32>
    %45 = arith.subf %39, %44 : vector<2x2xf32>
    %46 = arith.mulf %45, %45 : vector<2x2xf32>
    %cst_24 = arith.constant dense<0.000000e+00> : vector<2xf32>
    %47 = vector.multi_reduction <add>, %46, %cst_24 [1] : vector<2x2xf32> to vector<2xf32>
    %48 = vector.shape_cast %47 : vector<2xf32> to vector<2x1xf32>
    %cst_25 = arith.constant 2.000000e+00 : f32
    %49 = vector.broadcast %cst_25 : f32 to vector<2x1xf32>
    %50 = arith.divf %48, %49 : vector<2x1xf32>
    %51 = vector.broadcast %43 : vector<2x1xf32> to vector<2x2xf32>
    %52 = arith.subf %39, %51 : vector<2x2xf32>
    %cst_26 = arith.constant 9.99999974E-6 : f32
    %53 = vector.broadcast %cst_26 : f32 to vector<2x1xf32>
    %54 = arith.addf %50, %53 : vector<2x1xf32>
    %55 = math.rsqrt %54 : vector<2x1xf32>
    %56 = vector.broadcast %55 : vector<2x1xf32> to vector<2x2xf32>
    %57 = arith.mulf %52, %56 : vector<2x2xf32>
    %c1_27 = arith.constant 1 : index
    %c0_28 = arith.constant 0 : index
    %58 = vector.load %arg11[%c1_27, %c0_28] : memref<3x2xf32, #tpu.memory_space<vmem>>, vector<1x2xf32>
    %59 = vector.broadcast %58 : vector<1x2xf32> to vector<2x2xf32>
    %60 = arith.mulf %57, %59 : vector<2x2xf32>
    %c2 = arith.constant 2 : index
    %c0_29 = arith.constant 0 : index
    %61 = vector.load %arg11[%c2, %c0_29] : memref<3x2xf32, #tpu.memory_space<vmem>>, vector<1x2xf32>
    %62 = vector.broadcast %61 : vector<1x2xf32> to vector<2x2xf32>
    %63 = arith.addf %60, %62 : vector<2x2xf32>
    %cst_30 = arith.constant 0.000000e+00 : f32
    %64 = vector.broadcast %cst_30 : f32 to vector<2x2xf32>
    %65 = arith.maximumf %63, %64 : vector<2x2xf32>
    %66 = arith.truncf %65 : vector<2x2xf32> to vector<2x2xbf16>
    %c0_31 = arith.constant 0 : index
    %c0_32 = arith.constant 0 : index
    %67 = vector.load %arg6[%c0_31, %c0_32] : memref<2x16xbf16, #tpu.memory_space<vmem>>, vector<2x16xbf16>
    %cst_33 = arith.constant dense<0.000000e+00> : vector<2x16xf32>
    %68 = tpu.matmul %66, %67, %cst_33 {dimension_numbers = #tpu.dot_dimension_numbers<[1], [0], [0], [1], [0, 0, 1, 1], [], []>} : vector<2x2xbf16>, vector<2x16xbf16>, vector<2x16xf32> -> vector<2x16xf32>
    %c1_34 = arith.constant 1 : index
    %c0_35 = arith.constant 0 : index
    %69 = vector.load %arg10[%c1_34, %c0_35] : memref<3x16xf32, #tpu.memory_space<vmem>>, vector<1x16xf32>
    %70 = vector.broadcast %69 : vector<1x16xf32> to vector<2x16xf32>
    %71 = arith.addf %68, %70 : vector<2x16xf32>
    %72 = arith.negf %71 : vector<2x16xf32>
    %73 = math.exp %72 : vector<2x16xf32>
    %cst_36 = arith.constant 1.000000e+00 : f32
    %74 = vector.broadcast %cst_36 : f32 to vector<2x16xf32>
    %75 = arith.addf %74, %73 : vector<2x16xf32>
    %76 = arith.divf %74, %75 : vector<2x16xf32>
    %77 = vector.shape_cast %13 : vector<128x16xf32> to vector<2x64x16xf32>
    %78 = vector.shape_cast %76 : vector<2x16xf32> to vector<2x1x16xf32>
    %79 = vector.broadcast %78 : vector<2x1x16xf32> to vector<2x64x16xf32>
    %80 = arith.mulf %77, %79 : vector<2x64x16xf32>
    %81 = vector.shape_cast %80 : vector<2x64x16xf32> to vector<128x16xf32>
    %82 = arith.truncf %81 : vector<128x16xf32> to vector<128x16xbf16>
    %c0_37 = arith.constant 0 : index
    %c0_38 = arith.constant 0 : index
    %83 = vector.load %arg7[%c0_37, %c0_38] : memref<16x8xbf16, #tpu.memory_space<vmem>>, vector<16x8xbf16>
    %cst_39 = arith.constant dense<0.000000e+00> : vector<128x8xf32>
    %84 = tpu.matmul %82, %83, %cst_39 {dimension_numbers = #tpu.dot_dimension_numbers<[1], [0], [0], [1], [0, 0, 1, 1], [], []>} : vector<128x16xbf16>, vector<16x8xbf16>, vector<128x8xf32> -> vector<128x8xf32>
    %85 = vector.shape_cast %84 : vector<128x8xf32> to vector<2x64x8xf32>
    %cst_40 = arith.constant dense<0.000000e+00> : vector<2x8xf32>
    %86 = vector.multi_reduction <add>, %85, %cst_40 [1] : vector<2x64x8xf32> to vector<2x8xf32>
    %87 = vector.shape_cast %86 : vector<2x8xf32> to vector<2x1x8xf32>
    %cst_41 = arith.constant 6.400000e+01 : f32
    %88 = vector.broadcast %cst_41 : f32 to vector<2x1x8xf32>
    %89 = arith.divf %87, %88 : vector<2x1x8xf32>
    %cst_42 = arith.constant dense<0xFF800000> : vector<2x1xf32>
    %90 = vector.multi_reduction <maximumf>, %89, %cst_42 [2] : vector<2x1x8xf32> to vector<2x1xf32>
    %91 = vector.shape_cast %90 : vector<2x1xf32> to vector<2x1x1xf32>
    %92 = vector.broadcast %91 : vector<2x1x1xf32> to vector<2x1x8xf32>
    %93 = arith.subf %89, %92 : vector<2x1x8xf32>
    %94 = math.exp %93 : vector<2x1x8xf32>
    %cst_43 = arith.constant dense<0.000000e+00> : vector<2x1xf32>
    %95 = vector.multi_reduction <add>, %94, %cst_43 [2] : vector<2x1x8xf32> to vector<2x1xf32>
    %96 = vector.shape_cast %95 : vector<2x1xf32> to vector<2x1x1xf32>
    %97 = tpu.reciprocal %96 {approx = true} : vector<2x1x1xf32> -> vector<2x1x1xf32>
    %98 = vector.broadcast %97 : vector<2x1x1xf32> to vector<2x1x8xf32>
    %99 = arith.mulf %94, %98 : vector<2x1x8xf32>
    %c0_44 = arith.constant 0 : index
    %c0_45 = arith.constant 0 : index
    %100 = vector.load %arg8[%c0_44, %c0_45] : memref<16x8xbf16, #tpu.memory_space<vmem>>, vector<16x8xbf16>
    %cst_46 = arith.constant dense<0.000000e+00> : vector<128x8xf32>
    %101 = tpu.matmul %82, %100, %cst_46 {dimension_numbers = #tpu.dot_dimension_numbers<[1], [0], [0], [1], [0, 0, 1, 1], [], []>} : vector<128x16xbf16>, vector<16x8xbf16>, vector<128x8xf32> -> vector<128x8xf32>
    %102 = vector.shape_cast %101 : vector<128x8xf32> to vector<2x64x8xf32>
    %103 = arith.truncf %102 : vector<2x64x8xf32> to vector<2x64x8xbf16>
    %104 = arith.truncf %99 : vector<2x1x8xf32> to vector<2x1x8xbf16>
    "tpu.trace_start"() <{level = 10 : i32, message = "bhc,boc->bho"}> : () -> ()
    %cst_47 = arith.constant dense<0.000000e+00> : vector<2x64x1xf32>
    %105 = tpu.matmul %103, %104, %cst_47 {dimension_numbers = #tpu.dot_dimension_numbers<[2], [2], [1], [1], [0, 0, 0, 1, 1, 1], [0], [0]>} : vector<2x64x8xbf16>, vector<2x1x8xbf16>, vector<2x64x1xf32> -> vector<2x64x1xf32>
    "tpu.trace_stop"() : () -> ()
    %106 = arith.negf %105 : vector<2x64x1xf32>
    %107 = math.exp %106 : vector<2x64x1xf32>
    %cst_48 = arith.constant 1.000000e+00 : f32
    %108 = vector.broadcast %cst_48 : f32 to vector<2x64x1xf32>
    %109 = arith.addf %108, %107 : vector<2x64x1xf32>
    %110 = arith.divf %108, %109 : vector<2x64x1xf32>
    %111 = vector.broadcast %110 : vector<2x64x1xf32> to vector<2x64x16xf32>
    %112 = arith.mulf %80, %111 : vector<2x64x16xf32>
    %113 = vector.shape_cast %112 : vector<2x64x16xf32> to vector<128x16xf32>
    %114 = arith.truncf %113 : vector<128x16xf32> to vector<128x16xbf16>
    %c0_49 = arith.constant 0 : index
    %c0_50 = arith.constant 0 : index
    %115 = vector.load %arg9[%c0_49, %c0_50] : memref<16x16xbf16, #tpu.memory_space<vmem>>, vector<16x16xbf16>
    %cst_51 = arith.constant dense<0.000000e+00> : vector<128x16xf32>
    %116 = tpu.matmul %114, %115, %cst_51 {dimension_numbers = #tpu.dot_dimension_numbers<[1], [0], [0], [1], [0, 0, 1, 1], [], []>} : vector<128x16xbf16>, vector<16x16xbf16>, vector<128x16xf32> -> vector<128x16xf32>
    %c2_52 = arith.constant 2 : index
    %c0_53 = arith.constant 0 : index
    %117 = vector.load %arg10[%c2_52, %c0_53] : memref<3x16xf32, #tpu.memory_space<vmem>>, vector<1x16xf32>
    %118 = vector.broadcast %117 : vector<1x16xf32> to vector<128x16xf32>
    %119 = arith.addf %116, %118 : vector<128x16xf32>
    %cst_54 = arith.constant 0.000000e+00 : f32
    %120 = vector.broadcast %cst_54 : f32 to vector<128x16xf32>
    %121 = arith.cmpf oge, %119, %120 : vector<128x16xf32>
    %122 = vector.broadcast %1 : f32 to vector<128x16xf32>
    %123 = arith.mulf %122, %119 : vector<128x16xf32>
    %124 = arith.select %121, %119, %123 : vector<128x16xi1>, vector<128x16xf32>
    %125 = vector.shape_cast %124 : vector<128x16xf32> to vector<2x64x16xf32>
    %cst_55 = arith.constant dense<0.000000e+00> : vector<2x16xf32>
    %126 = vector.multi_reduction <add>, %125, %cst_55 [1] : vector<2x64x16xf32> to vector<2x16xf32>
    %127 = vector.shape_cast %126 : vector<2x16xf32> to vector<2x1x16xf32>
    %cst_56 = arith.constant 6.400000e+01 : f32
    %128 = vector.broadcast %cst_56 : f32 to vector<2x1x16xf32>
    %129 = arith.divf %127, %128 : vector<2x1x16xf32>
    %130 = arith.truncf %129 : vector<2x1x16xf32> to vector<2x1x16xbf16>
    %c0_57 = arith.constant 0 : index
    %c0_58 = arith.constant 0 : index
    %c0_59 = arith.constant 0 : index
    %131 = vector.load %arg13[%c0_57, %c0_58, %c0_59] : memref<2x1x16xbf16, #tpu.memory_space<vmem>>, vector<2x1x16xbf16>
    tpu.vector_store %arg13[%c0_57, %c0_58, %c0_59], %130 {strides = array<i32>} : memref<2x1x16xbf16, #tpu.memory_space<vmem>>, vector<2x1x16xbf16>,
    return
  }
  func.func @transform_0(%arg0: i32) -> (i32, i32, i32) {
    %c0_i32 = arith.constant 0 : i32
    %c0_i32_0 = arith.constant 0 : i32
    %c0_i32_1 = arith.constant 0 : i32
    return %arg0, %c0_i32, %c0_i32_0 : i32, i32, i32
  }
  func.func @transform_1(%arg0: i32) -> (i32, i32) {
    %c0_i32 = arith.constant 0 : i32
    %c0_i32_0 = arith.constant 0 : i32
    %c0_i32_1 = arith.constant 0 : i32
    return %c0_i32, %c0_i32_0 : i32, i32
  }
  func.func @transform_2(%arg0: i32) -> (i32, i32) {
    %c0_i32 = arith.constant 0 : i32
    %c0_i32_0 = arith.constant 0 : i32
    %c0_i32_1 = arith.constant 0 : i32
    return %c0_i32, %c0_i32_0 : i32, i32
  }
  func.func @transform_3(%arg0: i32) -> (i32, i32) {
    %c0_i32 = arith.constant 0 : i32
    %c0_i32_0 = arith.constant 0 : i32
    %c0_i32_1 = arith.constant 0 : i32
    return %c0_i32, %c0_i32_0 : i32, i32
  }
  func.func @transform_4(%arg0: i32) -> (i32, i32) {
    %c0_i32 = arith.constant 0 : i32
    %c0_i32_0 = arith.constant 0 : i32
    %c0_i32_1 = arith.constant 0 : i32
    return %c0_i32, %c0_i32_0 : i32, i32
  }
  func.func @transform_5(%arg0: i32) -> (i32, i32) {
    %c0_i32 = arith.constant 0 : i32
    %c0_i32_0 = arith.constant 0 : i32
    %c0_i32_1 = arith.constant 0 : i32
    return %c0_i32, %c0_i32_0 : i32, i32
  }
  func.func @transform_6(%arg0: i32) -> (i32, i32) {
    %c0_i32 = arith.constant 0 : i32
    %c0_i32_0 = arith.constant 0 : i32
    %c0_i32_1 = arith.constant 0 : i32
    return %c0_i32, %c0_i32_0 : i32, i32
  }
  func.func @transform_7(%arg0: i32) -> (i32, i32) {
    %c0_i32 = arith.constant 0 : i32
    %c0_i32_0 = arith.constant 0 : i32
    %c0_i32_1 = arith.constant 0 : i32
    return %c0_i32, %c0_i32_0 : i32, i32
  }
  func.func @transform_8(%arg0: i32) -> (i32, i32) {
    %c0_i32 = arith.constant 0 : i32
    %c0_i32_0 = arith.constant 0 : i32
    %c0_i32_1 = arith.constant 0 : i32
    return %c0_i32, %c0_i32_0 : i32, i32
  }
  func.func @transform_9(%arg0: i32) -> (i32, i32) {
    %c0_i32 = arith.constant 0 : i32
    %c0_i32_0 = arith.constant 0 : i32
    %c0_i32_1 = arith.constant 0 : i32
    return %c0_i32, %c0_i32_0 : i32, i32
  }
  func.func @transform_10(%arg0: i32) -> (i32, i32) {
    %c0_i32 = arith.constant 0 : i32
    %c0_i32_0 = arith.constant 0 : i32
    %c0_i32_1 = arith.constant 0 : i32
    return %c0_i32, %c0_i32_0 : i32, i32
  }
  func.func @transform_11(%arg0: i32) -> i32 {
    %c0_i32 = arith.constant 0 : i32
    %c0_i32_0 = arith.constant 0 : i32
    return %c0_i32 : i32
  }
  func.func @transform_12(%arg0: i32) -> (i32, i32, i32) {
    %c0_i32 = arith.constant 0 : i32
    %c0_i32_0 = arith.constant 0 : i32
    %c0_i32_1 = arith.constant 0 : i32
    return %arg0, %c0_i32, %c0_i32_0 : i32, i32, i32
  }
}

</mosaic_0001>

<llo_original>
// kernel: psan_forward.3
$region0: #{psan_forward.3}
  #allocation0 [shape = 'u32[]', space=smem, size = 0x4, offset = 0x4, fixed_abs, tag = 'smem constant byte address 0x4 - core index']
  #allocation1 [shape = 'u32[144,128]{1,0:T(1,128)}', space=vmem, size = 0x12000, scoped, tag = 'internal scratch']
  %s0 = inlined_call_operand.vmem [shape: bf16[4,1,16], index: 0, kind: input, shape index: {}]
  %s1 = inlined_call_operand.vmem [shape: bf16[16,768], index: 1, kind: input, shape index: {}]
  %s2 = inlined_call_operand.vmem [shape: f32[1,768], index: 2, kind: input, shape index: {}]
  %s3 = inlined_call_operand.hbm [shape: bf16[768,512], index: 3, kind: input, shape index: {}]
  %s4 = inlined_call_operand.vmem [shape: f32[1,512], index: 4, kind: input, shape index: {}]
  %s5 = inlined_call_operand.vmem [shape: f32[2], index: 5, kind: input, shape index: {}]
  %s6 = inlined_call_operand.hbm [shape: f32[4,512], index: 6, kind: output, shape index: {}]
  %s7 = sld [smem:[#allocation0]]
  $region42: #{psan_forward.3} parent=0
    _
  %s9 = ssub.s32 1, %s7
  %s10 = scalar_select 0, %s9, %s7
  $region1: #{psan_forward.3} parent=0
    #allocation2 [shape = 'u8[786432]{0}', space=vmem, size = 0xc0000, scoped, tag = 'input window, operand 3, single buffered']
    #allocation3 [shape = 's32[1]{0}', space=sflag, size = 0x4, scoped, tag = 'scoped memory for psan_forward.3']
    #allocation4 [shape = 's32[1]{0}', space=sflag, size = 0x4, scoped, tag = 'scoped memory for psan_forward.3']
    #allocation5 [shape = 's32[1]{0}', space=sflag, size = 0x4, scoped, tag = 'scoped memory for psan_forward.3']
    #allocation6 [shape = 'u8[512]{0}', space=smem, size = 0x200, scoped, tag = 'input window, operand 5, single buffered']
    #allocation7 [shape = 'u8[8192]{0}', space=vmem, size = 0x2000, scoped, tag = 'output window, operand 0, single buffered']
    %11 = vsyncpa [#allocation3], 0
    %12 = vsyncpa [#allocation5], 0
    %13 = vsyncpa [#allocation4], 0
    // Predicated region
    $region2: #{psan_forward.3} parent=1 // pred_check
      _
    $region3: #{psan_forward.3} parent=1 // pred_check_branch
      %15 = sbr.rel (0) target = $region5
    $region4: #{psan_forward.3} parent=1 // pred_region
      _
    $region5: #{psan_forward.3} parent=1 // pred_fallthru
      _
    // Predicated region
    $region6: #{psan_forward.3} parent=1 // pred_check
      _
    $region7: #{psan_forward.3} parent=1 // pred_check_branch
      %17 = sbr.rel (0) target = $region9
    $region8: #{psan_forward.3} parent=1 // pred_region
      _
    $region9: #{psan_forward.3} parent=1 // pred_fallthru
      _
    // Predicated region
    $region10: #{psan_forward.3} parent=1 // pred_check
      _
    $region11: #{psan_forward.3} parent=1 // pred_check_branch
      %19 = sbr.rel (0) target = $region13
    $region12: #{psan_forward.3} parent=1 // pred_region
      _
    $region13: #{psan_forward.3} parent=1 // pred_fallthru
      _
    // Predicated region
    $region14: #{psan_forward.3} parent=1 // pred_check
      _
    $region15: #{psan_forward.3} parent=1 // pred_check_branch
      %21 = sbr.rel (0) target = $region17
    $region16: #{psan_forward.3} parent=1 // pred_region
      %s23 = ssub.s32 24576, 24576
      %24 = vsyncadd [#allocation3], %s23
      %s25 = sshll.u32 [#allocation2], 4
      %s26 = int_to_ptr.vmem [resolvable:$true] %s25
      %31 = dma.hbm_to_vmem [thread:$0]  %s3, 24576, %s26, [#allocation3], 256, 256, 16
    $region17: #{psan_forward.3} parent=1 // pred_fallthru
      _
    // Predicated region
    $region18: #{psan_forward.3} parent=1 // pred_check
      _
    $region19: #{psan_forward.3} parent=1 // pred_check_branch
      %33 = sbr.rel (0) target = $region21
    $region20: #{psan_forward.3} parent=1 // pred_region
      _
    $region21: #{psan_forward.3} parent=1 // pred_fallthru
      _
    // Predicated region
    $region22: #{psan_forward.3} parent=1 // pred_check
      _
    $region23: #{psan_forward.3} parent=1 // pred_check_branch
      %35 = sbr.rel (0) target = $region25
    $region24: #{psan_forward.3} parent=1 // pred_region
      %s37 = ssub.s32 16, 16
      %38 = vsyncadd [#allocation5], %s37
      %s40 = sshll.u32 %s5, 4
      %s41 = int_to_ptr.vmem [resolvable:$true] %s40
      %43 = dma.vmem_to_smem %s41, 16, [#allocation6], [#allocation5]
    $region25: #{psan_forward.3} parent=1 // pred_fallthru
      _
    // Predicated region
    $region26: #{psan_forward.3} parent=1 // pred_check
      _
    $region27: #{psan_forward.3} parent=1 // pred_check_branch
      %45 = sbr.rel (0) target = $region29
    $region28: #{psan_forward.3} parent=1 // pred_region
      %46 = dma.done [#allocation3], 24576
    $region29: #{psan_forward.3} parent=1 // pred_fallthru
      _
    // Predicated region
    $region30: #{psan_forward.3} parent=1 // pred_check
      _
    $region31: #{psan_forward.3} parent=1 // pred_check_branch
      %48 = sbr.rel (0) target = $region33
    $region32: #{psan_forward.3} parent=1 // pred_region
      %49 = dma.done [#allocation5], 16
    $region33: #{psan_forward.3} parent=1 // pred_fallthru
      _
    %50 = sfence
    %s52 = sld [smem:[#allocation6]]
    %s53 = sld [smem:[#allocation6 + $0x1]]
    %v54 = vld [vmem:[%s0] sm:$0x1]
    %v55 = vld [vmem:[%s0 + $0x1] sm:$0x1]
    %v56 = vld [vmem:[%s0 + $0x2] sm:$0x1]
    %v57 = vld [vmem:[%s0 + $0x3] sm:$0x1]
    %v58 = vld [vmem:[%s1] sm:$0xff]
    %v59 = vld [vmem:[%s1 + $0x8] sm:$0xff]
    %v60 = vld [vmem:[%s1 + $0x10] sm:$0xff]
    %v61 = vld [vmem:[%s1 + $0x18] sm:$0xff]
    %v62 = vld [vmem:[%s1 + $0x20] sm:$0xff]
    %v63 = vld [vmem:[%s1 + $0x28] sm:$0xff]
    %v64 = vld [vmem:[%s2] sm:$0x3f]
    %v66 = vlaneseq
    %v67 = vshrl.u32 %v66, 7
    %v68 = vsub.s32 0, %v67
    %v69 = vrot.slane %v64, %v68
    %v70 = vlaneseq
    %v71 = vshrl.u32 %v70, 7
    %v72 = vsub.s32 1, %v71
    %v73 = vrot.slane %v64, %v72
    %v74 = vlaneseq
    %v75 = vshrl.u32 %v74, 7
    %v76 = vsub.s32 2, %v75
    %v77 = vrot.slane %v64, %v76
    %v78 = vlaneseq
    %v79 = vshrl.u32 %v78, 7
    %v80 = vsub.s32 3, %v79
    %v81 = vrot.slane %v64, %v80
    %v82 = vlaneseq
    %v83 = vshrl.u32 %v82, 7
    %v84 = vsub.s32 4, %v83
    %v85 = vrot.slane %v64, %v84
    %v86 = vlaneseq
    %v87 = vshrl.u32 %v86, 7
    %v88 = vsub.s32 5, %v87
    %v89 = vrot.slane %v64, %v88
    %v101 = vunpack.c.l.s4 1966171168
    %v102 = vunpack.c.0.s8 %v101
    %v103 = vlaneseq
    %v104 = vshrl.u32 %v103, 7
    %v105 = vsub.s32 %v102, %v104
    %v106 = vrot.slane %v54, %v105
    %v108 = vunpack.c.l.s4 1966171168
    %v109 = vunpack.c.0.s8 %v108
    %v110 = vlaneseq
    %v111 = vshrl.u32 %v110, 7
    %v112 = vsub.s32 %v109, %v111
    %v113 = vrot.slane %v106, %v112
    %v115 = vunpack.c.l.s4 1966171168
    %v116 = vunpack.c.0.s8 %v115
    %v117 = vlaneseq
    %v118 = vshrl.u32 %v117, 7
    %v119 = vsub.s32 %v116, %v118
    %v120 = vrot.slane %v55, %v119
    %v122 = vunpack.c.l.s4 1966171168
    %v123 = vunpack.c.0.s8 %v122
    %v124 = vlaneseq
    %v125 = vshrl.u32 %v124, 7
    %v126 = vsub.s32 %v123, %v125
    %v127 = vrot.slane %v120, %v126
    %v129 = vunpack.c.l.s4 1966171168
    %v130 = vunpack.c.0.s8 %v129
    %v131 = vlaneseq
    %v132 = vshrl.u32 %v131, 7
    %v133 = vsub.s32 %v130, %v132
    %v134 = vrot.slane %v56, %v133
    %v136 = vunpack.c.l.s4 1966171168
    %v137 = vunpack.c.0.s8 %v136
    %v138 = vlaneseq
    %v139 = vshrl.u32 %v138, 7
    %v140 = vsub.s32 %v137, %v139
    %v141 = vrot.slane %v134, %v140
    %v143 = vunpack.c.l.s4 1966171168
    %v144 = vunpack.c.0.s8 %v143
    %v145 = vlaneseq
    %v146 = vshrl.u32 %v145, 7
    %v147 = vsub.s32 %v144, %v146
    %v148 = vrot.slane %v57, %v147
    %v150 = vunpack.c.l.s4 1966171168
    %v151 = vunpack.c.0.s8 %v150
    %v152 = vlaneseq
    %v153 = vshrl.u32 %v152, 7
    %v154 = vsub.s32 %v151, %v153
    %v155 = vrot.slane %v148, %v154
    %v156 = vunpack.c.l.b16 %v113
    %v157 = vunpack.c.l.b16 %v127
    %v158 = vunpack.c.l.b16 %v141
    %v159 = vunpack.c.l.b16 %v155
    %v160 = vrot.slane %v157, 7
    %vm161 = vcmask 1041409
    %v162 = vsel %vm161, %v160, %v156
    %v163 = vrot.slane %v158, 6
    %vm164 = vcmask 1042434
    %v165 = vsel %vm164, %v163, %v162
    %v166 = vrot.slane %v159, 5
    %vm167 = vcmask 1043459
    %v168 = vsel %vm167, %v166, %v165
    %v169 = vpack.c.b16 %v168, %v168
    %v176 = vunpack.c.l.b16 %v58
    %v177 = vunpack.c.h.b16 %v58
    %v178 = vunpack.c.l.b16 %v59
    %v179 = vunpack.c.h.b16 %v59
    %v180 = vunpack.c.l.b16 %v60
    %v181 = vunpack.c.h.b16 %v60
    %v182 = vunpack.c.l.b16 %v61
    %v183 = vunpack.c.h.b16 %v61
    %v184 = vunpack.c.l.b16 %v62
    %v185 = vunpack.c.h.b16 %v62
    %v186 = vunpack.c.l.b16 %v63
    %v187 = vunpack.c.h.b16 %v63
    %v188 = vpack.c.b16 %v182, %v176
    %v189 = vpack.c.b16 %v183, %v177
    %v190 = vpack.c.b16 %v184, %v178
    %v191 = vpack.c.b16 %v185, %v179
    %v192 = vpack.c.b16 %v186, %v180
    %v193 = vpack.c.b16 %v187, %v181
    %vm200 = vcmask 130048
    %v202 = vsel %vm200, %v169, 0
    %204 = vmatprep.subr.bf16.mxu0 %v189
    %205 = vmatpush1.bf16.msra.mxu0 %v188
    %206 = vmatprep.subr.bf16.mxu0 0
    %207 = vmatpush1.bf16.msra.mxu0 0
    %208 = vmatprep.subr.bf16.mxu0 0
    %209 = vmatpush1.bf16.msra.mxu0 0
    %210 = vmatprep.subr.bf16.mxu0 0
    %211 = vmatpush1.bf16.msra.mxu0 0
    %212 = vmatprep.subr.bf16.mxu0 0
    %213 = vmatpush1.bf16.msra.mxu0 0
    %214 = vmatprep.subr.bf16.mxu0 0
    %215 = vmatpush1.bf16.msra.mxu0 0
    %216 = vmatprep.subr.bf16.mxu0 0
    %217 = vmatpush1.bf16.msra.mxu0 0
    %218 = vmatprep.subr.bf16.mxu0 0
    %219 = vmatpush1.bf16.msra.mxu0 0
    %220 = vmatprep.subr.bf16.mxu0 0
    %221 = vmatpush1.bf16.msra.mxu0 0
    %222 = vmatprep.subr.bf16.mxu0 0
    %223 = vmatpush1.bf16.msra.mxu0 0
    %224 = vmatprep.subr.bf16.mxu0 0
    %225 = vmatpush1.bf16.msra.mxu0 0
    %226 = vmatprep.subr.bf16.mxu0 0
    %227 = vmatpush1.bf16.msra.mxu0 0
    %228 = vmatprep.subr.bf16.mxu0 0
    %229 = vmatpush1.bf16.msra.mxu0 0
    %230 = vmatprep.subr.bf16.mxu0 0
    %231 = vmatpush1.bf16.msra.mxu0 0
    %232 = vmatprep.subr.bf16.mxu0 0
    %233 = vmatpush1.bf16.msra.mxu0 0
    %234 = vmatprep.subr.bf16.mxu0 0
    %235 = vmatpush1.bf16.msra.mxu0 0
    %236 = vmatprep.mubr.bf16.mxu0 0
    %237 = vmatmul.mubr.bf16.gmra.mrb[0].mxu0 %v202
    %v238 = vpop.f32.mrb[0].mxu0
    %v239 = vadd.f32 %v69, %v238
    %v240 = vpop.f32.mrb[0].mxu0
    %v241 = vadd.f32 %v73, %v240
    %v242 = vpop.f32.mrb[0].mxu0
    %v243 = vpop.f32.mrb[0].mxu0
    %244 = vdwg.mxu0
    %245 = vmatprep.subr.bf16.mxu0 %v191
    %246 = vmatpush1.bf16.msra.mxu0 %v190
    %247 = vmatprep.subr.bf16.mxu0 0
    %248 = vmatpush1.bf16.msra.mxu0 0
    %249 = vmatprep.subr.bf16.mxu0 0
    %250 = vmatpush1.bf16.msra.mxu0 0
    %251 = vmatprep.subr.bf16.mxu0 0
    %252 = vmatpush1.bf16.msra.mxu0 0
    %253 = vmatprep.subr.bf16.mxu0 0
    %254 = vmatpush1.bf16.msra.mxu0 0
    %255 = vmatprep.subr.bf16.mxu0 0
    %256 = vmatpush1.bf16.msra.mxu0 0
    %257 = vmatprep.subr.bf16.mxu0 0
    %258 = vmatpush1.bf16.msra.mxu0 0
    %259 = vmatprep.subr.bf16.mxu0 0
    %260 = vmatpush1.bf16.msra.mxu0 0
    %261 = vmatprep.subr.bf16.mxu0 0
    %262 = vmatpush1.bf16.msra.mxu0 0
    %263 = vmatprep.subr.bf16.mxu0 0
    %264 = vmatpush1.bf16.msra.mxu0 0
    %265 = vmatprep.subr.bf16.mxu0 0
    %266 = vmatpush1.bf16.msra.mxu0 0
    %267 = vmatprep.subr.bf16.mxu0 0
    %268 = vmatpush1.bf16.msra.mxu0 0
    %269 = vmatprep.subr.bf16.mxu0 0
    %270 = vmatpush1.bf16.msra.mxu0 0
    %271 = vmatprep.subr.bf16.mxu0 0
    %272 = vmatpush1.bf16.msra.mxu0 0
    %273 = vmatprep.subr.bf16.mxu0 0
    %274 = vmatpush1.bf16.msra.mxu0 0
    %275 = vmatprep.subr.bf16.mxu0 0
    %276 = vmatpush1.bf16.msra.mxu0 0
    %277 = vmatprep.mubr.bf16.mxu0 0
    %278 = vmatmul.mubr.bf16.gmra.mrb[0].mxu0 %v202
    %v279 = vpop.f32.mrb[0].mxu0
    %v280 = vadd.f32 %v77, %v279
    %v281 = vpop.f32.mrb[0].mxu0
    %v282 = vadd.f32 %v81, %v281
    %v283 = vpop.f32.mrb[0].mxu0
    %v284 = vpop.f32.mrb[0].mxu0
    %285 = vdwg.mxu0
    %286 = vmatprep.subr.bf16.mxu0 %v193
    %287 = vmatpush1.bf16.msra.mxu0 %v192
    %288 = vmatprep.subr.bf16.mxu0 0
    %289 = vmatpush1.bf16.msra.mxu0 0
    %290 = vmatprep.subr.bf16.mxu0 0
    %291 = vmatpush1.bf16.msra.mxu0 0
    %292 = vmatprep.subr.bf16.mxu0 0
    %293 = vmatpush1.bf16.msra.mxu0 0
    %294 = vmatprep.subr.bf16.mxu0 0
    %295 = vmatpush1.bf16.msra.mxu0 0
    %296 = vmatprep.subr.bf16.mxu0 0
    %297 = vmatpush1.bf16.msra.mxu0 0
    %298 = vmatprep.subr.bf16.mxu0 0
    %299 = vmatpush1.bf16.msra.mxu0 0
    %300 = vmatprep.subr.bf16.mxu0 0
    %301 = vmatpush1.bf16.msra.mxu0 0
    %302 = vmatprep.subr.bf16.mxu0 0
    %303 = vmatpush1.bf16.msra.mxu0 0
    %304 = vmatprep.subr.bf16.mxu0 0
    %305 = vmatpush1.bf16.msra.mxu0 0
    %306 = vmatprep.subr.bf16.mxu0 0
    %307 = vmatpush1.bf16.msra.mxu0 0
    %308 = vmatprep.subr.bf16.mxu0 0
    %309 = vmatpush1.bf16.msra.mxu0 0
    %310 = vmatprep.subr.bf16.mxu0 0
    %311 = vmatpush1.bf16.msra.mxu0 0
    %312 = vmatprep.subr.bf16.mxu0 0
    %313 = vmatpush1.bf16.msra.mxu0 0
    %314 = vmatprep.subr.bf16.mxu0 0
    %315 = vmatpush1.bf16.msra.mxu0 0
    %316 = vmatprep.subr.bf16.mxu0 0
    %317 = vmatpush1.bf16.msra.mxu0 0
    %318 = vmatprep.mubr.bf16.mxu0 0
    %319 = vmatmul.mubr.bf16.gmra.mrb[0].mxu0 %v202
    %v320 = vpop.f32.mrb[0].mxu0
    %v321 = vadd.f32 %v85, %v320
    %v322 = vpop.f32.mrb[0].mxu0
    %v323 = vadd.f32 %v89, %v322
    %v324 = vpop.f32.mrb[0].mxu0
    %v325 = vpop.f32.mrb[0].mxu0
    %326 = vdwg.mxu0
    %vm327 = vcmp.ge.f32.partialorder %v239, 0.0
    %vm328 = vcmp.ge.f32.partialorder %v241, 0.0
    %vm329 = vcmp.ge.f32.partialorder %v280, 0.0
    %vm330 = vcmp.ge.f32.partialorder %v282, 0.0
    %vm331 = vcmp.ge.f32.partialorder %v321, 0.0
    %vm332 = vcmp.ge.f32.partialorder %v323, 0.0
    %v333 = vstv %s52
    %v334 = vmul.f32 %v333, %v239
    %v335 = vmul.f32 %v333, %v241
    %v336 = vmul.f32 %v333, %v280
    %v337 = vmul.f32 %v333, %v282
    %v338 = vmul.f32 %v333, %v321
    %v339 = vmul.f32 %v333, %v323
    %v340 = vsel %vm327, %v239, %v334
    %v341 = vsel %vm328, %v241, %v335
    %v342 = vsel %vm329, %v280, %v336
    %v343 = vsel %vm330, %v282, %v337
    %v344 = vsel %vm331, %v321, %v338
    %v345 = vsel %vm332, %v323, %v339
    %v346 = vpack.c.bf16 %v340, %v340
    %v347 = vpack.c.bf16 %v341, %v341
    %v348 = vpack.c.bf16 %v342, %v342
    %v349 = vpack.c.bf16 %v343, %v343
    %v350 = vpack.c.bf16 %v344, %v344
    %v351 = vpack.c.bf16 %v345, %v345
    %v352 = vld [vmem:[#allocation2] sm:$0xff]
    %v353 = vld [vmem:[#allocation2 + $0x8] sm:$0xff]
    %v354 = vld [vmem:[#allocation2 + $0x10] sm:$0xff]
    %v355 = vld [vmem:[#allocation2 + $0x18] sm:$0xff]
    %v356 = vld [vmem:[#allocation2 + $0x20] sm:$0xff]
    %v357 = vld [vmem:[#allocation2 + $0x28] sm:$0xff]
    %v358 = vld [vmem:[#allocation2 + $0x30] sm:$0xff]
    %v359 = vld [vmem:[#allocation2 + $0x38] sm:$0xff]
    %v360 = vld [vmem:[#allocation2 + $0x40] sm:$0xff]
    %v361 = vld [vmem:[#allocation2 + $0x48] sm:$0xff]
    %v362 = vld [vmem:[#allocation2 + $0x50] sm:$0xff]
    %v363 = vld [vmem:[#allocation2 + $0x58] sm:$0xff]
    %v364 = vld [vmem:[#allocation2 + $0x60] sm:$0xff]
    %v365 = vld [vmem:[#allocation2 + $0x68] sm:$0xff]
    %v366 = vld [vmem:[#allocation2 + $0x70] sm:$0xff]
    %v367 = vld [vmem:[#allocation2 + $0x78] sm:$0xff]
    %v368 = vld [vmem:[#allocation2 + $0x80] sm:$0xff]
    %v369 = vld [vmem:[#allocation2 + $0x88] sm:$0xff]
    %v370 = vld [vmem:[#allocation2 + $0x90] sm:$0xff]
    %v371 = vld [vmem:[#allocation2 + $0x98] sm:$0xff]
    %v372 = vld [vmem:[#allocation2 + $0xa0] sm:$0xff]
    %v373 = vld [vmem:[#allocation2 + $0xa8] sm:$0xff]
    %v374 = vld [vmem:[#allocation2 + $0xb0] sm:$0xff]
    %v375 = vld [vmem:[#allocation2 + $0xb8] sm:$0xff]
    %v376 = vld [vmem:[#allocation2 + $0xc0] sm:$0xff]
    %v377 = vld [vmem:[#allocation2 + $0xc8] sm:$0xff]
    %v378 = vld [vmem:[#allocation2 + $0xd0] sm:$0xff]
    %v379 = vld [vmem:[#allocation2 + $0xd8] sm:$0xff]
    %v380 = vld [vmem:[#allocation2 + $0xe0] sm:$0xff]
    %v381 = vld [vmem:[#allocation2 + $0xe8] sm:$0xff]
    %v382 = vld [vmem:[#allocation2 + $0xf0] sm:$0xff]
    %v383 = vld [vmem:[#allocation2 + $0xf8] sm:$0xff]
    %v384 = vld [vmem:[#allocation2 + $0x100] sm:$0xff]
    %v385 = vld [vmem:[#allocation2 + $0x108] sm:$0xff]
    %v386 = vld [vmem:[#allocation2 + $0x110] sm:$0xff]
    %v387 = vld [vmem:[#allocation2 + $0x118] sm:$0xff]
    %v388 = vld [vmem:[#allocation2 + $0x120] sm:$0xff]
    %v389 = vld [vmem:[#allocation2 + $0x128] sm:$0xff]
    %v390 = vld [vmem:[#allocation2 + $0x130] sm:$0xff]
    %v391 = vld [vmem:[#allocation2 + $0x138] sm:$0xff]
    %v392 = vld [vmem:[#allocation2 + $0x140] sm:$0xff]
    %v393 = vld [vmem:[#allocation2 + $0x148] sm:$0xff]
    %v394 = vld [vmem:[#allocation2 + $0x150] sm:$0xff]
    %v395 = vld [vmem:[#allocation2 + $0x158] sm:$0xff]
    %v396 = vld [vmem:[#allocation2 + $0x160] sm:$0xff]
    %v397 = vld [vmem:[#allocation2 + $0x168] sm:$0xff]
    %v398 = vld [vmem:[#allocation2 + $0x170] sm:$0xff]
    %v399 = vld [vmem:[#allocation2 + $0x178] sm:$0xff]
    %v400 = vld [vmem:[#allocation2 + $0x180] sm:$0xff]
    %v401 = vld [vmem:[#allocation2 + $0x188] sm:$0xff]
    %v402 = vld [vmem:[#allocation2 + $0x190] sm:$0xff]
    %v403 = vld [vmem:[#allocation2 + $0x198] sm:$0xff]
    %v404 = vld [vmem:[#allocation2 + $0x1a0] sm:$0xff]
    %v405 = vld [vmem:[#allocation2 + $0x1a8] sm:$0xff]
    %v406 = vld [vmem:[#allocation2 + $0x1b0] sm:$0xff]
    %v407 = vld [vmem:[#allocation2 + $0x1b8] sm:$0xff]
    %v408 = vld [vmem:[#allocation2 + $0x1c0] sm:$0xff]
    %v409 = vld [vmem:[#allocation2 + $0x1c8] sm:$0xff]
    %v410 = vld [vmem:[#allocation2 + $0x1d0] sm:$0xff]
    %v411 = vld [vmem:[#allocation2 + $0x1d8] sm:$0xff]
    %v412 = vld [vmem:[#allocation2 + $0x1e0] sm:$0xff]
    %v413 = vld [vmem:[#allocation2 + $0x1e8] sm:$0xff]
    %v414 = vld [vmem:[#allocation2 + $0x1f0] sm:$0xff]
    %v415 = vld [vmem:[#allocation2 + $0x1f8] sm:$0xff]
    %v416 = vld [vmem:[#allocation2 + $0x200] sm:$0xff]
    %v417 = vld [vmem:[#allocation2 + $0x208] sm:$0xff]
    %v418 = vld [vmem:[#allocation2 + $0x210] sm:$0xff]
    %v419 = vld [vmem:[#allocation2 + $0x218] sm:$0xff]
    %v420 = vld [vmem:[#allocation2 + $0x220] sm:$0xff]
    %v421 = vld [vmem:[#allocation2 + $0x228] sm:$0xff]
    %v422 = vld [vmem:[#allocation2 + $0x230] sm:$0xff]
    %v423 = vld [vmem:[#allocation2 + $0x238] sm:$0xff]
    %v424 = vld [vmem:[#allocation2 + $0x240] sm:$0xff]
    %v425 = vld [vmem:[#allocation2 + $0x248] sm:$0xff]
    %v426 = vld [vmem:[#allocation2 + $0x250] sm:$0xff]
    %v427 = vld [vmem:[#allocation2 + $0x258] sm:$0xff]
    %v428 = vld [vmem:[#allocation2 + $0x260] sm:$0xff]
    %v429 = vld [vmem:[#allocation2 + $0x268] sm:$0xff]
    %v430 = vld [vmem:[#allocation2 + $0x270] sm:$0xff]
    %v431 = vld [vmem:[#allocation2 + $0x278] sm:$0xff]
    %v432 = vld [vmem:[#allocation2 + $0x280] sm:$0xff]
    %v433 = vld [vmem:[#allocation2 + $0x288] sm:$0xff]
    %v434 = vld [vmem:[#allocation2 + $0x290] sm:$0xff]
    %v435 = vld [vmem:[#allocation2 + $0x298] sm:$0xff]
    %v436 = vld [vmem:[#allocation2 + $0x2a0] sm:$0xff]
    %v437 = vld [vmem:[#allocation2 + $0x2a8] sm:$0xff]
    %v438 = vld [vmem:[#allocation2 + $0x2b0] sm:$0xff]
    %v439 = vld [vmem:[#allocation2 + $0x2b8] sm:$0xff]
    %v440 = vld [vmem:[#allocation2 + $0x2c0] sm:$0xff]
    %v441 = vld [vmem:[#allocation2 + $0x2c8] sm:$0xff]
    %v442 = vld [vmem:[#allocation2 + $0x2d0] sm:$0xff]
    %v443 = vld [vmem:[#allocation2 + $0x2d8] sm:$0xff]
    %v444 = vld [vmem:[#allocation2 + $0x2e0] sm:$0xff]
    %v445 = vld [vmem:[#allocation2 + $0x2e8] sm:$0xff]
    %v446 = vld [vmem:[#allocation2 + $0x2f0] sm:$0xff]
    %v447 = vld [vmem:[#allocation2 + $0x2f8] sm:$0xff]
    %v448 = vld [vmem:[#allocation2 + $0x300] sm:$0xff]
    %v449 = vld [vmem:[#allocation2 + $0x308] sm:$0xff]
    %v450 = vld [vmem:[#allocation2 + $0x310] sm:$0xff]
    %v451 = vld [vmem:[#allocation2 + $0x318] sm:$0xff]
    %v452 = vld [vmem:[#allocation2 + $0x320] sm:$0xff]
    %v453 = vld [vmem:[#allocation2 + $0x328] sm:$0xff]
    %v454 = vld [vmem:[#allocation2 + $0x330] sm:$0xff]
    %v455 = vld [vmem:[#allocation2 + $0x338] sm:$0xff]
    %v456 = vld [vmem:[#allocation2 + $0x340] sm:$0xff]
    %v457 = vld [vmem:[#allocation2 + $0x348] sm:$0xff]
    %v458 = vld [vmem:[#allocation2 + $0x350] sm:$0xff]
    %v459 = vld [vmem:[#allocation2 + $0x358] sm:$0xff]
    %v460 = vld [vmem:[#allocation2 + $0x360] sm:$0xff]
    %v461 = vld [vmem:[#allocation2 + $0x368] sm:$0xff]
    %v462 = vld [vmem:[#allocation2 + $0x370] sm:$0xff]
    %v463 = vld [vmem:[#allocation2 + $0x378] sm:$0xff]
    %v464 = vld [vmem:[#allocation2 + $0x380] sm:$0xff]
    %v465 = vld [vmem:[#allocation2 + $0x388] sm:$0xff]
    %v466 = vld [vmem:[#allocation2 + $0x390] sm:$0xff]
    %v467 = vld [vmem:[#allocation2 + $0x398] sm:$0xff]
    %v468 = vld [vmem:[#allocation2 + $0x3a0] sm:$0xff]
    %v469 = vld [vmem:[#allocation2 + $0x3a8] sm:$0xff]
    %v470 = vld [vmem:[#allocation2 + $0x3b0] sm:$0xff]
    %v471 = vld [vmem:[#allocation2 + $0x3b8] sm:$0xff]
    %v472 = vld [vmem:[#allocation2 + $0x3c0] sm:$0xff]
    %v473 = vld [vmem:[#allocation2 + $0x3c8] sm:$0xff]
    %v474 = vld [vmem:[#allocation2 + $0x3d0] sm:$0xff]
    %v475 = vld [vmem:[#allocation2 + $0x3d8] sm:$0xff]
    %v476 = vld [vmem:[#allocation2 + $0x3e0] sm:$0xff]
    %v477 = vld [vmem:[#allocation2 + $0x3e8] sm:$0xff]
    %v478 = vld [vmem:[#allocation2 + $0x3f0] sm:$0xff]
    %v479 = vld [vmem:[#allocation2 + $0x3f8] sm:$0xff]
    %v480 = vld [vmem:[#allocation2 + $0x400] sm:$0xff]
    %v481 = vld [vmem:[#allocation2 + $0x408] sm:$0xff]
    %v482 = vld [vmem:[#allocation2 + $0x410] sm:$0xff]
    %v483 = vld [vmem:[#allocation2 + $0x418] sm:$0xff]
    %v484 = vld [vmem:[#allocation2 + $0x420] sm:$0xff]
    %v485 = vld [vmem:[#allocation2 + $0x428] sm:$0xff]
    %v486 = vld [vmem:[#allocation2 + $0x430] sm:$0xff]
    %v487 = vld [vmem:[#allocation2 + $0x438] sm:$0xff]
    %v488 = vld [vmem:[#allocation2 + $0x440] sm:$0xff]
    %v489 = vld [vmem:[#allocation2 + $0x448] sm:$0xff]
    %v490 = vld [vmem:[#allocation2 + $0x450] sm:$0xff]
    %v491 = vld [vmem:[#allocation2 + $0x458] sm:$0xff]
    %v492 = vld [vmem:[#allocation2 + $0x460] sm:$0xff]
    %v493 = vld [vmem:[#allocation2 + $0x468] sm:$0xff]
    %v494 = vld [vmem:[#allocation2 + $0x470] sm:$0xff]
    %v495 = vld [vmem:[#allocation2 + $0x478] sm:$0xff]
    %v496 = vld [vmem:[#allocation2 + $0x480] sm:$0xff]
    %v497 = vld [vmem:[#allocation2 + $0x488] sm:$0xff]
    %v498 = vld [vmem:[#allocation2 + $0x490] sm:$0xff]
    %v499 = vld [vmem:[#allocation2 + $0x498] sm:$0xff]
    %v500 = vld [vmem:[#allocation2 + $0x4a0] sm:$0xff]
    %v501 = vld [vmem:[#allocation2 + $0x4a8] sm:$0xff]
    %v502 = vld [vmem:[#allocation2 + $0x4b0] sm:$0xff]
    %v503 = vld [vmem:[#allocation2 + $0x4b8] sm:$0xff]
    %v504 = vld [vmem:[#allocation2 + $0x4c0] sm:$0xff]
    %v505 = vld [vmem:[#allocation2 + $0x4c8] sm:$0xff]
    %v506 = vld [vmem:[#allocation2 + $0x4d0] sm:$0xff]
    %v507 = vld [vmem:[#allocation2 + $0x4d8] sm:$0xff]
    %v508 = vld [vmem:[#allocation2 + $0x4e0] sm:$0xff]
    %v509 = vld [vmem:[#allocation2 + $0x4e8] sm:$0xff]
    %v510 = vld [vmem:[#allocation2 + $0x4f0] sm:$0xff]
    %v511 = vld [vmem:[#allocation2 + $0x4f8] sm:$0xff]
    %v512 = vld [vmem:[#allocation2 + $0x500] sm:$0xff]
    %v513 = vld [vmem:[#allocation2 + $0x508] sm:$0xff]
    %v514 = vld [vmem:[#allocation2 + $0x510] sm:$0xff]
    %v515 = vld [vmem:[#allocation2 + $0x518] sm:$0xff]
    %v516 = vld [vmem:[#allocation2 + $0x520] sm:$0xff]
    %v517 = vld [vmem:[#allocation2 + $0x528] sm:$0xff]
    %v518 = vld [vmem:[#allocation2 + $0x530] sm:$0xff]
    %v519 = vld [vmem:[#allocation2 + $0x538] sm:$0xff]
    %v520 = vld [vmem:[#allocation2 + $0x540] sm:$0xff]
    %v521 = vld [vmem:[#allocation2 + $0x548] sm:$0xff]
    %v522 = vld [vmem:[#allocation2 + $0x550] sm:$0xff]
    %v523 = vld [vmem:[#allocation2 + $0x558] sm:$0xff]
    %v524 = vld [vmem:[#allocation2 + $0x560] sm:$0xff]
    %v525 = vld [vmem:[#allocation2 + $0x568] sm:$0xff]
    %v526 = vld [vmem:[#allocation2 + $0x570] sm:$0xff]
    %v527 = vld [vmem:[#allocation2 + $0x578] sm:$0xff]
    %v528 = vld [vmem:[#allocation2 + $0x580] sm:$0xff]
    %v529 = vld [vmem:[#allocation2 + $0x588] sm:$0xff]
    %v530 = vld [vmem:[#allocation2 + $0x590] sm:$0xff]
    %v531 = vld [vmem:[#allocation2 + $0x598] sm:$0xff]
    %v532 = vld [vmem:[#allocation2 + $0x5a0] sm:$0xff]
    %v533 = vld [vmem:[#allocation2 + $0x5a8] sm:$0xff]
    %v534 = vld [vmem:[#allocation2 + $0x5b0] sm:$0xff]
    %v535 = vld [vmem:[#allocation2 + $0x5b8] sm:$0xff]
    %v536 = vld [vmem:[#allocation2 + $0x5c0] sm:$0xff]
    %v537 = vld [vmem:[#allocation2 + $0x5c8] sm:$0xff]
    %v538 = vld [vmem:[#allocation2 + $0x5d0] sm:$0xff]
    %v539 = vld [vmem:[#allocation2 + $0x5d8] sm:$0xff]
    %v540 = vld [vmem:[#allocation2 + $0x5e0] sm:$0xff]
    %v541 = vld [vmem:[#allocation2 + $0x5e8] sm:$0xff]
    %v542 = vld [vmem:[#allocation2 + $0x5f0] sm:$0xff]
    %v543 = vld [vmem:[#allocation2 + $0x5f8] sm:$0xff]
    %v544 = vld [vmem:[%s4] sm:$0xf]
    %v546 = vlaneseq
    %v547 = vshrl.u32 %v546, 7
    %v548 = vsub.s32 0, %v547
    %v549 = vrot.slane %v544, %v548
    %v550 = vlaneseq
    %v551 = vshrl.u32 %v550, 7
    %v552 = vsub.s32 1, %v551
    %v553 = vrot.slane %v544, %v552
    %v554 = vlaneseq
    %v555 = vshrl.u32 %v554, 7
    %v556 = vsub.s32 2, %v555
    %v557 = vrot.slane %v544, %v556
    %v558 = vlaneseq
    %v559 = vshrl.u32 %v558, 7
    %v560 = vsub.s32 3, %v559
    %v561 = vrot.slane %v544, %v560
    %v758 = vunpack.c.l.b16 %v352
    %v759 = vunpack.c.h.b16 %v352
    %v760 = vunpack.c.l.b16 %v353
    %v761 = vunpack.c.h.b16 %v353
    %v762 = vunpack.c.l.b16 %v354
    %v763 = vunpack.c.h.b16 %v354
    %v764 = vunpack.c.l.b16 %v355
    %v765 = vunpack.c.h.b16 %v355
    %v766 = vunpack.c.l.b16 %v356
    %v767 = vunpack.c.h.b16 %v356
    %v768 = vunpack.c.l.b16 %v357
    %v769 = vunpack.c.h.b16 %v357
    %v770 = vunpack.c.l.b16 %v358
    %v771 = vunpack.c.h.b16 %v358
    %v772 = vunpack.c.l.b16 %v359
    %v773 = vunpack.c.h.b16 %v359
    %v774 = vunpack.c.l.b16 %v360
    %v775 = vunpack.c.h.b16 %v360
    %v776 = vunpack.c.l.b16 %v361
    %v777 = vunpack.c.h.b16 %v361
    %v778 = vunpack.c.l.b16 %v362
    %v779 = vunpack.c.h.b16 %v362
    %v780 = vunpack.c.l.b16 %v363
    %v781 = vunpack.c.h.b16 %v363
    %v782 = vunpack.c.l.b16 %v364
    %v783 = vunpack.c.h.b16 %v364
    %v784 = vunpack.c.l.b16 %v365
    %v785 = vunpack.c.h.b16 %v365
    %v786 = vunpack.c.l.b16 %v366
    %v787 = vunpack.c.h.b16 %v366
    %v788 = vunpack.c.l.b16 %v367
    %v789 = vunpack.c.h.b16 %v367
    %v790 = vunpack.c.l.b16 %v368
    %v791 = vunpack.c.h.b16 %v368
    %v792 = vunpack.c.l.b16 %v369
    %v793 = vunpack.c.h.b16 %v369
    %v794 = vunpack.c.l.b16 %v370
    %v795 = vunpack.c.h.b16 %v370
    %v796 = vunpack.c.l.b16 %v371
    %v797 = vunpack.c.h.b16 %v371
    %v798 = vunpack.c.l.b16 %v372
    %v799 = vunpack.c.h.b16 %v372
    %v800 = vunpack.c.l.b16 %v373
    %v801 = vunpack.c.h.b16 %v373
    %v802 = vunpack.c.l.b16 %v374
    %v803 = vunpack.c.h.b16 %v374
    %v804 = vunpack.c.l.b16 %v375
    %v805 = vunpack.c.h.b16 %v375
    %v806 = vunpack.c.l.b16 %v376
    %v807 = vunpack.c.h.b16 %v376
    %v808 = vunpack.c.l.b16 %v377
    %v809 = vunpack.c.h.b16 %v377
    %v810 = vunpack.c.l.b16 %v378
    %v811 = vunpack.c.h.b16 %v378
    %v812 = vunpack.c.l.b16 %v379
    %v813 = vunpack.c.h.b16 %v379
    %v814 = vunpack.c.l.b16 %v380
    %v815 = vunpack.c.h.b16 %v380
    %v816 = vunpack.c.l.b16 %v381
    %v817 = vunpack.c.h.b16 %v381
    %v818 = vunpack.c.l.b16 %v382
    %v819 = vunpack.c.h.b16 %v382
    %v820 = vunpack.c.l.b16 %v383
    %v821 = vunpack.c.h.b16 %v383
    %v822 = vunpack.c.l.b16 %v384
    %v823 = vunpack.c.h.b16 %v384
    %v824 = vunpack.c.l.b16 %v385
    %v825 = vunpack.c.h.b16 %v385
    %v826 = vunpack.c.l.b16 %v386
    %v827 = vunpack.c.h.b16 %v386
    %v828 = vunpack.c.l.b16 %v387
    %v829 = vunpack.c.h.b16 %v387
    %v830 = vunpack.c.l.b16 %v388
    %v831 = vunpack.c.h.b16 %v388
    %v832 = vunpack.c.l.b16 %v389
    %v833 = vunpack.c.h.b16 %v389
    %v834 = vunpack.c.l.b16 %v390
    %v835 = vunpack.c.h.b16 %v390
    %v836 = vunpack.c.l.b16 %v391
    %v837 = vunpack.c.h.b16 %v391
    %v838 = vunpack.c.l.b16 %v392
    %v839 = vunpack.c.h.b16 %v392
    %v840 = vunpack.c.l.b16 %v393
    %v841 = vunpack.c.h.b16 %v393
    %v842 = vunpack.c.l.b16 %v394
    %v843 = vunpack.c.h.b16 %v394
    %v844 = vunpack.c.l.b16 %v395
    %v845 = vunpack.c.h.b16 %v395
    %v846 = vunpack.c.l.b16 %v396
    %v847 = vunpack.c.h.b16 %v396
    %v848 = vunpack.c.l.b16 %v397
    %v849 = vunpack.c.h.b16 %v397
    %v850 = vunpack.c.l.b16 %v398
    %v851 = vunpack.c.h.b16 %v398
    %v852 = vunpack.c.l.b16 %v399
    %v853 = vunpack.c.h.b16 %v399
    %v854 = vunpack.c.l.b16 %v400
    %v855 = vunpack.c.h.b16 %v400
    %v856 = vunpack.c.l.b16 %v401
    %v857 = vunpack.c.h.b16 %v401
    %v858 = vunpack.c.l.b16 %v402
    %v859 = vunpack.c.h.b16 %v402
    %v860 = vunpack.c.l.b16 %v403
    %v861 = vunpack.c.h.b16 %v403
    %v862 = vunpack.c.l.b16 %v404
    %v863 = vunpack.c.h.b16 %v404
    %v864 = vunpack.c.l.b16 %v405
    %v865 = vunpack.c.h.b16 %v405
    %v866 = vunpack.c.l.b16 %v406
    %v867 = vunpack.c.h.b16 %v406
    %v868 = vunpack.c.l.b16 %v407
    %v869 = vunpack.c.h.b16 %v407
    %v870 = vunpack.c.l.b16 %v408
    %v871 = vunpack.c.h.b16 %v408
    %v872 = vunpack.c.l.b16 %v409
    %v873 = vunpack.c.h.b16 %v409
    %v874 = vunpack.c.l.b16 %v410
    %v875 = vunpack.c.h.b16 %v410
    %v876 = vunpack.c.l.b16 %v411
    %v877 = vunpack.c.h.b16 %v411
    %v878 = vunpack.c.l.b16 %v412
    %v879 = vunpack.c.h.b16 %v412
    %v880 = vunpack.c.l.b16 %v413
    %v881 = vunpack.c.h.b16 %v413
    %v882 = vunpack.c.l.b16 %v414
    %v883 = vunpack.c.h.b16 %v414
    %v884 = vunpack.c.l.b16 %v415
    %v885 = vunpack.c.h.b16 %v415
    %v886 = vunpack.c.l.b16 %v416
    %v887 = vunpack.c.h.b16 %v416
    %v888 = vunpack.c.l.b16 %v417
    %v889 = vunpack.c.h.b16 %v417
    %v890 = vunpack.c.l.b16 %v418
    %v891 = vunpack.c.h.b16 %v418
    %v892 = vunpack.c.l.b16 %v419
    %v893 = vunpack.c.h.b16 %v419
    %v894 = vunpack.c.l.b16 %v420
    %v895 = vunpack.c.h.b16 %v420
    %v896 = vunpack.c.l.b16 %v421
    %v897 = vunpack.c.h.b16 %v421
    %v898 = vunpack.c.l.b16 %v422
    %v899 = vunpack.c.h.b16 %v422
    %v900 = vunpack.c.l.b16 %v423
    %v901 = vunpack.c.h.b16 %v423
    %v902 = vunpack.c.l.b16 %v424
    %v903 = vunpack.c.h.b16 %v424
    %v904 = vunpack.c.l.b16 %v425
    %v905 = vunpack.c.h.b16 %v425
    %v906 = vunpack.c.l.b16 %v426
    %v907 = vunpack.c.h.b16 %v426
    %v908 = vunpack.c.l.b16 %v427
    %v909 = vunpack.c.h.b16 %v427
    %v910 = vunpack.c.l.b16 %v428
    %v911 = vunpack.c.h.b16 %v428
    %v912 = vunpack.c.l.b16 %v429
    %v913 = vunpack.c.h.b16 %v429
    %v914 = vunpack.c.l.b16 %v430
    %v915 = vunpack.c.h.b16 %v430
    %v916 = vunpack.c.l.b16 %v431
    %v917 = vunpack.c.h.b16 %v431
    %v918 = vunpack.c.l.b16 %v432
    %v919 = vunpack.c.h.b16 %v432
    %v920 = vunpack.c.l.b16 %v433
    %v921 = vunpack.c.h.b16 %v433
    %v922 = vunpack.c.l.b16 %v434
    %v923 = vunpack.c.h.b16 %v434
    %v924 = vunpack.c.l.b16 %v435
    %v925 = vunpack.c.h.b16 %v435
    %v926 = vunpack.c.l.b16 %v436
    %v927 = vunpack.c.h.b16 %v436
    %v928 = vunpack.c.l.b16 %v437
    %v929 = vunpack.c.h.b16 %v437
    %v930 = vunpack.c.l.b16 %v438
    %v931 = vunpack.c.h.b16 %v438
    %v932 = vunpack.c.l.b16 %v439
    %v933 = vunpack.c.h.b16 %v439
    %v934 = vunpack.c.l.b16 %v440
    %v935 = vunpack.c.h.b16 %v440
    %v936 = vunpack.c.l.b16 %v441
    %v937 = vunpack.c.h.b16 %v441
    %v938 = vunpack.c.l.b16 %v442
    %v939 = vunpack.c.h.b16 %v442
    %v940 = vunpack.c.l.b16 %v443
    %v941 = vunpack.c.h.b16 %v443
    %v942 = vunpack.c.l.b16 %v444
    %v943 = vunpack.c.h.b16 %v444
    %v944 = vunpack.c.l.b16 %v445
    %v945 = vunpack.c.h.b16 %v445
    %v946 = vunpack.c.l.b16 %v446
    %v947 = vunpack.c.h.b16 %v446
    %v948 = vunpack.c.l.b16 %v447
    %v949 = vunpack.c.h.b16 %v447
    %v950 = vunpack.c.l.b16 %v448
    %v951 = vunpack.c.h.b16 %v448
    %v952 = vunpack.c.l.b16 %v449
    %v953 = vunpack.c.h.b16 %v449
    %v954 = vunpack.c.l.b16 %v450
    %v955 = vunpack.c.h.b16 %v450
    %v956 = vunpack.c.l.b16 %v451
    %v957 = vunpack.c.h.b16 %v451
    %v958 = vunpack.c.l.b16 %v452
    %v959 = vunpack.c.h.b16 %v452
    %v960 = vunpack.c.l.b16 %v453
    %v961 = vunpack.c.h.b16 %v453
    %v962 = vunpack.c.l.b16 %v454
    %v963 = vunpack.c.h.b16 %v454
    %v964 = vunpack.c.l.b16 %v455
    %v965 = vunpack.c.h.b16 %v455
    %v966 = vunpack.c.l.b16 %v456
    %v967 = vunpack.c.h.b16 %v456
    %v968 = vunpack.c.l.b16 %v457
    %v969 = vunpack.c.h.b16 %v457
    %v970 = vunpack.c.l.b16 %v458
    %v971 = vunpack.c.h.b16 %v458
    %v972 = vunpack.c.l.b16 %v459
    %v973 = vunpack.c.h.b16 %v459
    %v974 = vunpack.c.l.b16 %v460
    %v975 = vunpack.c.h.b16 %v460
    %v976 = vunpack.c.l.b16 %v461
    %v977 = vunpack.c.h.b16 %v461
    %v978 = vunpack.c.l.b16 %v462
    %v979 = vunpack.c.h.b16 %v462
    %v980 = vunpack.c.l.b16 %v463
    %v981 = vunpack.c.h.b16 %v463
    %v982 = vunpack.c.l.b16 %v464
    %v983 = vunpack.c.h.b16 %v464
    %v984 = vunpack.c.l.b16 %v465
    %v985 = vunpack.c.h.b16 %v465
    %v986 = vunpack.c.l.b16 %v466
    %v987 = vunpack.c.h.b16 %v466
    %v988 = vunpack.c.l.b16 %v467
    %v989 = vunpack.c.h.b16 %v467
    %v990 = vunpack.c.l.b16 %v468
    %v991 = vunpack.c.h.b16 %v468
    %v992 = vunpack.c.l.b16 %v469
    %v993 = vunpack.c.h.b16 %v469
    %v994 = vunpack.c.l.b16 %v470
    %v995 = vunpack.c.h.b16 %v470
    %v996 = vunpack.c.l.b16 %v471
    %v997 = vunpack.c.h.b16 %v471
    %v998 = vunpack.c.l.b16 %v472
    %v999 = vunpack.c.h.b16 %v472
    %v1000 = vunpack.c.l.b16 %v473
    %v1001 = vunpack.c.h.b16 %v473
    %v1002 = vunpack.c.l.b16 %v474
    %v1003 = vunpack.c.h.b16 %v474
    %v1004 = vunpack.c.l.b16 %v475
    %v1005 = vunpack.c.h.b16 %v475
    %v1006 = vunpack.c.l.b16 %v476
    %v1007 = vunpack.c.h.b16 %v476
    %v1008 = vunpack.c.l.b16 %v477
    %v1009 = vunpack.c.h.b16 %v477
    %v1010 = vunpack.c.l.b16 %v478
    %v1011 = vunpack.c.h.b16 %v478
    %v1012 = vunpack.c.l.b16 %v479
    %v1013 = vunpack.c.h.b16 %v479
    %v1014 = vunpack.c.l.b16 %v480
    %v1015 = vunpack.c.h.b16 %v480
    %v1016 = vunpack.c.l.b16 %v481
    %v1017 = vunpack.c.h.b16 %v481
    %v1018 = vunpack.c.l.b16 %v482
    %v1019 = vunpack.c.h.b16 %v482
    %v1020 = vunpack.c.l.b16 %v483
    %v1021 = vunpack.c.h.b16 %v483
    %v1022 = vunpack.c.l.b16 %v484
    %v1023 = vunpack.c.h.b16 %v484
    %v1024 = vunpack.c.l.b16 %v485
    %v1025 = vunpack.c.h.b16 %v485
    %v1026 = vunpack.c.l.b16 %v486
    %v1027 = vunpack.c.h.b16 %v486
    %v1028 = vunpack.c.l.b16 %v487
    %v1029 = vunpack.c.h.b16 %v487
    %v1030 = vunpack.c.l.b16 %v488
    %v1031 = vunpack.c.h.b16 %v488
    %v1032 = vunpack.c.l.b16 %v489
    %v1033 = vunpack.c.h.b16 %v489
    %v1034 = vunpack.c.l.b16 %v490
    %v1035 = vunpack.c.h.b16 %v490
    %v1036 = vunpack.c.l.b16 %v491
    %v1037 = vunpack.c.h.b16 %v491
    %v1038 = vunpack.c.l.b16 %v492
    %v1039 = vunpack.c.h.b16 %v492
    %v1040 = vunpack.c.l.b16 %v493
    %v1041 = vunpack.c.h.b16 %v493
    %v1042 = vunpack.c.l.b16 %v494
    %v1043 = vunpack.c.h.b16 %v494
    %v1044 = vunpack.c.l.b16 %v495
    %v1045 = vunpack.c.h.b16 %v495
    %v1046 = vunpack.c.l.b16 %v496
    %v1047 = vunpack.c.h.b16 %v496
    %v1048 = vunpack.c.l.b16 %v497
    %v1049 = vunpack.c.h.b16 %v497
    %v1050 = vunpack.c.l.b16 %v498
    %v1051 = vunpack.c.h.b16 %v498
    %v1052 = vunpack.c.l.b16 %v499
    %v1053 = vunpack.c.h.b16 %v499
    %v1054 = vunpack.c.l.b16 %v500
    %v1055 = vunpack.c.h.b16 %v500
    %v1056 = vunpack.c.l.b16 %v501
    %v1057 = vunpack.c.h.b16 %v501
    %v1058 = vunpack.c.l.b16 %v502
    %v1059 = vunpack.c.h.b16 %v502
    %v1060 = vunpack.c.l.b16 %v503
    %v1061 = vunpack.c.h.b16 %v503
    %v1062 = vunpack.c.l.b16 %v504
    %v1063 = vunpack.c.h.b16 %v504
    %v1064 = vunpack.c.l.b16 %v505
    %v1065 = vunpack.c.h.b16 %v505
    %v1066 = vunpack.c.l.b16 %v506
    %v1067 = vunpack.c.h.b16 %v506
    %v1068 = vunpack.c.l.b16 %v507
    %v1069 = vunpack.c.h.b16 %v507
    %v1070 = vunpack.c.l.b16 %v508
    %v1071 = vunpack.c.h.b16 %v508
    %v1072 = vunpack.c.l.b16 %v509
    %v1073 = vunpack.c.h.b16 %v509
    %v1074 = vunpack.c.l.b16 %v510
    %v1075 = vunpack.c.h.b16 %v510
    %v1076 = vunpack.c.l.b16 %v511
    %v1077 = vunpack.c.h.b16 %v511
    %v1078 = vunpack.c.l.b16 %v512
    %v1079 = vunpack.c.h.b16 %v512
    %v1080 = vunpack.c.l.b16 %v513
    %v1081 = vunpack.c.h.b16 %v513
    %v1082 = vunpack.c.l.b16 %v514
    %v1083 = vunpack.c.h.b16 %v514
    %v1084 = vunpack.c.l.b16 %v515
    %v1085 = vunpack.c.h.b16 %v515
    %v1086 = vunpack.c.l.b16 %v516
    %v1087 = vunpack.c.h.b16 %v516
    %v1088 = vunpack.c.l.b16 %v517
    %v1089 = vunpack.c.h.b16 %v517
    %v1090 = vunpack.c.l.b16 %v518
    %v1091 = vunpack.c.h.b16 %v518
    %v1092 = vunpack.c.l.b16 %v519
    %v1093 = vunpack.c.h.b16 %v519
    %v1094 = vunpack.c.l.b16 %v520
    %v1095 = vunpack.c.h.b16 %v520
    %v1096 = vunpack.c.l.b16 %v521
    %v1097 = vunpack.c.h.b16 %v521
    %v1098 = vunpack.c.l.b16 %v522
    %v1099 = vunpack.c.h.b16 %v522
    %v1100 = vunpack.c.l.b16 %v523
    %v1101 = vunpack.c.h.b16 %v523
    %v1102 = vunpack.c.l.b16 %v524
    %v1103 = vunpack.c.h.b16 %v524
    %v1104 = vunpack.c.l.b16 %v525
    %v1105 = vunpack.c.h.b16 %v525
    %v1106 = vunpack.c.l.b16 %v526
    %v1107 = vunpack.c.h.b16 %v526
    %v1108 = vunpack.c.l.b16 %v527
    %v1109 = vunpack.c.h.b16 %v527
    %v1110 = vunpack.c.l.b16 %v528
    %v1111 = vunpack.c.h.b16 %v528
    %v1112 = vunpack.c.l.b16 %v529
    %v1113 = vunpack.c.h.b16 %v529
    %v1114 = vunpack.c.l.b16 %v530
    %v1115 = vunpack.c.h.b16 %v530
    %v1116 = vunpack.c.l.b16 %v531
    %v1117 = vunpack.c.h.b16 %v531
    %v1118 = vunpack.c.l.b16 %v532
    %v1119 = vunpack.c.h.b16 %v532
    %v1120 = vunpack.c.l.b16 %v533
    %v1121 = vunpack.c.h.b16 %v533
    %v1122 = vunpack.c.l.b16 %v534
    %v1123 = vunpack.c.h.b16 %v534
    %v1124 = vunpack.c.l.b16 %v535
    %v1125 = vunpack.c.h.b16 %v535
    %v1126 = vunpack.c.l.b16 %v536
    %v1127 = vunpack.c.h.b16 %v536
    %v1128 = vunpack.c.l.b16 %v537
    %v1129 = vunpack.c.h.b16 %v537
    %v1130 = vunpack.c.l.b16 %v538
    %v1131 = vunpack.c.h.b16 %v538
    %v1132 = vunpack.c.l.b16 %v539
    %v1133 = vunpack.c.h.b16 %v539
    %v1134 = vunpack.c.l.b16 %v540
    %v1135 = vunpack.c.h.b16 %v540
    %v1136 = vunpack.c.l.b16 %v541
    %v1137 = vunpack.c.h.b16 %v541
    %v1138 = vunpack.c.l.b16 %v542
    %v1139 = vunpack.c.h.b16 %v542
    %v1140 = vunpack.c.l.b16 %v543
    %v1141 = vunpack.c.h.b16 %v543
    %v1142 = vpack.c.b16 %v762, %v758
    %v1143 = vpack.c.b16 %v763, %v759
    %v1144 = vpack.c.b16 %v764, %v760
    %v1145 = vpack.c.b16 %v765, %v761
    %v1146 = vpack.c.b16 %v770, %v766
    %v1147 = vpack.c.b16 %v771, %v767
    %v1148 = vpack.c.b16 %v772, %v768
    %v1149 = vpack.c.b16 %v773, %v769
    %v1150 = vpack.c.b16 %v778, %v774
    %v1151 = vpack.c.b16 %v779, %v775
    %v1152 = vpack.c.b16 %v780, %v776
    %v1153 = vpack.c.b16 %v781, %v777
    %v1154 = vpack.c.b16 %v786, %v782
    %v1155 = vpack.c.b16 %v787, %v783
    %v1156 = vpack.c.b16 %v788, %v784
    %v1157 = vpack.c.b16 %v789, %v785
    %v1158 = vpack.c.b16 %v794, %v790
    %v1159 = vpack.c.b16 %v795, %v791
    %v1160 = vpack.c.b16 %v796, %v792
    %v1161 = vpack.c.b16 %v797, %v793
    %v1162 = vpack.c.b16 %v802, %v798
    %v1163 = vpack.c.b16 %v803, %v799
    %v1164 = vpack.c.b16 %v804, %v800
    %v1165 = vpack.c.b16 %v805, %v801
    %v1166 = vpack.c.b16 %v810, %v806
    %v1167 = vpack.c.b16 %v811, %v807
    %v1168 = vpack.c.b16 %v812, %v808
    %v1169 = vpack.c.b16 %v813, %v809
    %v1170 = vpack.c.b16 %v818, %v814
    %v1171 = vpack.c.b16 %v819, %v815
    %v1172 = vpack.c.b16 %v820, %v816
    %v1173 = vpack.c.b16 %v821, %v817
    %v1174 = vpack.c.b16 %v826, %v822
    %v1175 = vpack.c.b16 %v827, %v823
    %v1176 = vpack.c.b16 %v828, %v824
    %v1177 = vpack.c.b16 %v829, %v825
    %v1178 = vpack.c.b16 %v834, %v830
    %v1179 = vpack.c.b16 %v835, %v831
    %v1180 = vpack.c.b16 %v836, %v832
    %v1181 = vpack.c.b16 %v837, %v833
    %v1182 = vpack.c.b16 %v842, %v838
    %v1183 = vpack.c.b16 %v843, %v839
    %v1184 = vpack.c.b16 %v844, %v840
    %v1185 = vpack.c.b16 %v845, %v841
    %v1186 = vpack.c.b16 %v850, %v846
    %v1187 = vpack.c.b16 %v851, %v847
    %v1188 = vpack.c.b16 %v852, %v848
    %v1189 = vpack.c.b16 %v853, %v849
    %v1190 = vpack.c.b16 %v858, %v854
    %v1191 = vpack.c.b16 %v859, %v855
    %v1192 = vpack.c.b16 %v860, %v856
    %v1193 = vpack.c.b16 %v861, %v857
    %v1194 = vpack.c.b16 %v866, %v862
    %v1195 = vpack.c.b16 %v867, %v863
    %v1196 = vpack.c.b16 %v868, %v864
    %v1197 = vpack.c.b16 %v869, %v865
    %v1198 = vpack.c.b16 %v874, %v870
    %v1199 = vpack.c.b16 %v875, %v871
    %v1200 = vpack.c.b16 %v876, %v872
    %v1201 = vpack.c.b16 %v877, %v873
    %v1202 = vpack.c.b16 %v882, %v878
    %v1203 = vpack.c.b16 %v883, %v879
    %v1204 = vpack.c.b16 %v884, %v880
    %v1205 = vpack.c.b16 %v885, %v881
    %v1206 = vpack.c.b16 %v890, %v886
    %v1207 = vpack.c.b16 %v891, %v887
    %v1208 = vpack.c.b16 %v892, %v888
    %v1209 = vpack.c.b16 %v893, %v889
    %v1210 = vpack.c.b16 %v898, %v894
    %v1211 = vpack.c.b16 %v899, %v895
    %v1212 = vpack.c.b16 %v900, %v896
    %v1213 = vpack.c.b16 %v901, %v897
    %v1214 = vpack.c.b16 %v906, %v902
    %v1215 = vpack.c.b16 %v907, %v903
    %v1216 = vpack.c.b16 %v908, %v904
    %v1217 = vpack.c.b16 %v909, %v905
    %v1218 = vpack.c.b16 %v914, %v910
    %v1219 = vpack.c.b16 %v915, %v911
    %v1220 = vpack.c.b16 %v916, %v912
    %v1221 = vpack.c.b16 %v917, %v913
    %v1222 = vpack.c.b16 %v922, %v918
    %v1223 = vpack.c.b16 %v923, %v919
    %v1224 = vpack.c.b16 %v924, %v920
    %v1225 = vpack.c.b16 %v925, %v921
    %v1226 = vpack.c.b16 %v930, %v926
    %v1227 = vpack.c.b16 %v931, %v927
    %v1228 = vpack.c.b16 %v932, %v928
    %v1229 = vpack.c.b16 %v933, %v929
    %v1230 = vpack.c.b16 %v938, %v934
    %v1231 = vpack.c.b16 %v939, %v935
    %v1232 = vpack.c.b16 %v940, %v936
    %v1233 = vpack.c.b16 %v941, %v937
    %v1234 = vpack.c.b16 %v946, %v942
    %v1235 = vpack.c.b16 %v947, %v943
    %v1236 = vpack.c.b16 %v948, %v944
    %v1237 = vpack.c.b16 %v949, %v945
    %v1238 = vpack.c.b16 %v954, %v950
    %v1239 = vpack.c.b16 %v955, %v951
    %v1240 = vpack.c.b16 %v956, %v952
    %v1241 = vpack.c.b16 %v957, %v953
    %v1242 = vpack.c.b16 %v962, %v958
    %v1243 = vpack.c.b16 %v963, %v959
    %v1244 = vpack.c.b16 %v964, %v960
    %v1245 = vpack.c.b16 %v965, %v961
    %v1246 = vpack.c.b16 %v970, %v966
    %v1247 = vpack.c.b16 %v971, %v967
    %v1248 = vpack.c.b16 %v972, %v968
    %v1249 = vpack.c.b16 %v973, %v969
    %v1250 = vpack.c.b16 %v978, %v974
    %v1251 = vpack.c.b16 %v979, %v975
    %v1252 = vpack.c.b16 %v980, %v976
    %v1253 = vpack.c.b16 %v981, %v977
    %v1254 = vpack.c.b16 %v986, %v982
    %v1255 = vpack.c.b16 %v987, %v983
    %v1256 = vpack.c.b16 %v988, %v984
    %v1257 = vpack.c.b16 %v989, %v985
    %v1258 = vpack.c.b16 %v994, %v990
    %v1259 = vpack.c.b16 %v995, %v991
    %v1260 = vpack.c.b16 %v996, %v992
    %v1261 = vpack.c.b16 %v997, %v993
    %v1262 = vpack.c.b16 %v1002, %v998
    %v1263 = vpack.c.b16 %v1003, %v999
    %v1264 = vpack.c.b16 %v1004, %v1000
    %v1265 = vpack.c.b16 %v1005, %v1001
    %v1266 = vpack.c.b16 %v1010, %v1006
    %v1267 = vpack.c.b16 %v1011, %v1007
    %v1268 = vpack.c.b16 %v1012, %v1008
    %v1269 = vpack.c.b16 %v1013, %v1009
    %v1270 = vpack.c.b16 %v1018, %v1014
    %v1271 = vpack.c.b16 %v1019, %v1015
    %v1272 = vpack.c.b16 %v1020, %v1016
    %v1273 = vpack.c.b16 %v1021, %v1017
    %v1274 = vpack.c.b16 %v1026, %v1022
    %v1275 = vpack.c.b16 %v1027, %v1023
    %v1276 = vpack.c.b16 %v1028, %v1024
    %v1277 = vpack.c.b16 %v1029, %v1025
    %v1278 = vpack.c.b16 %v1034, %v1030
    %v1279 = vpack.c.b16 %v1035, %v1031
    %v1280 = vpack.c.b16 %v1036, %v1032
    %v1281 = vpack.c.b16 %v1037, %v1033
    %v1282 = vpack.c.b16 %v1042, %v1038
    %v1283 = vpack.c.b16 %v1043, %v1039
    %v1284 = vpack.c.b16 %v1044, %v1040
    %v1285 = vpack.c.b16 %v1045, %v1041
    %v1286 = vpack.c.b16 %v1050, %v1046
    %v1287 = vpack.c.b16 %v1051, %v1047
    %v1288 = vpack.c.b16 %v1052, %v1048
    %v1289 = vpack.c.b16 %v1053, %v1049
    %v1290 = vpack.c.b16 %v1058, %v1054
    %v1291 = vpack.c.b16 %v1059, %v1055
    %v1292 = vpack.c.b16 %v1060, %v1056
    %v1293 = vpack.c.b16 %v1061, %v1057
    %v1294 = vpack.c.b16 %v1066, %v1062
    %v1295 = vpack.c.b16 %v1067, %v1063
    %v1296 = vpack.c.b16 %v1068, %v1064
    %v1297 = vpack.c.b16 %v1069, %v1065
    %v1298 = vpack.c.b16 %v1074, %v1070
    %v1299 = vpack.c.b16 %v1075, %v1071
    %v1300 = vpack.c.b16 %v1076, %v1072
    %v1301 = vpack.c.b16 %v1077, %v1073
    %v1302 = vpack.c.b16 %v1082, %v1078
    %v1303 = vpack.c.b16 %v1083, %v1079
    %v1304 = vpack.c.b16 %v1084, %v1080
    %v1305 = vpack.c.b16 %v1085, %v1081
    %v1306 = vpack.c.b16 %v1090, %v1086
    %v1307 = vpack.c.b16 %v1091, %v1087
    %v1308 = vpack.c.b16 %v1092, %v1088
    %v1309 = vpack.c.b16 %v1093, %v1089
    %v1310 = vpack.c.b16 %v1098, %v1094
    %v1311 = vpack.c.b16 %v1099, %v1095
    %v1312 = vpack.c.b16 %v1100, %v1096
    %v1313 = vpack.c.b16 %v1101, %v1097
    %v1314 = vpack.c.b16 %v1106, %v1102
    %v1315 = vpack.c.b16 %v1107, %v1103
    %v1316 = vpack.c.b16 %v1108, %v1104
    %v1317 = vpack.c.b16 %v1109, %v1105
    %v1318 = vpack.c.b16 %v1114, %v1110
    %v1319 = vpack.c.b16 %v1115, %v1111
    %v1320 = vpack.c.b16 %v1116, %v1112
    %v1321 = vpack.c.b16 %v1117, %v1113
    %v1322 = vpack.c.b16 %v1122, %v1118
    %v1323 = vpack.c.b16 %v1123, %v1119
    %v1324 = vpack.c.b16 %v1124, %v1120
    %v1325 = vpack.c.b16 %v1125, %v1121
    %v1326 = vpack.c.b16 %v1130, %v1126
    %v1327 = vpack.c.b16 %v1131, %v1127
    %v1328 = vpack.c.b16 %v1132, %v1128
    %v1329 = vpack.c.b16 %v1133, %v1129
    %v1330 = vpack.c.b16 %v1138, %v1134
    %v1331 = vpack.c.b16 %v1139, %v1135
    %v1332 = vpack.c.b16 %v1140, %v1136
    %v1333 = vpack.c.b16 %v1141, %v1137
    %1526 = vmatprep.subr.bf16.mxu0 %v1143
    %1527 = vmatpush1.bf16.msra.mxu0 %v1142
    %1528 = vmatprep.subr.bf16.mxu0 %v1147
    %1529 = vmatpush1.bf16.msra.mxu0 %v1146
    %1530 = vmatprep.subr.bf16.mxu0 %v1151
    %1531 = vmatpush1.bf16.msra.mxu0 %v1150
    %1532 = vmatprep.subr.bf16.mxu0 %v1155
    %1533 = vmatpush1.bf16.msra.mxu0 %v1154
    %1534 = vmatprep.subr.bf16.mxu0 %v1159
    %1535 = vmatpush1.bf16.msra.mxu0 %v1158
    %1536 = vmatprep.subr.bf16.mxu0 %v1163
    %1537 = vmatpush1.bf16.msra.mxu0 %v1162
    %1538 = vmatprep.subr.bf16.mxu0 %v1167
    %1539 = vmatpush1.bf16.msra.mxu0 %v1166
    %1540 = vmatprep.subr.bf16.mxu0 %v1171
    %1541 = vmatpush1.bf16.msra.mxu0 %v1170
    %1542 = vmatprep.subr.bf16.mxu0 %v1175
    %1543 = vmatpush1.bf16.msra.mxu0 %v1174
    %1544 = vmatprep.subr.bf16.mxu0 %v1179
    %1545 = vmatpush1.bf16.msra.mxu0 %v1178
    %1546 = vmatprep.subr.bf16.mxu0 %v1183
    %1547 = vmatpush1.bf16.msra.mxu0 %v1182
    %1548 = vmatprep.subr.bf16.mxu0 %v1187
    %1549 = vmatpush1.bf16.msra.mxu0 %v1186
    %1550 = vmatprep.subr.bf16.mxu0 %v1191
    %1551 = vmatpush1.bf16.msra.mxu0 %v1190
    %1552 = vmatprep.subr.bf16.mxu0 %v1195
    %1553 = vmatpush1.bf16.msra.mxu0 %v1194
    %1554 = vmatprep.subr.bf16.mxu0 %v1199
    %1555 = vmatpush1.bf16.msra.mxu0 %v1198
    %1556 = vmatprep.subr.bf16.mxu0 %v1203
    %1557 = vmatpush1.bf16.msra.mxu0 %v1202
    %1558 = vmatprep.mubr.bf16.mxu0 %v347
    %1559 = vmatmul.mubr.bf16.gmra.mrb[0].mxu0 %v346
    %v1560 = vpop.f32.mrb[0].mxu0
    %v1561 = vadd.f32 %v549, %v1560
    %v1562 = vpop.f32.mrb[0].mxu0
    %v1563 = vadd.f32 %v553, %v1562
    %v1564 = vpop.f32.mrb[0].mxu0
    %v1565 = vpop.f32.mrb[0].mxu0
    %1566 = vdwg.mxu0
    %1567 = vmatprep.subr.bf16.mxu0 %v1207
    %1568 = vmatpush1.bf16.msra.mxu0 %v1206
    %1569 = vmatprep.subr.bf16.mxu0 %v1211
    %1570 = vmatpush1.bf16.msra.mxu0 %v1210
    %1571 = vmatprep.subr.bf16.mxu0 %v1215
    %1572 = vmatpush1.bf16.msra.mxu0 %v1214
    %1573 = vmatprep.subr.bf16.mxu0 %v1219
    %1574 = vmatpush1.bf16.msra.mxu0 %v1218
    %1575 = vmatprep.subr.bf16.mxu0 %v1223
    %1576 = vmatpush1.bf16.msra.mxu0 %v1222
    %1577 = vmatprep.subr.bf16.mxu0 %v1227
    %1578 = vmatpush1.bf16.msra.mxu0 %v1226
    %1579 = vmatprep.subr.bf16.mxu0 %v1231
    %1580 = vmatpush1.bf16.msra.mxu0 %v1230
    %1581 = vmatprep.subr.bf16.mxu0 %v1235
    %1582 = vmatpush1.bf16.msra.mxu0 %v1234
    %1583 = vmatprep.subr.bf16.mxu0 %v1239
    %1584 = vmatpush1.bf16.msra.mxu0 %v1238
    %1585 = vmatprep.subr.bf16.mxu0 %v1243
    %1586 = vmatpush1.bf16.msra.mxu0 %v1242
    %1587 = vmatprep.subr.bf16.mxu0 %v1247
    %1588 = vmatpush1.bf16.msra.mxu0 %v1246
    %1589 = vmatprep.subr.bf16.mxu0 %v1251
    %1590 = vmatpush1.bf16.msra.mxu0 %v1250
    %1591 = vmatprep.subr.bf16.mxu0 %v1255
    %1592 = vmatpush1.bf16.msra.mxu0 %v1254
    %1593 = vmatprep.subr.bf16.mxu0 %v1259
    %1594 = vmatpush1.bf16.msra.mxu0 %v1258
    %1595 = vmatprep.subr.bf16.mxu0 %v1263
    %1596 = vmatpush1.bf16.msra.mxu0 %v1262
    %1597 = vmatprep.subr.bf16.mxu0 %v1267
    %1598 = vmatpush1.bf16.msra.mxu0 %v1266
    %1599 = vmatprep.mubr.bf16.mxu0 %v349
    %1600 = vmatmul.mubr.bf16.gmra.mrb[0].mxu0 %v348
    %v1601 = vpop.f32.mrb[0].mxu0
    %v1602 = vadd.f32 %v1561, %v1601
    %v1603 = vpop.f32.mrb[0].mxu0
    %v1604 = vadd.f32 %v1563, %v1603
    %v1605 = vpop.f32.mrb[0].mxu0
    %v1606 = vpop.f32.mrb[0].mxu0
    %1607 = vdwg.mxu0
    %1608 = vmatprep.subr.bf16.mxu0 %v1271
    %1609 = vmatpush1.bf16.msra.mxu0 %v1270
    %1610 = vmatprep.subr.bf16.mxu0 %v1275
    %1611 = vmatpush1.bf16.msra.mxu0 %v1274
    %1612 = vmatprep.subr.bf16.mxu0 %v1279
    %1613 = vmatpush1.bf16.msra.mxu0 %v1278
    %1614 = vmatprep.subr.bf16.mxu0 %v1283
    %1615 = vmatpush1.bf16.msra.mxu0 %v1282
    %1616 = vmatprep.subr.bf16.mxu0 %v1287
    %1617 = vmatpush1.bf16.msra.mxu0 %v1286
    %1618 = vmatprep.subr.bf16.mxu0 %v1291
    %1619 = vmatpush1.bf16.msra.mxu0 %v1290
    %1620 = vmatprep.subr.bf16.mxu0 %v1295
    %1621 = vmatpush1.bf16.msra.mxu0 %v1294
    %1622 = vmatprep.subr.bf16.mxu0 %v1299
    %1623 = vmatpush1.bf16.msra.mxu0 %v1298
    %1624 = vmatprep.subr.bf16.mxu0 %v1303
    %1625 = vmatpush1.bf16.msra.mxu0 %v1302
    %1626 = vmatprep.subr.bf16.mxu0 %v1307
    %1627 = vmatpush1.bf16.msra.mxu0 %v1306
    %1628 = vmatprep.subr.bf16.mxu0 %v1311
    %1629 = vmatpush1.bf16.msra.mxu0 %v1310
    %1630 = vmatprep.subr.bf16.mxu0 %v1315
    %1631 = vmatpush1.bf16.msra.mxu0 %v1314
    %1632 = vmatprep.subr.bf16.mxu0 %v1319
    %1633 = vmatpush1.bf16.msra.mxu0 %v1318
    %1634 = vmatprep.subr.bf16.mxu0 %v1323
    %1635 = vmatpush1.bf16.msra.mxu0 %v1322
    %1636 = vmatprep.subr.bf16.mxu0 %v1327
    %1637 = vmatpush1.bf16.msra.mxu0 %v1326
    %1638 = vmatprep.subr.bf16.mxu0 %v1331
    %1639 = vmatpush1.bf16.msra.mxu0 %v1330
    %1640 = vmatprep.mubr.bf16.mxu0 %v351
    %1641 = vmatmul.mubr.bf16.gmra.mrb[0].mxu0 %v350
    %v1642 = vpop.f32.mrb[0].mxu0
    %v1643 = vadd.f32 %v1602, %v1642
    %v1644 = vpop.f32.mrb[0].mxu0
    %v1645 = vadd.f32 %v1604, %v1644
    %v1646 = vpop.f32.mrb[0].mxu0
    %v1647 = vpop.f32.mrb[0].mxu0
    %1648 = vdwg.mxu0
    %1649 = vmatprep.subr.bf16.mxu0 %v1145
    %1650 = vmatpush1.bf16.msra.mxu0 %v1144
    %1651 = vmatprep.subr.bf16.mxu0 %v1149
    %1652 = vmatpush1.bf16.msra.mxu0 %v1148
    %1653 = vmatprep.subr.bf16.mxu0 %v1153
    %1654 = vmatpush1.bf16.msra.mxu0 %v1152
    %1655 = vmatprep.subr.bf16.mxu0 %v1157
    %1656 = vmatpush1.bf16.msra.mxu0 %v1156
    %1657 = vmatprep.subr.bf16.mxu0 %v1161
    %1658 = vmatpush1.bf16.msra.mxu0 %v1160
    %1659 = vmatprep.subr.bf16.mxu0 %v1165
    %1660 = vmatpush1.bf16.msra.mxu0 %v1164
    %1661 = vmatprep.subr.bf16.mxu0 %v1169
    %1662 = vmatpush1.bf16.msra.mxu0 %v1168
    %1663 = vmatprep.subr.bf16.mxu0 %v1173
    %1664 = vmatpush1.bf16.msra.mxu0 %v1172
    %1665 = vmatprep.subr.bf16.mxu0 %v1177
    %1666 = vmatpush1.bf16.msra.mxu0 %v1176
    %1667 = vmatprep.subr.bf16.mxu0 %v1181
    %1668 = vmatpush1.bf16.msra.mxu0 %v1180
    %1669 = vmatprep.subr.bf16.mxu0 %v1185
    %1670 = vmatpush1.bf16.msra.mxu0 %v1184
    %1671 = vmatprep.subr.bf16.mxu0 %v1189
    %1672 = vmatpush1.bf16.msra.mxu0 %v1188
    %1673 = vmatprep.subr.bf16.mxu0 %v1193
    %1674 = vmatpush1.bf16.msra.mxu0 %v1192
    %1675 = vmatprep.subr.bf16.mxu0 %v1197
    %1676 = vmatpush1.bf16.msra.mxu0 %v1196
    %1677 = vmatprep.subr.bf16.mxu0 %v1201
    %1678 = vmatpush1.bf16.msra.mxu0 %v1200
    %1679 = vmatprep.subr.bf16.mxu0 %v1205
    %1680 = vmatpush1.bf16.msra.mxu0 %v1204
    %1681 = vmatprep.mubr.bf16.mxu0 %v347
    %1682 = vmatmul.mubr.bf16.gmra.mrb[0].mxu0 %v346
    %v1683 = vpop.f32.mrb[0].mxu0
    %v1684 = vadd.f32 %v557, %v1683
    %v1685 = vpop.f32.mrb[0].mxu0
    %v1686 = vadd.f32 %v561, %v1685
    %v1687 = vpop.f32.mrb[0].mxu0
    %v1688 = vpop.f32.mrb[0].mxu0
    %1689 = vdwg.mxu0
    %1690 = vmatprep.subr.bf16.mxu0 %v1209
    %1691 = vmatpush1.bf16.msra.mxu0 %v1208
    %1692 = vmatprep.subr.bf16.mxu0 %v1213
    %1693 = vmatpush1.bf16.msra.mxu0 %v1212
    %1694 = vmatprep.subr.bf16.mxu0 %v1217
    %1695 = vmatpush1.bf16.msra.mxu0 %v1216
    %1696 = vmatprep.subr.bf16.mxu0 %v1221
    %1697 = vmatpush1.bf16.msra.mxu0 %v1220
    %1698 = vmatprep.subr.bf16.mxu0 %v1225
    %1699 = vmatpush1.bf16.msra.mxu0 %v1224
    %1700 = vmatprep.subr.bf16.mxu0 %v1229
    %1701 = vmatpush1.bf16.msra.mxu0 %v1228
    %1702 = vmatprep.subr.bf16.mxu0 %v1233
    %1703 = vmatpush1.bf16.msra.mxu0 %v1232
    %1704 = vmatprep.subr.bf16.mxu0 %v1237
    %1705 = vmatpush1.bf16.msra.mxu0 %v1236
    %1706 = vmatprep.subr.bf16.mxu0 %v1241
    %1707 = vmatpush1.bf16.msra.mxu0 %v1240
    %1708 = vmatprep.subr.bf16.mxu0 %v1245
    %1709 = vmatpush1.bf16.msra.mxu0 %v1244
    %1710 = vmatprep.subr.bf16.mxu0 %v1249
    %1711 = vmatpush1.bf16.msra.mxu0 %v1248
    %1712 = vmatprep.subr.bf16.mxu0 %v1253
    %1713 = vmatpush1.bf16.msra.mxu0 %v1252
    %1714 = vmatprep.subr.bf16.mxu0 %v1257
    %1715 = vmatpush1.bf16.msra.mxu0 %v1256
    %1716 = vmatprep.subr.bf16.mxu0 %v1261
    %1717 = vmatpush1.bf16.msra.mxu0 %v1260
    %1718 = vmatprep.subr.bf16.mxu0 %v1265
    %1719 = vmatpush1.bf16.msra.mxu0 %v1264
    %1720 = vmatprep.subr.bf16.mxu0 %v1269
    %1721 = vmatpush1.bf16.msra.mxu0 %v1268
    %1722 = vmatprep.mubr.bf16.mxu0 %v349
    %1723 = vmatmul.mubr.bf16.gmra.mrb[0].mxu0 %v348
    %v1724 = vpop.f32.mrb[0].mxu0
    %v1725 = vadd.f32 %v1684, %v1724
    %v1726 = vpop.f32.mrb[0].mxu0
    %v1727 = vadd.f32 %v1686, %v1726
    %v1728 = vpop.f32.mrb[0].mxu0
    %v1729 = vpop.f32.mrb[0].mxu0
    %1730 = vdwg.mxu0
    %1731 = vmatprep.subr.bf16.mxu0 %v1273
    %1732 = vmatpush1.bf16.msra.mxu0 %v1272
    %1733 = vmatprep.subr.bf16.mxu0 %v1277
    %1734 = vmatpush1.bf16.msra.mxu0 %v1276
    %1735 = vmatprep.subr.bf16.mxu0 %v1281
    %1736 = vmatpush1.bf16.msra.mxu0 %v1280
    %1737 = vmatprep.subr.bf16.mxu0 %v1285
    %1738 = vmatpush1.bf16.msra.mxu0 %v1284
    %1739 = vmatprep.subr.bf16.mxu0 %v1289
    %1740 = vmatpush1.bf16.msra.mxu0 %v1288
    %1741 = vmatprep.subr.bf16.mxu0 %v1293
    %1742 = vmatpush1.bf16.msra.mxu0 %v1292
    %1743 = vmatprep.subr.bf16.mxu0 %v1297
    %1744 = vmatpush1.bf16.msra.mxu0 %v1296
    %1745 = vmatprep.subr.bf16.mxu0 %v1301
    %1746 = vmatpush1.bf16.msra.mxu0 %v1300
    %1747 = vmatprep.subr.bf16.mxu0 %v1305
    %1748 = vmatpush1.bf16.msra.mxu0 %v1304
    %1749 = vmatprep.subr.bf16.mxu0 %v1309
    %1750 = vmatpush1.bf16.msra.mxu0 %v1308
    %1751 = vmatprep.subr.bf16.mxu0 %v1313
    %1752 = vmatpush1.bf16.msra.mxu0 %v1312
    %1753 = vmatprep.subr.bf16.mxu0 %v1317
    %1754 = vmatpush1.bf16.msra.mxu0 %v1316
    %1755 = vmatprep.subr.bf16.mxu0 %v1321
    %1756 = vmatpush1.bf16.msra.mxu0 %v1320
    %1757 = vmatprep.subr.bf16.mxu0 %v1325
    %1758 = vmatpush1.bf16.msra.mxu0 %v1324
    %1759 = vmatprep.subr.bf16.mxu0 %v1329
    %1760 = vmatpush1.bf16.msra.mxu0 %v1328
    %1761 = vmatprep.subr.bf16.mxu0 %v1333
    %1762 = vmatpush1.bf16.msra.mxu0 %v1332
    %1763 = vmatprep.mubr.bf16.mxu0 %v351
    %1764 = vmatmul.mubr.bf16.gmra.mrb[0].mxu0 %v350
    %v1765 = vpop.f32.mrb[0].mxu0
    %v1766 = vadd.f32 %v1725, %v1765
    %v1767 = vpop.f32.mrb[0].mxu0
    %v1768 = vadd.f32 %v1727, %v1767
    %v1769 = vpop.f32.mrb[0].mxu0
    %v1770 = vpop.f32.mrb[0].mxu0
    %1771 = vdwg.mxu0
    %vm1772 = vcmp.ge.f32.partialorder %v1643, 0.0
    %vm1773 = vcmp.ge.f32.partialorder %v1645, 0.0
    %vm1774 = vcmp.ge.f32.partialorder %v1766, 0.0
    %vm1775 = vcmp.ge.f32.partialorder %v1768, 0.0
    %v1776 = vstv %s53
    %v1777 = vmul.f32 %v1776, %v1643
    %v1778 = vmul.f32 %v1776, %v1645
    %v1779 = vmul.f32 %v1776, %v1766
    %v1780 = vmul.f32 %v1776, %v1768
    %v1781 = vsel %vm1772, %v1643, %v1777
    %v1782 = vsel %vm1773, %v1645, %v1778
    %v1783 = vsel %vm1774, %v1766, %v1779
    %v1784 = vsel %vm1775, %v1768, %v1780
    %v1789 = vcombine.low %v1781, %v1782
    %v1790 = vcombine.low %v1783, %v1784
    %1793 = vst [vmem:[#allocation7] sm:$0xff] %v1789
    %1794 = vst [vmem:[#allocation7 + $0x8] sm:$0xff] %v1790
    // Predicated region
    $region34: #{psan_forward.3} parent=1 // pred_check
      _
    $region35: #{psan_forward.3} parent=1 // pred_check_branch
      %1796 = sbr.rel (0) target = $region37
    $region36: #{psan_forward.3} parent=1 // pred_region
      %s1798 = ssub.s32 256, 256
      %1799 = vsyncadd [#allocation4], %s1798
      %s1801 = sshll.u32 [#allocation7], 4
      %s1802 = int_to_ptr.vmem [resolvable:$true] %s1801
      %1804 = dma.vmem_to_hbm [thread:$0]  %s1802, 256, %s6, [#allocation4]
    $region37: #{psan_forward.3} parent=1 // pred_fallthru
      _
    // Predicated region
    $region38: #{psan_forward.3} parent=1 // pred_check
      _
    $region39: #{psan_forward.3} parent=1 // pred_check_branch
      %1806 = sbr.rel (0) target = $region41
    $region40: #{psan_forward.3} parent=1 // pred_region
      %1807 = dma.done [#allocation4], 256
    $region41: #{psan_forward.3} parent=1 // pred_fallthru
      _
    %1808 = vsyncpa [#allocation3], 1
    %1809 = vsyncpa [#allocation4], 1
    %1810 = vsyncpa [#allocation5], 1

// kernel: psan_forward.2
$region0: #{psan_forward.2}
  #allocation0 [shape = 'u32[]', space=smem, size = 0x4, offset = 0x4, fixed_abs, tag = 'smem constant byte address 0x4 - core index']
  #allocation1 [shape = 'u32[144,128]{1,0:T(1,128)}', space=vmem, size = 0x12000, scoped, tag = 'internal scratch']
  %s0 = inlined_call_operand.vmem [shape: bf16[4,64,16], index: 0, kind: input, shape index: {}]
  %s1 = inlined_call_operand.vmem [shape: bf16[16,16], index: 1, kind: input, shape index: {}]
  %s2 = inlined_call_operand.vmem [shape: bf16[16,1], index: 2, kind: input, shape index: {}]
  %s3 = inlined_call_operand.vmem [shape: bf16[16,8], index: 3, kind: input, shape index: {}]
  %s4 = inlined_call_operand.vmem [shape: bf16[8,2], index: 4, kind: input, shape index: {}]
  %s5 = inlined_call_operand.vmem [shape: bf16[2,16], index: 5, kind: input, shape index: {}]
  %s6 = inlined_call_operand.vmem [shape: bf16[16,8], index: 6, kind: input, shape index: {}]
  %s7 = inlined_call_operand.vmem [shape: bf16[16,8], index: 7, kind: input, shape index: {}]
  %s8 = inlined_call_operand.vmem [shape: bf16[16,16], index: 8, kind: input, shape index: {}]
  %s9 = inlined_call_operand.vmem [shape: f32[3,16], index: 9, kind: input, shape index: {}]
  %s10 = inlined_call_operand.vmem [shape: f32[3,2], index: 10, kind: input, shape index: {}]
  %s11 = inlined_call_operand.vmem [shape: f32[2], index: 11, kind: input, shape index: {}]
  %s12 = inlined_call_operand.vmem [shape: bf16[4,1,16], index: 12, kind: output, shape index: {}]
  %s13 = sld [smem:[#allocation0]]
  $region85: #{psan_forward.2} parent=0
    _
  %s15 = ssub.s32 1, %s13
  %s16 = scalar_select 0, %s15, %s13
  $region1: #{psan_forward.2} parent=0
    #allocation2 [shape = 'u8[512]{0}', space=smem, size = 0x200, scoped, tag = 'input window, operand 11, single buffered']
    #allocation3 [shape = 's32[2]{0}', space=sflag, size = 0x8, scoped, tag = 'scoped memory for psan_forward.2']
    %17 = vsyncpa [#allocation3], 0
    loop: start=0, step=1, limit=4
    $region2: #{psan_forward.2} parent=1 // loop_pre_header
      _
    $region3: #{psan_forward.2} parent=1 // loop_header
      %s19 = sphi 0, %s23
      %p20 = scmp.ge.s32.totalorder %s19, 4
      %s29 = sphi 0, %s31
      %s32 = sphi 0, %s29
      %s33 = sphi 0, %s32
      %s49 = sphi 0, %s33
      %s53 = sphi 0, %s53
      %s55 = sphi 0, %s53
      %s56 = sphi 0, %s55
      %s70 = sphi 0, %s56
      %s74 = sphi 0, %s74
      %s76 = sphi 0, %s74
      %s77 = sphi 0, %s76
      %s91 = sphi 0, %s77
      %s95 = sphi 0, %s95
      %s97 = sphi 0, %s95
      %s98 = sphi 0, %s97
      %s112 = sphi 0, %s98
      %s116 = sphi 0, %s116
      %s118 = sphi 0, %s116
      %s119 = sphi 0, %s118
      %s133 = sphi 0, %s119
      %s137 = sphi 0, %s137
      %s139 = sphi 0, %s137
      %s140 = sphi 0, %s139
      %s154 = sphi 0, %s140
      %s158 = sphi 0, %s158
      %s160 = sphi 0, %s158
      %s161 = sphi 0, %s160
      %s175 = sphi 0, %s161
      %s179 = sphi 0, %s179
      %s181 = sphi 0, %s179
      %s182 = sphi 0, %s181
      %s196 = sphi 0, %s182
      %s200 = sphi 0, %s200
      %s202 = sphi 0, %s200
      %s203 = sphi 0, %s202
      %s217 = sphi 0, %s203
      %s221 = sphi 0, %s221
      %s223 = sphi 0, %s221
      %s224 = sphi 0, %s223
      %s238 = sphi 0, %s224
      %s242 = sphi 0, %s242
      %s244 = sphi 0, %s242
      %s245 = sphi 0, %s244
      %s259 = sphi 0, %s245
      %s263 = sphi 0, %s263
      %s265 = sphi 0, %s263
      %s266 = sphi 0, %s265
      %s280 = sphi 0, %s266
      %s286 = sphi 0, %s288
      %s289 = sphi 0, %s286
      %s290 = sphi 0, %s289
      %s306 = sphi 0, %s290
    $region4: #{psan_forward.2} parent=1 // loop_header_branch
      %22 = sbr.rel (%p20) target = $region8
    $region5: #{psan_forward.2} parent=1 // loop_body
      %s24 = ssub.s32 %s19, 1
      %s25 = ssub.s32 %s19, 2
      %s26 = sadd.s32 %s19, 1
      %s27 = ssub.s32 %s19, %s26
      %p28 = scmp.eq.s32.totalorder %s27, 0
      %s30 = sadd.s32 %s29, 1
      %s31 = scalar_select %p28, %s29, %s30
      %p34 = pneg %p28
      %p35 = scmp.eq.s32.totalorder %s19, 1
      %p36 = por %p34, %p35
      %p37 = scmp.ne.s32.totalorder %s29, %s32
      %p38 = scmp.eq.s32.totalorder %s19, 0
      %p39 = por %p37, %p38
      %p40 = scmp.ne.s32.totalorder %s29, %s32
      %p41 = scmp.eq.s32.totalorder %s24, 1
      %p42 = por %p40, %p41
      %p43 = scmp.ne.s32.totalorder %s32, %s33
      %p44 = scmp.eq.s32.totalorder %s24, 0
      %p45 = por %p43, %p44
      %p46 = scmp.ne.s32.totalorder %s32, %s33
      %p47 = scmp.eq.s32.totalorder %s25, 1
      %p48 = por %p46, %p47
      %p50 = scmp.ne.s32.totalorder %s33, %s49
      %p51 = scmp.eq.s32.totalorder %s25, 0
      %p52 = por %p50, %p51
      %s54 = sadd.s32 %s53, 1
      %p57 = scmp.eq.s32.totalorder %s19, 1
      %p58 = scmp.ne.s32.totalorder %s53, %s55
      %p59 = scmp.eq.s32.totalorder %s19, 0
      %p60 = por %p58, %p59
      %p61 = scmp.ne.s32.totalorder %s53, %s55
      %p62 = scmp.eq.s32.totalorder %s24, 1
      %p63 = por %p61, %p62
      %p64 = scmp.ne.s32.totalorder %s55, %s56
      %p65 = scmp.eq.s32.totalorder %s24, 0
      %p66 = por %p64, %p65
      %p67 = scmp.ne.s32.totalorder %s55, %s56
      %p68 = scmp.eq.s32.totalorder %s25, 1
      %p69 = por %p67, %p68
      %p71 = scmp.ne.s32.totalorder %s56, %s70
      %p72 = scmp.eq.s32.totalorder %s25, 0
      %p73 = por %p71, %p72
      %s75 = sadd.s32 %s74, 1
      %p78 = scmp.eq.s32.totalorder %s19, 1
      %p79 = scmp.ne.s32.totalorder %s74, %s76
      %p80 = scmp.eq.s32.totalorder %s19, 0
      %p81 = por %p79, %p80
      %p82 = scmp.ne.s32.totalorder %s74, %s76
      %p83 = scmp.eq.s32.totalorder %s24, 1
      %p84 = por %p82, %p83
      %p85 = scmp.ne.s32.totalorder %s76, %s77
      %p86 = scmp.eq.s32.totalorder %s24, 0
      %p87 = por %p85, %p86
      %p88 = scmp.ne.s32.totalorder %s76, %s77
      %p89 = scmp.eq.s32.totalorder %s25, 1
      %p90 = por %p88, %p89
      %p92 = scmp.ne.s32.totalorder %s77, %s91
      %p93 = scmp.eq.s32.totalorder %s25, 0
      %p94 = por %p92, %p93
      %s96 = sadd.s32 %s95, 1
      %p99 = scmp.eq.s32.totalorder %s19, 1
      %p100 = scmp.ne.s32.totalorder %s95, %s97
      %p101 = scmp.eq.s32.totalorder %s19, 0
      %p102 = por %p100, %p101
      %p103 = scmp.ne.s32.totalorder %s95, %s97
      %p104 = scmp.eq.s32.totalorder %s24, 1
      %p105 = por %p103, %p104
      %p106 = scmp.ne.s32.totalorder %s97, %s98
      %p107 = scmp.eq.s32.totalorder %s24, 0
      %p108 = por %p106, %p107
      %p109 = scmp.ne.s32.totalorder %s97, %s98
      %p110 = scmp.eq.s32.totalorder %s25, 1
      %p111 = por %p109, %p110
      %p113 = scmp.ne.s32.totalorder %s98, %s112
      %p114 = scmp.eq.s32.totalorder %s25, 0
      %p115 = por %p113, %p114
      %s117 = sadd.s32 %s116, 1
      %p120 = scmp.eq.s32.totalorder %s19, 1
      %p121 = scmp.ne.s32.totalorder %s116, %s118
      %p122 = scmp.eq.s32.totalorder %s19, 0
      %p123 = por %p121, %p122
      %p124 = scmp.ne.s32.totalorder %s116, %s118
      %p125 = scmp.eq.s32.totalorder %s24, 1
      %p126 = por %p124, %p125
      %p127 = scmp.ne.s32.totalorder %s118, %s119
      %p128 = scmp.eq.s32.totalorder %s24, 0
      %p129 = por %p127, %p128
      %p130 = scmp.ne.s32.totalorder %s118, %s119
      %p131 = scmp.eq.s32.totalorder %s25, 1
      %p132 = por %p130, %p131
      %p134 = scmp.ne.s32.totalorder %s119, %s133
      %p135 = scmp.eq.s32.totalorder %s25, 0
      %p136 = por %p134, %p135
      %s138 = sadd.s32 %s137, 1
      %p141 = scmp.eq.s32.totalorder %s19, 1
      %p142 = scmp.ne.s32.totalorder %s137, %s139
      %p143 = scmp.eq.s32.totalorder %s19, 0
      %p144 = por %p142, %p143
      %p145 = scmp.ne.s32.totalorder %s137, %s139
      %p146 = scmp.eq.s32.totalorder %s24, 1
      %p147 = por %p145, %p146
      %p148 = scmp.ne.s32.totalorder %s139, %s140
      %p149 = scmp.eq.s32.totalorder %s24, 0
      %p150 = por %p148, %p149
      %p151 = scmp.ne.s32.totalorder %s139, %s140
      %p152 = scmp.eq.s32.totalorder %s25, 1
      %p153 = por %p151, %p152
      %p155 = scmp.ne.s32.totalorder %s140, %s154
      %p156 = scmp.eq.s32.totalorder %s25, 0
      %p157 = por %p155, %p156
      %s159 = sadd.s32 %s158, 1
      %p162 = scmp.eq.s32.totalorder %s19, 1
      %p163 = scmp.ne.s32.totalorder %s158, %s160
      %p164 = scmp.eq.s32.totalorder %s19, 0
      %p165 = por %p163, %p164
      %p166 = scmp.ne.s32.totalorder %s158, %s160
      %p167 = scmp.eq.s32.totalorder %s24, 1
      %p168 = por %p166, %p167
      %p169 = scmp.ne.s32.totalorder %s160, %s161
      %p170 = scmp.eq.s32.totalorder %s24, 0
      %p171 = por %p169, %p170
      %p172 = scmp.ne.s32.totalorder %s160, %s161
      %p173 = scmp.eq.s32.totalorder %s25, 1
      %p174 = por %p172, %p173
      %p176 = scmp.ne.s32.totalorder %s161, %s175
      %p177 = scmp.eq.s32.totalorder %s25, 0
      %p178 = por %p176, %p177
      %s180 = sadd.s32 %s179, 1
      %p183 = scmp.eq.s32.totalorder %s19, 1
      %p184 = scmp.ne.s32.totalorder %s179, %s181
      %p185 = scmp.eq.s32.totalorder %s19, 0
      %p186 = por %p184, %p185
      %p187 = scmp.ne.s32.totalorder %s179, %s181
      %p188 = scmp.eq.s32.totalorder %s24, 1
      %p189 = por %p187, %p188
      %p190 = scmp.ne.s32.totalorder %s181, %s182
      %p191 = scmp.eq.s32.totalorder %s24, 0
      %p192 = por %p190, %p191
      %p193 = scmp.ne.s32.totalorder %s181, %s182
      %p194 = scmp.eq.s32.totalorder %s25, 1
      %p195 = por %p193, %p194
      %p197 = scmp.ne.s32.totalorder %s182, %s196
      %p198 = scmp.eq.s32.totalorder %s25, 0
      %p199 = por %p197, %p198
      %s201 = sadd.s32 %s200, 1
      %p204 = scmp.eq.s32.totalorder %s19, 1
      %p205 = scmp.ne.s32.totalorder %s200, %s202
      %p206 = scmp.eq.s32.totalorder %s19, 0
      %p207 = por %p205, %p206
      %p208 = scmp.ne.s32.totalorder %s200, %s202
      %p209 = scmp.eq.s32.totalorder %s24, 1
      %p210 = por %p208, %p209
      %p211 = scmp.ne.s32.totalorder %s202, %s203
      %p212 = scmp.eq.s32.totalorder %s24, 0
      %p213 = por %p211, %p212
      %p214 = scmp.ne.s32.totalorder %s202, %s203
      %p215 = scmp.eq.s32.totalorder %s25, 1
      %p216 = por %p214, %p215
      %p218 = scmp.ne.s32.totalorder %s203, %s217
      %p219 = scmp.eq.s32.totalorder %s25, 0
      %p220 = por %p218, %p219
      %s222 = sadd.s32 %s221, 1
      %p225 = scmp.eq.s32.totalorder %s19, 1
      %p226 = scmp.ne.s32.totalorder %s221, %s223
      %p227 = scmp.eq.s32.totalorder %s19, 0
      %p228 = por %p226, %p227
      %p229 = scmp.ne.s32.totalorder %s221, %s223
      %p230 = scmp.eq.s32.totalorder %s24, 1
      %p231 = por %p229, %p230
      %p232 = scmp.ne.s32.totalorder %s223, %s224
      %p233 = scmp.eq.s32.totalorder %s24, 0
      %p234 = por %p232, %p233
      %p235 = scmp.ne.s32.totalorder %s223, %s224
      %p236 = scmp.eq.s32.totalorder %s25, 1
      %p237 = por %p235, %p236
      %p239 = scmp.ne.s32.totalorder %s224, %s238
      %p240 = scmp.eq.s32.totalorder %s25, 0
      %p241 = por %p239, %p240
      %s243 = sadd.s32 %s242, 1
      %p246 = scmp.eq.s32.totalorder %s19, 1
      %p247 = scmp.ne.s32.totalorder %s242, %s244
      %p248 = scmp.eq.s32.totalorder %s19, 0
      %p249 = por %p247, %p248
      %p250 = scmp.ne.s32.totalorder %s242, %s244
      %p251 = scmp.eq.s32.totalorder %s24, 1
      %p252 = por %p250, %p251
      %p253 = scmp.ne.s32.totalorder %s244, %s245
      %p254 = scmp.eq.s32.totalorder %s24, 0
      %p255 = por %p253, %p254
      %p256 = scmp.ne.s32.totalorder %s244, %s245
      %p257 = scmp.eq.s32.totalorder %s25, 1
      %p258 = por %p256, %p257
      %p260 = scmp.ne.s32.totalorder %s245, %s259
      %p261 = scmp.eq.s32.totalorder %s25, 0
      %p262 = por %p260, %p261
      %s264 = sadd.s32 %s263, 1
      %p267 = scmp.eq.s32.totalorder %s19, 1
      %p268 = scmp.ne.s32.totalorder %s263, %s265
      %p269 = scmp.eq.s32.totalorder %s19, 0
      %p270 = por %p268, %p269
      %p271 = scmp.ne.s32.totalorder %s263, %s265
      %p272 = scmp.eq.s32.totalorder %s24, 1
      %p273 = por %p271, %p272
      %p274 = scmp.ne.s32.totalorder %s265, %s266
      %p275 = scmp.eq.s32.totalorder %s24, 0
      %p276 = por %p274, %p275
      %p277 = scmp.ne.s32.totalorder %s265, %s266
      %p278 = scmp.eq.s32.totalorder %s25, 1
      %p279 = por %p277, %p278
      %p281 = scmp.ne.s32.totalorder %s266, %s280
      %p282 = scmp.eq.s32.totalorder %s25, 0
      %p283 = por %p281, %p282
      %s284 = ssub.s32 %s19, %s26
      %p285 = scmp.eq.s32.totalorder %s284, 0
      %s287 = sadd.s32 %s286, 1
      %s288 = scalar_select %p285, %s286, %s287
      %p291 = pneg %p285
      %p292 = scmp.eq.s32.totalorder %s19, 1
      %p293 = por %p291, %p292
      %p294 = scmp.ne.s32.totalorder %s286, %s289
      %p295 = scmp.eq.s32.totalorder %s19, 0
      %p296 = por %p294, %p295
      %p297 = scmp.ne.s32.totalorder %s286, %s289
      %p298 = scmp.eq.s32.totalorder %s24, 1
      %p299 = por %p297, %p298
      %p300 = scmp.ne.s32.totalorder %s289, %s290
      %p301 = scmp.eq.s32.totalorder %s24, 0
      %p302 = por %p300, %p301
      %p303 = scmp.ne.s32.totalorder %s289, %s290
      %p304 = scmp.eq.s32.totalorder %s25, 1
      %p305 = por %p303, %p304
      %p307 = scmp.ne.s32.totalorder %s290, %s306
      %p308 = scmp.eq.s32.totalorder %s25, 0
      %p309 = por %p307, %p308
      %p310 = scmp.le.s32.totalorder 1, %s19
      %p311 = scmp.lt.s32.totalorder %s19, 3
      %p312 = pnand %p310, %p311
      %p313 = pneg %p312
      // Predicated region
      $region9: #{psan_forward.2} parent=5 // pred_check
        _
      $region10: #{psan_forward.2} parent=5 // pred_check_branch
        %315 = sbr.rel (%p312) target = $region12
      $region11: #{psan_forward.2} parent=5 // pred_region
        %s316 = ssub.s32 %s19, 1
        // Predicated region
        $region13: #{psan_forward.2} parent=11 // pred_check
          %p317 = pneg %p66
        $region14: #{psan_forward.2} parent=11 // pred_check_branch
          %319 = sbr.rel (%p317) target = $region16
        $region15: #{psan_forward.2} parent=11 // pred_region
          _
        $region16: #{psan_forward.2} parent=11 // pred_fallthru
          _
        // Predicated region
        $region17: #{psan_forward.2} parent=11 // pred_check
          %p320 = pneg %p87
        $region18: #{psan_forward.2} parent=11 // pred_check_branch
          %322 = sbr.rel (%p320) target = $region20
        $region19: #{psan_forward.2} parent=11 // pred_region
          _
        $region20: #{psan_forward.2} parent=11 // pred_fallthru
          _
        // Predicated region
        $region21: #{psan_forward.2} parent=11 // pred_check
          %p323 = pneg %p108
        $region22: #{psan_forward.2} parent=11 // pred_check_branch
          %325 = sbr.rel (%p323) target = $region24
        $region23: #{psan_forward.2} parent=11 // pred_region
          _
        $region24: #{psan_forward.2} parent=11 // pred_fallthru
          _
        // Predicated region
        $region25: #{psan_forward.2} parent=11 // pred_check
          %p326 = pneg %p129
        $region26: #{psan_forward.2} parent=11 // pred_check_branch
          %328 = sbr.rel (%p326) target = $region28
        $region27: #{psan_forward.2} parent=11 // pred_region
          _
        $region28: #{psan_forward.2} parent=11 // pred_fallthru
          _
        // Predicated region
        $region29: #{psan_forward.2} parent=11 // pred_check
          %p329 = pneg %p150
        $region30: #{psan_forward.2} parent=11 // pred_check_branch
          %331 = sbr.rel (%p329) target = $region32
        $region31: #{psan_forward.2} parent=11 // pred_region
          _
        $region32: #{psan_forward.2} parent=11 // pred_fallthru
          _
        // Predicated region
        $region33: #{psan_forward.2} parent=11 // pred_check
          %p332 = pneg %p171
        $region34: #{psan_forward.2} parent=11 // pred_check_branch
          %334 = sbr.rel (%p332) target = $region36
        $region35: #{psan_forward.2} parent=11 // pred_region
          _
        $region36: #{psan_forward.2} parent=11 // pred_fallthru
          _
        // Predicated region
        $region37: #{psan_forward.2} parent=11 // pred_check
          %p335 = pneg %p192
        $region38: #{psan_forward.2} parent=11 // pred_check_branch
          %337 = sbr.rel (%p335) target = $region40
        $region39: #{psan_forward.2} parent=11 // pred_region
          _
        $region40: #{psan_forward.2} parent=11 // pred_fallthru
          _
        // Predicated region
        $region41: #{psan_forward.2} parent=11 // pred_check
          %p338 = pneg %p213
        $region42: #{psan_forward.2} parent=11 // pred_check_branch
          %340 = sbr.rel (%p338) target = $region44
        $region43: #{psan_forward.2} parent=11 // pred_region
          _
        $region44: #{psan_forward.2} parent=11 // pred_fallthru
          _
        // Predicated region
        $region45: #{psan_forward.2} parent=11 // pred_check
          %p341 = pneg %p234
        $region46: #{psan_forward.2} parent=11 // pred_check_branch
          %343 = sbr.rel (%p341) target = $region48
        $region47: #{psan_forward.2} parent=11 // pred_region
          _
        $region48: #{psan_forward.2} parent=11 // pred_fallthru
          _
        // Predicated region
        $region49: #{psan_forward.2} parent=11 // pred_check
          %p344 = pneg %p255
        $region50: #{psan_forward.2} parent=11 // pred_check_branch
          %346 = sbr.rel (%p344) target = $region52
        $region51: #{psan_forward.2} parent=11 // pred_region
          _
        $region52: #{psan_forward.2} parent=11 // pred_fallthru
          _
        // Predicated region
        $region53: #{psan_forward.2} parent=11 // pred_check
          %p347 = pneg %p276
        $region54: #{psan_forward.2} parent=11 // pred_check_branch
          %349 = sbr.rel (%p347) target = $region56
        $region55: #{psan_forward.2} parent=11 // pred_region
          %s351 = ssub.s32 16, 16
          %352 = vsyncadd [#allocation3], %s351
          %s354 = sshll.u32 %s11, 4
          %s355 = int_to_ptr.vmem [resolvable:$true] %s354
          %357 = dma.vmem_to_smem %s355, 16, [#allocation2], [#allocation3]
        $region56: #{psan_forward.2} parent=11 // pred_fallthru
          _
      $region12: #{psan_forward.2} parent=5 // pred_fallthru
        _
      %p358 = scmp.lt.s32.totalorder %s19, 2
      // Predicated region
      $region57: #{psan_forward.2} parent=5 // pred_check
        %p359 = pneg %p358
      $region58: #{psan_forward.2} parent=5 // pred_check_branch
        %361 = sbr.rel (%p359) target = $region60
      $region59: #{psan_forward.2} parent=5 // pred_region
        // Predicated region
        $region61: #{psan_forward.2} parent=59 // pred_check
          %p362 = pneg %p39
        $region62: #{psan_forward.2} parent=59 // pred_check_branch
          %364 = sbr.rel (%p362) target = $region64
        $region63: #{psan_forward.2} parent=59 // pred_region
          %s365 = smul.u32 2, %s19
          %p366 = scmp.lt.s32.totalorder %s365, 3
          %s367 = scalar_select %p366, %s365, 3
          %s368 = smul.addr %s367, 8
          %s369 = smul.addr %s368, 4
          %s370 = scalar_lea.vmem %s0, %s369
          %s371 = smul.u32 2, %s19
        $region64: #{psan_forward.2} parent=59 // pred_fallthru
          _
      $region60: #{psan_forward.2} parent=5 // pred_fallthru
        _
      %p372 = scmp.le.s32.totalorder 1, %s19
      %p373 = scmp.lt.s32.totalorder %s19, 3
      %p374 = pnand %p372, %p373
      %p375 = pneg %p374
      // Predicated region
      $region65: #{psan_forward.2} parent=5 // pred_check
        _
      $region66: #{psan_forward.2} parent=5 // pred_check_branch
        %377 = sbr.rel (%p374) target = $region68
      $region67: #{psan_forward.2} parent=5 // pred_region
        %s378 = ssub.s32 %s19, 1
        // Predicated region
        $region69: #{psan_forward.2} parent=67 // pred_check
          %p379 = pneg %p276
        $region70: #{psan_forward.2} parent=67 // pred_check_branch
          %381 = sbr.rel (%p379) target = $region72
        $region71: #{psan_forward.2} parent=67 // pred_region
          %382 = dma.done [#allocation3], 16
        $region72: #{psan_forward.2} parent=67 // pred_fallthru
          _
        %383 = sfence
        %s384 = smul.u32 2, %s24
        %p385 = scmp.lt.s32.totalorder %s384, 3
        %s386 = scalar_select %p385, %s384, 3
        %s387 = smul.addr %s386, 8
        %s388 = smul.addr %s387, 4
        %s389 = scalar_lea.vmem %s0, %s388
        %p390 = pneg %p45
        %p391 = pneg %p42
        %p392 = pneg %p66
        %p393 = pneg %p63
        %p394 = pneg %p87
        %p395 = pneg %p84
        %p396 = pneg %p108
        %p397 = pneg %p105
        %p398 = pneg %p129
        %p399 = pneg %p126
        %p400 = pneg %p150
        %p401 = pneg %p147
        %p402 = pneg %p171
        %p403 = pneg %p168
        %p404 = pneg %p192
        %p405 = pneg %p189
        %p406 = pneg %p213
        %p407 = pneg %p210
        %p408 = pneg %p234
        %p409 = pneg %p231
        %p410 = pneg %p255
        %p411 = pneg %p252
        %p412 = pneg %p276
        %p413 = pneg %p273
        %p414 = pneg %p302
        %p415 = pneg %p299
        %s416 = smul.u32 2, %s24
        %p417 = scmp.lt.s32.totalorder %s416, 3
        %s418 = scalar_select %p417, %s416, 3
        %s419 = scalar_lea.vmem %s12, %s418
        %s420 = smul.u32 2, %s24
        %p421 = scmp.lt.s32.totalorder %s420, 3
        %s422 = scalar_select %p421, %s420, 3
        %s423 = smul.addr %s422, 8
        %s424 = smul.addr %s423, 4
        %s425 = scalar_lea.vmem %s0, %s424
        %s426 = smul.u32 2, %s24
        %s427 = smul.u32 2, %s24
        %p428 = scmp.lt.s32.totalorder %s427, 3
        %s429 = scalar_select %p428, %s427, 3
        %s430 = scalar_lea.vmem %s12, %s429
        %s431 = smul.u32 2, %s24
        %s433 = sld [smem:[#allocation2]]
        %s434 = sld [smem:[#allocation2 + $0x1]]
        %v435 = vld [vmem:[%s425] sm:$0xf]
        %v436 = vld [vmem:[%s425 + $0x4] sm:$0xf]
        %v437 = vld [vmem:[%s425 + $0x8] sm:$0xf]
        %v438 = vld [vmem:[%s425 + $0xc] sm:$0xf]
        %v439 = vld [vmem:[%s425 + $0x10] sm:$0xf]
        %v440 = vld [vmem:[%s425 + $0x14] sm:$0xf]
        %v441 = vld [vmem:[%s425 + $0x18] sm:$0xf]
        %v442 = vld [vmem:[%s425 + $0x1c] sm:$0xf]
        %v443 = vld [vmem:[%s425 + $0x20] sm:$0xf]
        %v444 = vld [vmem:[%s425 + $0x24] sm:$0xf]
        %v445 = vld [vmem:[%s425 + $0x28] sm:$0xf]
        %v446 = vld [vmem:[%s425 + $0x2c] sm:$0xf]
        %v447 = vld [vmem:[%s425 + $0x30] sm:$0xf]
        %v448 = vld [vmem:[%s425 + $0x34] sm:$0xf]
        %v449 = vld [vmem:[%s425 + $0x38] sm:$0xf]
        %v450 = vld [vmem:[%s425 + $0x3c] sm:$0xf]
        %v451 = vld [vmem:[%s1] sm:$0xf]
        %v452 = vld [vmem:[%s1 + $0x4] sm:$0xf]
        %v453 = vld [vmem:[%s9] sm:$0x1]
        %v454 = vlaneseq
        %v455 = vshrl.u32 %v454, 7
        %v456 = vsub.s32 0, %v455
        %v457 = vrot.slane %v453, %v456
        %v474 = vunpack.c.l.b16 %v435
        %v475 = vunpack.c.l.b16 %v436
        %v476 = vunpack.c.l.b16 %v437
        %v477 = vunpack.c.l.b16 %v438
        %v478 = vunpack.c.l.b16 %v439
        %v479 = vunpack.c.l.b16 %v440
        %v480 = vunpack.c.l.b16 %v441
        %v481 = vunpack.c.l.b16 %v442
        %v482 = vunpack.c.l.b16 %v443
        %v483 = vunpack.c.l.b16 %v444
        %v484 = vunpack.c.l.b16 %v445
        %v485 = vunpack.c.l.b16 %v446
        %v486 = vunpack.c.l.b16 %v447
        %v487 = vunpack.c.l.b16 %v448
        %v488 = vunpack.c.l.b16 %v449
        %v489 = vunpack.c.l.b16 %v450
        %v490 = vpack.c.b16 %v475, %v474
        %v491 = vpack.c.b16 %v477, %v476
        %v492 = vpack.c.b16 %v479, %v478
        %v493 = vpack.c.b16 %v481, %v480
        %v494 = vpack.c.b16 %v483, %v482
        %v495 = vpack.c.b16 %v485, %v484
        %v496 = vpack.c.b16 %v487, %v486
        %v497 = vpack.c.b16 %v489, %v488
        %v500 = vunpack.c.l.b16 %v451
        %v501 = vunpack.c.l.b16 %v452
        %v502 = vpack.c.b16 %v501, %v500
        %vm504 = vcmask 130048
        %v506 = vsel %vm504, %v490, 0
        %v509 = vsel %vm504, %v491, 0
        %v512 = vsel %vm504, %v492, 0
        %v515 = vsel %vm504, %v493, 0
        %v518 = vsel %vm504, %v494, 0
        %v521 = vsel %vm504, %v495, 0
        %v524 = vsel %vm504, %v496, 0
        %v527 = vsel %vm504, %v497, 0
        %529 = vmatprep.subr.bf16.mxu0 0
        %530 = vmatpush1.bf16.msra.mxu0 %v502
        %531 = vmatprep.subr.bf16.mxu0 0
        %532 = vmatpush1.bf16.msra.mxu0 0
        %533 = vmatprep.subr.bf16.mxu0 0
        %534 = vmatpush1.bf16.msra.mxu0 0
        %535 = vmatprep.subr.bf16.mxu0 0
        %536 = vmatpush1.bf16.msra.mxu0 0
        %537 = vmatprep.subr.bf16.mxu0 0
        %538 = vmatpush1.bf16.msra.mxu0 0
        %539 = vmatprep.subr.bf16.mxu0 0
        %540 = vmatpush1.bf16.msra.mxu0 0
        %541 = vmatprep.subr.bf16.mxu0 0
        %542 = vmatpush1.bf16.msra.mxu0 0
        %543 = vmatprep.subr.bf16.mxu0 0
        %544 = vmatpush1.bf16.msra.mxu0 0
        %545 = vmatprep.subr.bf16.mxu0 0
        %546 = vmatpush1.bf16.msra.mxu0 0
        %547 = vmatprep.subr.bf16.mxu0 0
        %548 = vmatpush1.bf16.msra.mxu0 0
        %549 = vmatprep.subr.bf16.mxu0 0
        %550 = vmatpush1.bf16.msra.mxu0 0
        %551 = vmatprep.subr.bf16.mxu0 0
        %552 = vmatpush1.bf16.msra.mxu0 0
        %553 = vmatprep.subr.bf16.mxu0 0
        %554 = vmatpush1.bf16.msra.mxu0 0
        %555 = vmatprep.subr.bf16.mxu0 0
        %556 = vmatpush1.bf16.msra.mxu0 0
        %557 = vmatprep.subr.bf16.mxu0 0
        %558 = vmatpush1.bf16.msra.mxu0 0
        %559 = vmatprep.subr.bf16.mxu0 0
        %560 = vmatpush1.bf16.msra.mxu0 0
        %561 = vmatprep.mubr.bf16.mxu0 0
        %562 = vmatmul.mubr.bf16.gmra.mrb[0].mxu0 %v506
        %v563 = vpop.f32.mrb[0].mxu0
        %v564 = vadd.f32 %v457, %v563
        %v565 = vpop.f32.mrb[0].mxu0
        %v566 = vpop.f32.mrb[0].mxu0
        %v567 = vadd.f32 %v457, %v566
        %v568 = vpop.f32.mrb[0].mxu0
        %569 = vmatprep.mubr.bf16.mxu0 0
        %570 = vmatmul.mubr.bf16.gmra.mrb[0].mxu0 %v509
        %v571 = vpop.f32.mrb[0].mxu0
        %v572 = vadd.f32 %v457, %v571
        %v573 = vpop.f32.mrb[0].mxu0
        %v574 = vpop.f32.mrb[0].mxu0
        %v575 = vadd.f32 %v457, %v574
        %v576 = vpop.f32.mrb[0].mxu0
        %577 = vmatprep.mubr.bf16.mxu0 0
        %578 = vmatmul.mubr.bf16.gmra.mrb[0].mxu0 %v512
        %v579 = vpop.f32.mrb[0].mxu0
        %v580 = vadd.f32 %v457, %v579
        %v581 = vpop.f32.mrb[0].mxu0
        %v582 = vpop.f32.mrb[0].mxu0
        %v583 = vadd.f32 %v457, %v582
        %v584 = vpop.f32.mrb[0].mxu0
        %585 = vmatprep.mubr.bf16.mxu0 0
        %586 = vmatmul.mubr.bf16.gmra.mrb[0].mxu0 %v515
        %v587 = vpop.f32.mrb[0].mxu0
        %v588 = vadd.f32 %v457, %v587
        %v589 = vpop.f32.mrb[0].mxu0
        %v590 = vpop.f32.mrb[0].mxu0
        %v591 = vadd.f32 %v457, %v590
        %v592 = vpop.f32.mrb[0].mxu0
        %593 = vmatprep.mubr.bf16.mxu0 0
        %594 = vmatmul.mubr.bf16.gmra.mrb[0].mxu0 %v518
        %v595 = vpop.f32.mrb[0].mxu0
        %v596 = vadd.f32 %v457, %v595
        %v597 = vpop.f32.mrb[0].mxu0
        %v598 = vpop.f32.mrb[0].mxu0
        %v599 = vadd.f32 %v457, %v598
        %v600 = vpop.f32.mrb[0].mxu0
        %601 = vmatprep.mubr.bf16.mxu0 0
        %602 = vmatmul.mubr.bf16.gmra.mrb[0].mxu0 %v521
        %v603 = vpop.f32.mrb[0].mxu0
        %v604 = vadd.f32 %v457, %v603
        %v605 = vpop.f32.mrb[0].mxu0
        %v606 = vpop.f32.mrb[0].mxu0
        %v607 = vadd.f32 %v457, %v606
        %v608 = vpop.f32.mrb[0].mxu0
        %609 = vmatprep.mubr.bf16.mxu0 0
        %610 = vmatmul.mubr.bf16.gmra.mrb[0].mxu0 %v524
        %v611 = vpop.f32.mrb[0].mxu0
        %v612 = vadd.f32 %v457, %v611
        %v613 = vpop.f32.mrb[0].mxu0
        %v614 = vpop.f32.mrb[0].mxu0
        %v615 = vadd.f32 %v457, %v614
        %v616 = vpop.f32.mrb[0].mxu0
        %617 = vmatprep.mubr.bf16.mxu0 0
        %618 = vmatmul.mubr.bf16.gmra.mrb[0].mxu0 %v527
        %v619 = vpop.f32.mrb[0].mxu0
        %v620 = vadd.f32 %v457, %v619
        %v621 = vpop.f32.mrb[0].mxu0
        %v622 = vpop.f32.mrb[0].mxu0
        %v623 = vadd.f32 %v457, %v622
        %v624 = vpop.f32.mrb[0].mxu0
        %625 = vdwg.mxu0
        %vm626 = vcmp.ge.f32.partialorder %v564, 0.0
        %vm627 = vcmp.ge.f32.partialorder %v567, 0.0
        %vm628 = vcmp.ge.f32.partialorder %v572, 0.0
        %vm629 = vcmp.ge.f32.partialorder %v575, 0.0
        %vm630 = vcmp.ge.f32.partialorder %v580, 0.0
        %vm631 = vcmp.ge.f32.partialorder %v583, 0.0
        %vm632 = vcmp.ge.f32.partialorder %v588, 0.0
        %vm633 = vcmp.ge.f32.partialorder %v591, 0.0
        %vm634 = vcmp.ge.f32.partialorder %v596, 0.0
        %vm635 = vcmp.ge.f32.partialorder %v599, 0.0
        %vm636 = vcmp.ge.f32.partialorder %v604, 0.0
        %vm637 = vcmp.ge.f32.partialorder %v607, 0.0
        %vm638 = vcmp.ge.f32.partialorder %v612, 0.0
        %vm639 = vcmp.ge.f32.partialorder %v615, 0.0
        %vm640 = vcmp.ge.f32.partialorder %v620, 0.0
        %vm641 = vcmp.ge.f32.partialorder %v623, 0.0
        %v642 = vstv %s433
        %v643 = vmul.f32 %v642, %v564
        %v644 = vmul.f32 %v642, %v567
        %v645 = vmul.f32 %v642, %v572
        %v646 = vmul.f32 %v642, %v575
        %v647 = vmul.f32 %v642, %v580
        %v648 = vmul.f32 %v642, %v583
        %v649 = vmul.f32 %v642, %v588
        %v650 = vmul.f32 %v642, %v591
        %v651 = vmul.f32 %v642, %v596
        %v652 = vmul.f32 %v642, %v599
        %v653 = vmul.f32 %v642, %v604
        %v654 = vmul.f32 %v642, %v607
        %v655 = vmul.f32 %v642, %v612
        %v656 = vmul.f32 %v642, %v615
        %v657 = vmul.f32 %v642, %v620
        %v658 = vmul.f32 %v642, %v623
        %v659 = vsel %vm626, %v564, %v643
        %v660 = vsel %vm627, %v567, %v644
        %v661 = vsel %vm628, %v572, %v645
        %v662 = vsel %vm629, %v575, %v646
        %v663 = vsel %vm630, %v580, %v647
        %v664 = vsel %vm631, %v583, %v648
        %v665 = vsel %vm632, %v588, %v649
        %v666 = vsel %vm633, %v591, %v650
        %v667 = vsel %vm634, %v596, %v651
        %v668 = vsel %vm635, %v599, %v652
        %v669 = vsel %vm636, %v604, %v653
        %v670 = vsel %vm637, %v607, %v654
        %v671 = vsel %vm638, %v612, %v655
        %v672 = vsel %vm639, %v615, %v656
        %v673 = vsel %vm640, %v620, %v657
        %v674 = vsel %vm641, %v623, %v658
        %v675 = vpack.c.bf16 %v660, %v659
        %v676 = vpack.c.bf16 %v662, %v661
        %v677 = vpack.c.bf16 %v664, %v663
        %v678 = vpack.c.bf16 %v666, %v665
        %v679 = vpack.c.bf16 %v668, %v667
        %v680 = vpack.c.bf16 %v670, %v669
        %v681 = vpack.c.bf16 %v672, %v671
        %v682 = vpack.c.bf16 %v674, %v673
        %v683 = vld [vmem:[%s3] sm:$0xf]
        %v684 = vld [vmem:[%s3 + $0x4] sm:$0xf]
        %v687 = vunpack.c.l.b16 %v683
        %v688 = vunpack.c.l.b16 %v684
        %v689 = vpack.c.b16 %v688, %v687
        %v692 = vsel %vm504, %v675, 0
        %v695 = vsel %vm504, %v676, 0
        %v698 = vsel %vm504, %v677, 0
        %v701 = vsel %vm504, %v678, 0
        %v704 = vsel %vm504, %v679, 0
        %v707 = vsel %vm504, %v680, 0
        %v710 = vsel %vm504, %v681, 0
        %v713 = vsel %vm504, %v682, 0
        %715 = vmatprep.subr.bf16.mxu0 0
        %716 = vmatpush1.bf16.msra.mxu0 %v689
        %717 = vmatprep.subr.bf16.mxu0 0
        %718 = vmatpush1.bf16.msra.mxu0 0
        %719 = vmatprep.subr.bf16.mxu0 0
        %720 = vmatpush1.bf16.msra.mxu0 0
        %721 = vmatprep.subr.bf16.mxu0 0
        %722 = vmatpush1.bf16.msra.mxu0 0
        %723 = vmatprep.subr.bf16.mxu0 0
        %724 = vmatpush1.bf16.msra.mxu0 0
        %725 = vmatprep.subr.bf16.mxu0 0
        %726 = vmatpush1.bf16.msra.mxu0 0
        %727 = vmatprep.subr.bf16.mxu0 0
        %728 = vmatpush1.bf16.msra.mxu0 0
        %729 = vmatprep.subr.bf16.mxu0 0
        %730 = vmatpush1.bf16.msra.mxu0 0
        %731 = vmatprep.subr.bf16.mxu0 0
        %732 = vmatpush1.bf16.msra.mxu0 0
        %733 = vmatprep.subr.bf16.mxu0 0
        %734 = vmatpush1.bf16.msra.mxu0 0
        %735 = vmatprep.subr.bf16.mxu0 0
        %736 = vmatpush1.bf16.msra.mxu0 0
        %737 = vmatprep.subr.bf16.mxu0 0
        %738 = vmatpush1.bf16.msra.mxu0 0
        %739 = vmatprep.subr.bf16.mxu0 0
        %740 = vmatpush1.bf16.msra.mxu0 0
        %741 = vmatprep.subr.bf16.mxu0 0
        %742 = vmatpush1.bf16.msra.mxu0 0
        %743 = vmatprep.subr.bf16.mxu0 0
        %744 = vmatpush1.bf16.msra.mxu0 0
        %745 = vmatprep.subr.bf16.mxu0 0
        %746 = vmatpush1.bf16.msra.mxu0 0
        %747 = vmatprep.mubr.bf16.mxu0 0
        %748 = vmatmul.mubr.bf16.gmra.mrb[0].mxu0 %v692
        %v749 = vpop.f32.mrb[0].mxu0
        %v750 = vadd.f32 0.0, %v749
        %v751 = vpop.f32.mrb[0].mxu0
        %v752 = vpop.f32.mrb[0].mxu0
        %v753 = vadd.f32 0.0, %v752
        %v754 = vpop.f32.mrb[0].mxu0
        %755 = vmatprep.mubr.bf16.mxu0 0
        %756 = vmatmul.mubr.bf16.gmra.mrb[0].mxu0 %v695
        %v757 = vpop.f32.mrb[0].mxu0
        %v758 = vadd.f32 0.0, %v757
        %v759 = vpop.f32.mrb[0].mxu0
        %v760 = vpop.f32.mrb[0].mxu0
        %v761 = vadd.f32 0.0, %v760
        %v762 = vpop.f32.mrb[0].mxu0
        %763 = vmatprep.mubr.bf16.mxu0 0
        %764 = vmatmul.mubr.bf16.gmra.mrb[0].mxu0 %v698
        %v765 = vpop.f32.mrb[0].mxu0
        %v766 = vadd.f32 0.0, %v765
        %v767 = vpop.f32.mrb[0].mxu0
        %v768 = vpop.f32.mrb[0].mxu0
        %v769 = vadd.f32 0.0, %v768
        %v770 = vpop.f32.mrb[0].mxu0
        %771 = vmatprep.mubr.bf16.mxu0 0
        %772 = vmatmul.mubr.bf16.gmra.mrb[0].mxu0 %v701
        %v773 = vpop.f32.mrb[0].mxu0
        %v774 = vadd.f32 0.0, %v773
        %v775 = vpop.f32.mrb[0].mxu0
        %v776 = vpop.f32.mrb[0].mxu0
        %v777 = vadd.f32 0.0, %v776
        %v778 = vpop.f32.mrb[0].mxu0
        %779 = vmatprep.mubr.bf16.mxu0 0
        %780 = vmatmul.mubr.bf16.gmra.mrb[0].mxu0 %v704
        %v781 = vpop.f32.mrb[0].mxu0
        %v782 = vadd.f32 0.0, %v781
        %v783 = vpop.f32.mrb[0].mxu0
        %v784 = vpop.f32.mrb[0].mxu0
        %v785 = vadd.f32 0.0, %v784
        %v786 = vpop.f32.mrb[0].mxu0
        %787 = vmatprep.mubr.bf16.mxu0 0
        %788 = vmatmul.mubr.bf16.gmra.mrb[0].mxu0 %v707
        %v789 = vpop.f32.mrb[0].mxu0
        %v790 = vadd.f32 0.0, %v789
        %v791 = vpop.f32.mrb[0].mxu0
        %v792 = vpop.f32.mrb[0].mxu0
        %v793 = vadd.f32 0.0, %v792
        %v794 = vpop.f32.mrb[0].mxu0
        %795 = vmatprep.mubr.bf16.mxu0 0
        %796 = vmatmul.mubr.bf16.gmra.mrb[0].mxu0 %v710
        %v797 = vpop.f32.mrb[0].mxu0
        %v798 = vadd.f32 0.0, %v797
        %v799 = vpop.f32.mrb[0].mxu0
        %v800 = vpop.f32.mrb[0].mxu0
        %v801 = vadd.f32 0.0, %v800
        %v802 = vpop.f32.mrb[0].mxu0
        %803 = vmatprep.mubr.bf16.mxu0 0
        %804 = vmatmul.mubr.bf16.gmra.mrb[0].mxu0 %v713
        %v805 = vpop.f32.mrb[0].mxu0
        %v806 = vadd.f32 0.0, %v805
        %v807 = vpop.f32.mrb[0].mxu0
        %v808 = vpop.f32.mrb[0].mxu0
        %v809 = vadd.f32 0.0, %v808
        %v810 = vpop.f32.mrb[0].mxu0
        %811 = vdwg.mxu0
        %v812 = vld [vmem:[%s2] sm:$0xf]
        %v813 = vld [vmem:[%s2 + $0x4] sm:$0xf]
        %v816 = vunpack.c.l.b16 %v812
        %v817 = vunpack.c.l.b16 %v813
        %v818 = vpack.c.b16 %v817, %v816
        %820 = vmatprep.subr.bf16.mxu0 0
        %821 = vmatpush1.bf16.msra.mxu0 %v818
        %822 = vmatprep.subr.bf16.mxu0 0
        %823 = vmatpush1.bf16.msra.mxu0 0
        %824 = vmatprep.subr.bf16.mxu0 0
        %825 = vmatpush1.bf16.msra.mxu0 0
        %826 = vmatprep.subr.bf16.mxu0 0
        %827 = vmatpush1.bf16.msra.mxu0 0
        %828 = vmatprep.subr.bf16.mxu0 0
        %829 = vmatpush1.bf16.msra.mxu0 0
        %830 = vmatprep.subr.bf16.mxu0 0
        %831 = vmatpush1.bf16.msra.mxu0 0
        %832 = vmatprep.subr.bf16.mxu0 0
        %833 = vmatpush1.bf16.msra.mxu0 0
        %834 = vmatprep.subr.bf16.mxu0 0
        %835 = vmatpush1.bf16.msra.mxu0 0
        %836 = vmatprep.subr.bf16.mxu0 0
        %837 = vmatpush1.bf16.msra.mxu0 0
        %838 = vmatprep.subr.bf16.mxu0 0
        %839 = vmatpush1.bf16.msra.mxu0 0
        %840 = vmatprep.subr.bf16.mxu0 0
        %841 = vmatpush1.bf16.msra.mxu0 0
        %842 = vmatprep.subr.bf16.mxu0 0
        %843 = vmatpush1.bf16.msra.mxu0 0
        %844 = vmatprep.subr.bf16.mxu0 0
        %845 = vmatpush1.bf16.msra.mxu0 0
        %846 = vmatprep.subr.bf16.mxu0 0
        %847 = vmatpush1.bf16.msra.mxu0 0
        %848 = vmatprep.subr.bf16.mxu0 0
        %849 = vmatpush1.bf16.msra.mxu0 0
        %850 = vmatprep.subr.bf16.mxu0 0
        %851 = vmatpush1.bf16.msra.mxu0 0
        %852 = vmatprep.mubr.bf16.mxu0 0
        %853 = vmatmul.mubr.bf16.gmra.mrb[0].mxu0 %v692
        %v854 = vpop.f32.mrb[0].mxu0
        %v855 = vadd.f32 0.0, %v854
        %v856 = vpop.f32.mrb[0].mxu0
        %v857 = vpop.f32.mrb[0].mxu0
        %v858 = vadd.f32 0.0, %v857
        %v859 = vpop.f32.mrb[0].mxu0
        %860 = vmatprep.mubr.bf16.mxu0 0
        %861 = vmatmul.mubr.bf16.gmra.mrb[0].mxu0 %v695
        %v862 = vpop.f32.mrb[0].mxu0
        %v863 = vadd.f32 0.0, %v862
        %v864 = vpop.f32.mrb[0].mxu0
        %v865 = vpop.f32.mrb[0].mxu0
        %v866 = vadd.f32 0.0, %v865
        %v867 = vpop.f32.mrb[0].mxu0
        %868 = vmatprep.mubr.bf16.mxu0 0
        %869 = vmatmul.mubr.bf16.gmra.mrb[0].mxu0 %v698
        %v870 = vpop.f32.mrb[0].mxu0
        %v871 = vadd.f32 0.0, %v870
        %v872 = vpop.f32.mrb[0].mxu0
        %v873 = vpop.f32.mrb[0].mxu0
        %v874 = vadd.f32 0.0, %v873
        %v875 = vpop.f32.mrb[0].mxu0
        %876 = vmatprep.mubr.bf16.mxu0 0
        %877 = vmatmul.mubr.bf16.gmra.mrb[0].mxu0 %v701
        %v878 = vpop.f32.mrb[0].mxu0
        %v879 = vadd.f32 0.0, %v878
        %v880 = vpop.f32.mrb[0].mxu0
        %v881 = vpop.f32.mrb[0].mxu0
        %v882 = vadd.f32 0.0, %v881
        %v883 = vpop.f32.mrb[0].mxu0
        %884 = vmatprep.mubr.bf16.mxu0 0
        %885 = vmatmul.mubr.bf16.gmra.mrb[0].mxu0 %v704
        %v886 = vpop.f32.mrb[0].mxu0
        %v887 = vadd.f32 0.0, %v886
        %v888 = vpop.f32.mrb[0].mxu0
        %v889 = vpop.f32.mrb[0].mxu0
        %v890 = vadd.f32 0.0, %v889
        %v891 = vpop.f32.mrb[0].mxu0
        %892 = vmatprep.mubr.bf16.mxu0 0
        %893 = vmatmul.mubr.bf16.gmra.mrb[0].mxu0 %v707
        %v894 = vpop.f32.mrb[0].mxu0
        %v895 = vadd.f32 0.0, %v894
        %v896 = vpop.f32.mrb[0].mxu0
        %v897 = vpop.f32.mrb[0].mxu0
        %v898 = vadd.f32 0.0, %v897
        %v899 = vpop.f32.mrb[0].mxu0
        %900 = vmatprep.mubr.bf16.mxu0 0
        %901 = vmatmul.mubr.bf16.gmra.mrb[0].mxu0 %v710
        %v902 = vpop.f32.mrb[0].mxu0
        %v903 = vadd.f32 0.0, %v902
        %v904 = vpop.f32.mrb[0].mxu0
        %v905 = vpop.f32.mrb[0].mxu0
        %v906 = vadd.f32 0.0, %v905
        %v907 = vpop.f32.mrb[0].mxu0
        %908 = vmatprep.mubr.bf16.mxu0 0
        %909 = vmatmul.mubr.bf16.gmra.mrb[0].mxu0 %v713
        %v910 = vpop.f32.mrb[0].mxu0
        %v911 = vadd.f32 0.0, %v910
        %v912 = vpop.f32.mrb[0].mxu0
        %v913 = vpop.f32.mrb[0].mxu0
        %v914 = vadd.f32 0.0, %v913
        %v915 = vpop.f32.mrb[0].mxu0
        %916 = vdwg.mxu0
        %vm917 = vcmask 7168
        %v918 = vsel %vm917, %v855, -inf
        %v919 = vsel %vm917, %v858, -inf
        %v920 = vsel %vm917, %v863, -inf
        %v921 = vmax.f32 %v918, %v920
        %v922 = vsel %vm917, %v866, -inf
        %v923 = vmax.f32 %v919, %v922
        %v924 = vsel %vm917, %v871, -inf
        %v925 = vmax.f32 %v921, %v924
        %v926 = vsel %vm917, %v874, -inf
        %v927 = vmax.f32 %v923, %v926
        %v928 = vsel %vm917, %v879, -inf
        %v929 = vmax.f32 %v925, %v928
        %v930 = vsel %vm917, %v882, -inf
        %v931 = vmax.f32 %v927, %v930
        %v932 = vmax.f32 %v929, %v931
        %v933 = vrot.slane %v932, 4
        %v934 = vmax.f32 %v932, %v933
        %v935 = vrot.slane %v934, 2
        %v936 = vmax.f32 %v934, %v935
        %v937 = vrot.slane %v936, 1
        %v938 = vmax.f32 %v936, %v937
        %v939 = vsel %vm917, %v887, -inf
        %v940 = vsel %vm917, %v890, -inf
        %v941 = vsel %vm917, %v895, -inf
        %v942 = vmax.f32 %v939, %v941
        %v943 = vsel %vm917, %v898, -inf
        %v944 = vmax.f32 %v940, %v943
        %v945 = vsel %vm917, %v903, -inf
        %v946 = vmax.f32 %v942, %v945
        %v947 = vsel %vm917, %v906, -inf
        %v948 = vmax.f32 %v944, %v947
        %v949 = vsel %vm917, %v911, -inf
        %v950 = vmax.f32 %v946, %v949
        %v951 = vsel %vm917, %v914, -inf
        %v952 = vmax.f32 %v948, %v951
        %v953 = vmax.f32 %v950, %v952
        %v954 = vrot.slane %v953, 4
        %v955 = vmax.f32 %v953, %v954
        %v956 = vrot.slane %v955, 2
        %v957 = vmax.f32 %v955, %v956
        %v958 = vrot.slane %v957, 1
        %v959 = vmax.f32 %v957, %v958
        %v960 = vsub.f32 %v855, %v938
        %v961 = vsub.f32 %v858, %v938
        %v962 = vsub.f32 %v863, %v938
        %v963 = vsub.f32 %v866, %v938
        %v964 = vsub.f32 %v871, %v938
        %v965 = vsub.f32 %v874, %v938
        %v966 = vsub.f32 %v879, %v938
        %v967 = vsub.f32 %v882, %v938
        %v968 = vsub.f32 %v887, %v959
        %v969 = vsub.f32 %v890, %v959
        %v970 = vsub.f32 %v895, %v959
        %v971 = vsub.f32 %v898, %v959
        %v972 = vsub.f32 %v903, %v959
        %v973 = vsub.f32 %v906, %v959
        %v974 = vsub.f32 %v911, %v959
        %v975 = vsub.f32 %v914, %v959
        %v976 = vmul.f32 %v960, 1.442695
        %v977 = vpow.pop %v976
        %v978 = vmul.f32 %v961, 1.442695
        %v979 = vpow.pop %v978
        %v980 = vmul.f32 %v962, 1.442695
        %v981 = vpow.pop %v980
        %v982 = vmul.f32 %v963, 1.442695
        %v983 = vpow.pop %v982
        %v984 = vmul.f32 %v964, 1.442695
        %v985 = vpow.pop %v984
        %v986 = vmul.f32 %v965, 1.442695
        %v987 = vpow.pop %v986
        %v988 = vmul.f32 %v966, 1.442695
        %v989 = vpow.pop %v988
        %v990 = vmul.f32 %v967, 1.442695
        %v991 = vpow.pop %v990
        %v992 = vmul.f32 %v968, 1.442695
        %v993 = vpow.pop %v992
        %v994 = vmul.f32 %v969, 1.442695
        %v995 = vpow.pop %v994
        %v996 = vmul.f32 %v970, 1.442695
        %v997 = vpow.pop %v996
        %v998 = vmul.f32 %v971, 1.442695
        %v999 = vpow.pop %v998
        %v1000 = vmul.f32 %v972, 1.442695
        %v1001 = vpow.pop %v1000
        %v1002 = vmul.f32 %v973, 1.442695
        %v1003 = vpow.pop %v1002
        %v1004 = vmul.f32 %v974, 1.442695
        %v1005 = vpow.pop %v1004
        %v1006 = vmul.f32 %v975, 1.442695
        %v1007 = vpow.pop %v1006
        %v1008 = vsel %vm917, %v977, 0.0
        %v1009 = vsel %vm917, %v979, 0.0
        %v1010 = vadd.f32 %v1008, %v1009
        %v1011 = vsel %vm917, %v981, 0.0
        %v1012 = vadd.f32 %v1010, %v1011
        %v1013 = vsel %vm917, %v983, 0.0
        %v1014 = vadd.f32 %v1012, %v1013
        %v1015 = vsel %vm917, %v985, 0.0
        %v1016 = vadd.f32 %v1014, %v1015
        %v1017 = vsel %vm917, %v987, 0.0
        %v1018 = vadd.f32 %v1016, %v1017
        %v1019 = vsel %vm917, %v989, 0.0
        %v1020 = vadd.f32 %v1018, %v1019
        %v1021 = vsel %vm917, %v991, 0.0
        %v1022 = vadd.f32 %v1020, %v1021
        %v1023 = vrot.slane %v1022, 4
        %v1024 = vadd.f32 %v1022, %v1023
        %v1025 = vrot.slane %v1024, 2
        %v1026 = vadd.f32 %v1024, %v1025
        %v1027 = vrot.slane %v1026, 1
        %v1028 = vadd.f32 %v1026, %v1027
        %v1029 = vsel %vm917, %v993, 0.0
        %v1030 = vsel %vm917, %v995, 0.0
        %v1031 = vadd.f32 %v1029, %v1030
        %v1032 = vsel %vm917, %v997, 0.0
        %v1033 = vadd.f32 %v1031, %v1032
        %v1034 = vsel %vm917, %v999, 0.0
        %v1035 = vadd.f32 %v1033, %v1034
        %v1036 = vsel %vm917, %v1001, 0.0
        %v1037 = vadd.f32 %v1035, %v1036
        %v1038 = vsel %vm917, %v1003, 0.0
        %v1039 = vadd.f32 %v1037, %v1038
        %v1040 = vsel %vm917, %v1005, 0.0
        %v1041 = vadd.f32 %v1039, %v1040
        %v1042 = vsel %vm917, %v1007, 0.0
        %v1043 = vadd.f32 %v1041, %v1042
        %v1044 = vrot.slane %v1043, 4
        %v1045 = vadd.f32 %v1043, %v1044
        %v1046 = vrot.slane %v1045, 2
        %v1047 = vadd.f32 %v1045, %v1046
        %v1048 = vrot.slane %v1047, 1
        %v1049 = vadd.f32 %v1047, %v1048
        %v1050 = vrcp.pop %v1028
        %v1051 = vrcp.pop %v1049
        %v1052 = vmul.f32 %v977, %v1050
        %v1053 = vmul.f32 %v979, %v1050
        %v1054 = vmul.f32 %v981, %v1050
        %v1055 = vmul.f32 %v983, %v1050
        %v1056 = vmul.f32 %v985, %v1050
        %v1057 = vmul.f32 %v987, %v1050
        %v1058 = vmul.f32 %v989, %v1050
        %v1059 = vmul.f32 %v991, %v1050
        %v1060 = vmul.f32 %v993, %v1051
        %v1061 = vmul.f32 %v995, %v1051
        %v1062 = vmul.f32 %v997, %v1051
        %v1063 = vmul.f32 %v999, %v1051
        %v1064 = vmul.f32 %v1001, %v1051
        %v1065 = vmul.f32 %v1003, %v1051
        %v1066 = vmul.f32 %v1005, %v1051
        %v1067 = vmul.f32 %v1007, %v1051
        %1069 = vset.pattern.permute.xlu0 0
        %1070 = vperm.xlu0 %1069, %v1052
        %v1071 = vpop.permute.xlu0 %1070
        %1074 = vset.pattern.permute.xlu0 0
        %1075 = vperm.xlu0 %1074, %v1053
        %v1076 = vpop.permute.xlu0 %1075
        %1079 = vset.pattern.permute.xlu0 0
        %1080 = vperm.xlu0 %1079, %v1054
        %v1081 = vpop.permute.xlu0 %1080
        %1084 = vset.pattern.permute.xlu0 0
        %1085 = vperm.xlu0 %1084, %v1055
        %v1086 = vpop.permute.xlu0 %1085
        %1089 = vset.pattern.permute.xlu0 0
        %1090 = vperm.xlu0 %1089, %v1056
        %v1091 = vpop.permute.xlu0 %1090
        %1094 = vset.pattern.permute.xlu0 0
        %1095 = vperm.xlu0 %1094, %v1057
        %v1096 = vpop.permute.xlu0 %1095
        %1099 = vset.pattern.permute.xlu0 0
        %1100 = vperm.xlu0 %1099, %v1058
        %v1101 = vpop.permute.xlu0 %1100
        %1104 = vset.pattern.permute.xlu0 0
        %1105 = vperm.xlu0 %1104, %v1059
        %v1106 = vpop.permute.xlu0 %1105
        %1109 = vset.pattern.permute.xlu0 0
        %1110 = vperm.xlu0 %1109, %v1060
        %v1111 = vpop.permute.xlu0 %1110
        %1114 = vset.pattern.permute.xlu0 0
        %1115 = vperm.xlu0 %1114, %v1061
        %v1116 = vpop.permute.xlu0 %1115
        %1119 = vset.pattern.permute.xlu0 0
        %1120 = vperm.xlu0 %1119, %v1062
        %v1121 = vpop.permute.xlu0 %1120
        %1124 = vset.pattern.permute.xlu0 0
        %1125 = vperm.xlu0 %1124, %v1063
        %v1126 = vpop.permute.xlu0 %1125
        %1129 = vset.pattern.permute.xlu0 0
        %1130 = vperm.xlu0 %1129, %v1064
        %v1131 = vpop.permute.xlu0 %1130
        %1134 = vset.pattern.permute.xlu0 0
        %1135 = vperm.xlu0 %1134, %v1065
        %v1136 = vpop.permute.xlu0 %1135
        %1139 = vset.pattern.permute.xlu0 0
        %1140 = vperm.xlu0 %1139, %v1066
        %v1141 = vpop.permute.xlu0 %1140
        %1144 = vset.pattern.permute.xlu0 0
        %1145 = vperm.xlu0 %1144, %v1067
        %v1146 = vpop.permute.xlu0 %1145
        %v1148 = vmul.f32 %v750, %v1071
        %v1149 = vmul.f32 %v753, %v1076
        %v1150 = vmul.f32 %v758, %v1081
        %v1151 = vmul.f32 %v761, %v1086
        %v1152 = vmul.f32 %v766, %v1091
        %v1153 = vmul.f32 %v769, %v1096
        %v1154 = vmul.f32 %v774, %v1101
        %v1155 = vmul.f32 %v777, %v1106
        %v1156 = vmul.f32 %v782, %v1111
        %v1157 = vmul.f32 %v785, %v1116
        %v1158 = vmul.f32 %v790, %v1121
        %v1159 = vmul.f32 %v793, %v1126
        %v1160 = vmul.f32 %v798, %v1131
        %v1161 = vmul.f32 %v801, %v1136
        %v1162 = vmul.f32 %v806, %v1141
        %v1163 = vmul.f32 %v809, %v1146
        %vm1164 = vcmask 64512
        %v1165 = vsel %vm1164, %v1148, 0.0
        %v1166 = vsel %vm1164, %v1149, 0.0
        %v1167 = vadd.f32 %v1165, %v1166
        %v1168 = vsel %vm1164, %v1150, 0.0
        %v1169 = vadd.f32 %v1167, %v1168
        %v1170 = vsel %vm1164, %v1151, 0.0
        %v1171 = vadd.f32 %v1169, %v1170
        %v1172 = vsel %vm1164, %v1152, 0.0
        %v1173 = vadd.f32 %v1171, %v1172
        %v1174 = vsel %vm1164, %v1153, 0.0
        %v1175 = vadd.f32 %v1173, %v1174
        %v1176 = vsel %vm1164, %v1154, 0.0
        %v1177 = vadd.f32 %v1175, %v1176
        %v1178 = vsel %vm1164, %v1155, 0.0
        %v1179 = vadd.f32 %v1177, %v1178
        %v1180 = vrot.slane %v1179, 4
        %v1181 = vadd.f32 %v1179, %v1180
        %v1182 = vrot.slane %v1181, 2
        %v1183 = vadd.f32 %v1181, %v1182
        %v1184 = vrot.slane %v1183, 1
        %v1185 = vadd.f32 %v1183, %v1184
        %v1186 = vsel %vm1164, %v1156, 0.0
        %v1187 = vsel %vm1164, %v1157, 0.0
        %v1188 = vadd.f32 %v1186, %v1187
        %v1189 = vsel %vm1164, %v1158, 0.0
        %v1190 = vadd.f32 %v1188, %v1189
        %v1191 = vsel %vm1164, %v1159, 0.0
        %v1192 = vadd.f32 %v1190, %v1191
        %v1193 = vsel %vm1164, %v1160, 0.0
        %v1194 = vadd.f32 %v1192, %v1193
        %v1195 = vsel %vm1164, %v1161, 0.0
        %v1196 = vadd.f32 %v1194, %v1195
        %v1197 = vsel %vm1164, %v1162, 0.0
        %v1198 = vadd.f32 %v1196, %v1197
        %v1199 = vsel %vm1164, %v1163, 0.0
        %v1200 = vadd.f32 %v1198, %v1199
        %v1201 = vrot.slane %v1200, 4
        %v1202 = vadd.f32 %v1200, %v1201
        %v1203 = vrot.slane %v1202, 2
        %v1204 = vadd.f32 %v1202, %v1203
        %v1205 = vrot.slane %v1204, 1
        %v1206 = vadd.f32 %v1204, %v1205
        %v1207 = vpack.c.bf16 %v1185, %v1185
        %v1208 = vpack.c.bf16 %v1206, %v1206
        %v1209 = vld [vmem:[%s4] sm:$0xf]
        %v1210 = vld [vmem:[%s10] sm:$0x1]
        %v1211 = vlaneseq
        %v1212 = vshrl.u32 %v1211, 7
        %v1213 = vsub.s32 0, %v1212
        %v1214 = vrot.slane %v1210, %v1213
        %v1217 = vunpack.c.l.b16 %v1207
        %v1218 = vunpack.c.l.b16 %v1208
        %vm1219 = vcmask 1041409
        %v1220 = vsel %vm1219, %v1218, %v1217
        %v1221 = vpack.c.b16 %v1220, %v1220
        %v1223 = vsel %vm1164, %v1221, 0
        %vm1225 = vcmask 1043456
        %v1227 = vsel %vm1225, %v1209, 0
        %1229 = vmatprep.subr.bf16.mxu0 0
        %1230 = vmatpush1.bf16.msra.mxu0 %v1227
        %1231 = vmatprep.subr.bf16.mxu0 0
        %1232 = vmatpush1.bf16.msra.mxu0 0
        %1233 = vmatprep.subr.bf16.mxu0 0
        %1234 = vmatpush1.bf16.msra.mxu0 0
        %1235 = vmatprep.subr.bf16.mxu0 0
        %1236 = vmatpush1.bf16.msra.mxu0 0
        %1237 = vmatprep.subr.bf16.mxu0 0
        %1238 = vmatpush1.bf16.msra.mxu0 0
        %1239 = vmatprep.subr.bf16.mxu0 0
        %1240 = vmatpush1.bf16.msra.mxu0 0
        %1241 = vmatprep.subr.bf16.mxu0 0
        %1242 = vmatpush1.bf16.msra.mxu0 0
        %1243 = vmatprep.subr.bf16.mxu0 0
        %1244 = vmatpush1.bf16.msra.mxu0 0
        %1245 = vmatprep.subr.bf16.mxu0 0
        %1246 = vmatpush1.bf16.msra.mxu0 0
        %1247 = vmatprep.subr.bf16.mxu0 0
        %1248 = vmatpush1.bf16.msra.mxu0 0
        %1249 = vmatprep.subr.bf16.mxu0 0
        %1250 = vmatpush1.bf16.msra.mxu0 0
        %1251 = vmatprep.subr.bf16.mxu0 0
        %1252 = vmatpush1.bf16.msra.mxu0 0
        %1253 = vmatprep.subr.bf16.mxu0 0
        %1254 = vmatpush1.bf16.msra.mxu0 0
        %1255 = vmatprep.subr.bf16.mxu0 0
        %1256 = vmatpush1.bf16.msra.mxu0 0
        %1257 = vmatprep.subr.bf16.mxu0 0
        %1258 = vmatpush1.bf16.msra.mxu0 0
        %1259 = vmatprep.subr.bf16.mxu0 0
        %1260 = vmatpush1.bf16.msra.mxu0 0
        %1261 = vmatprep.mubr.bf16.mxu0 0
        %1262 = vmatmul.mubr.bf16.gmra.mrb[0].mxu0 %v1223
        %v1263 = vpop.f32.mrb[0].mxu0
        %v1264 = vadd.f32 %v1214, %v1263
        %v1265 = vpop.f32.mrb[0].mxu0
        %v1266 = vpop.f32.mrb[0].mxu0
        %v1267 = vpop.f32.mrb[0].mxu0
        %1268 = vdwg.mxu0
        %vm1269 = vcmask 9216
        %v1270 = vsel %vm1269, %v1264, 0.0
        %1271 = vadd.xlane.f32.xlu0 %v1270
        %v1272 = vpop.xlane.xlu0 %1271
        %v1273 = vrcp.pop 2.0
        %v1274 = vmul.f32 %v1272, %v1273
        %v1275 = vsub.f32 %v1264, %v1274
        %v1276 = vmul.f32 %v1275, %v1275
        %v1277 = vsel %vm1269, %v1276, 0.0
        %1278 = vadd.xlane.f32.xlu0 %v1277
        %v1279 = vpop.xlane.xlu0 %1278
        %v1280 = vmul.f32 %v1279, %v1273
        %v1281 = vadd.f32 %v1280, 1e-05
        %v1282 = vrsqrt.pop %v1281
        %v1283 = vmul.f32 %v1275, %v1282
        %v1284 = vld [vmem:[%s10 + $0x1] sm:$0x1]
        %v1285 = vlaneseq
        %v1286 = vshrl.u32 %v1285, 7
        %v1287 = vsub.s32 0, %v1286
        %v1288 = vrot.slane %v1284, %v1287
        %v1289 = vmul.f32 %v1283, %v1288
        %v1290 = vld [vmem:[%s10 + $0x2] sm:$0x1]
        %v1291 = vlaneseq
        %v1292 = vshrl.u32 %v1291, 7
        %v1293 = vsub.s32 0, %v1292
        %v1294 = vrot.slane %v1290, %v1293
        %v1295 = vadd.f32 %v1289, %v1294
        %v1296 = vmax.f32 %v1295, 0.0
        %v1297 = vpack.c.bf16 %v1296, %v1296
        %v1298 = vld [vmem:[%s5] sm:$0x1]
        %v1299 = vld [vmem:[%s9 + $0x1] sm:$0x1]
        %v1300 = vlaneseq
        %v1301 = vshrl.u32 %v1300, 7
        %v1302 = vsub.s32 0, %v1301
        %v1303 = vrot.slane %v1299, %v1302
        %vm1304 = vcmask 15360
        %v1306 = vsel %vm1304, %v1297, 0
        %vm1308 = vcmask 1040384
        %v1310 = vsel %vm1308, %v1298, 0
        %1312 = vmatprep.subr.bf16.mxu0 0
        %1313 = vmatpush1.bf16.msra.mxu0 %v1310
        %1314 = vmatprep.subr.bf16.mxu0 0
        %1315 = vmatpush1.bf16.msra.mxu0 0
        %1316 = vmatprep.subr.bf16.mxu0 0
        %1317 = vmatpush1.bf16.msra.mxu0 0
        %1318 = vmatprep.subr.bf16.mxu0 0
        %1319 = vmatpush1.bf16.msra.mxu0 0
        %1320 = vmatprep.subr.bf16.mxu0 0
        %1321 = vmatpush1.bf16.msra.mxu0 0
        %1322 = vmatprep.subr.bf16.mxu0 0
        %1323 = vmatpush1.bf16.msra.mxu0 0
        %1324 = vmatprep.subr.bf16.mxu0 0
        %1325 = vmatpush1.bf16.msra.mxu0 0
        %1326 = vmatprep.subr.bf16.mxu0 0
        %1327 = vmatpush1.bf16.msra.mxu0 0
        %1328 = vmatprep.subr.bf16.mxu0 0
        %1329 = vmatpush1.bf16.msra.mxu0 0
        %1330 = vmatprep.subr.bf16.mxu0 0
        %1331 = vmatpush1.bf16.msra.mxu0 0
        %1332 = vmatprep.subr.bf16.mxu0 0
        %1333 = vmatpush1.bf16.msra.mxu0 0
        %1334 = vmatprep.subr.bf16.mxu0 0
        %1335 = vmatpush1.bf16.msra.mxu0 0
        %1336 = vmatprep.subr.bf16.mxu0 0
        %1337 = vmatpush1.bf16.msra.mxu0 0
        %1338 = vmatprep.subr.bf16.mxu0 0
        %1339 = vmatpush1.bf16.msra.mxu0 0
        %1340 = vmatprep.subr.bf16.mxu0 0
        %1341 = vmatpush1.bf16.msra.mxu0 0
        %1342 = vmatprep.subr.bf16.mxu0 0
        %1343 = vmatpush1.bf16.msra.mxu0 0
        %1344 = vmatprep.mubr.bf16.mxu0 0
        %1345 = vmatmul.mubr.bf16.gmra.mrb[0].mxu0 %v1306
        %v1346 = vpop.f32.mrb[0].mxu0
        %v1347 = vadd.f32 %v1303, %v1346
        %v1348 = vpop.f32.mrb[0].mxu0
        %v1349 = vpop.f32.mrb[0].mxu0
        %v1350 = vpop.f32.mrb[0].mxu0
        %1351 = vdwg.mxu0
        %v1352 = vxor.u32 %v1347, 2147483648
        %v1353 = vmul.f32 %v1352, 1.442695
        %v1354 = vpow.pop %v1353
        %v1355 = vadd.f32 %v1354, 1.0
        %v1356 = vrcp.pop %v1355
        %v1357 = vmul.f32 1.0, %v1356
        %v1360 = vunpack.c.l.s4 1966171168
        %v1361 = vunpack.c.0.s8 %v1360
        %v1362 = vlaneseq
        %v1363 = vshrl.u32 %v1362, 7
        %v1364 = vsub.s32 %v1361, %v1363
        %v1365 = vrot.slane %v1357, %v1364
        %v1366 = vcombine.high %v1365, %v1365
        %v1368 = vunpack.c.l.s4 1966171168
        %v1369 = vunpack.c.0.s8 %v1368
        %v1370 = vlaneseq
        %v1371 = vshrl.u32 %v1370, 7
        %v1372 = vsub.s32 %v1369, %v1371
        %v1373 = vrot.slane %v1365, %v1372
        %v1375 = vunpack.c.l.s4 1966171168
        %v1376 = vunpack.c.0.s8 %v1375
        %v1377 = vlaneseq
        %v1378 = vshrl.u32 %v1377, 7
        %v1379 = vsub.s32 %v1376, %v1378
        %v1380 = vrot.slane %v1366, %v1379
        %v1381 = vlaneseq
        %v1382 = vshrl.u32 %v1381, 7
        %v1383 = vsub.s32 0, %v1382
        %v1384 = vrot.slane %v1373, %v1383
        %v1385 = vlaneseq
        %v1386 = vshrl.u32 %v1385, 7
        %v1387 = vsub.s32 0, %v1386
        %v1388 = vrot.slane %v1380, %v1387
        %v1391 = vmul.f32 %v659, %v1384
        %v1392 = vmul.f32 %v660, %v1384
        %v1393 = vmul.f32 %v661, %v1384
        %v1394 = vmul.f32 %v662, %v1384
        %v1395 = vmul.f32 %v663, %v1384
        %v1396 = vmul.f32 %v664, %v1384
        %v1397 = vmul.f32 %v665, %v1384
        %v1398 = vmul.f32 %v666, %v1384
        %v1399 = vmul.f32 %v667, %v1388
        %v1400 = vmul.f32 %v668, %v1388
        %v1401 = vmul.f32 %v669, %v1388
        %v1402 = vmul.f32 %v670, %v1388
        %v1403 = vmul.f32 %v671, %v1388
        %v1404 = vmul.f32 %v672, %v1388
        %v1405 = vmul.f32 %v673, %v1388
        %v1406 = vmul.f32 %v674, %v1388
        %v1407 = vpack.c.bf16 %v1392, %v1391
        %v1408 = vpack.c.bf16 %v1394, %v1393
        %v1409 = vpack.c.bf16 %v1396, %v1395
        %v1410 = vpack.c.bf16 %v1398, %v1397
        %v1411 = vpack.c.bf16 %v1400, %v1399
        %v1412 = vpack.c.bf16 %v1402, %v1401
        %v1413 = vpack.c.bf16 %v1404, %v1403
        %v1414 = vpack.c.bf16 %v1406, %v1405
        %v1415 = vld [vmem:[%s6] sm:$0xf]
        %v1416 = vld [vmem:[%s6 + $0x4] sm:$0xf]
        %v1419 = vunpack.c.l.b16 %v1415
        %v1420 = vunpack.c.l.b16 %v1416
        %v1421 = vpack.c.b16 %v1420, %v1419
        %v1424 = vsel %vm504, %v1407, 0
        %v1427 = vsel %vm504, %v1408, 0
        %v1430 = vsel %vm504, %v1409, 0
        %v1433 = vsel %vm504, %v1410, 0
        %v1436 = vsel %vm504, %v1411, 0
        %v1439 = vsel %vm504, %v1412, 0
        %v1442 = vsel %vm504, %v1413, 0
        %v1445 = vsel %vm504, %v1414, 0
        %1447 = vmatprep.subr.bf16.mxu0 0
        %1448 = vmatpush1.bf16.msra.mxu0 %v1421
        %1449 = vmatprep.subr.bf16.mxu0 0
        %1450 = vmatpush1.bf16.msra.mxu0 0
        %1451 = vmatprep.subr.bf16.mxu0 0
        %1452 = vmatpush1.bf16.msra.mxu0 0
        %1453 = vmatprep.subr.bf16.mxu0 0
        %1454 = vmatpush1.bf16.msra.mxu0 0
        %1455 = vmatprep.subr.bf16.mxu0 0
        %1456 = vmatpush1.bf16.msra.mxu0 0
        %1457 = vmatprep.subr.bf16.mxu0 0
        %1458 = vmatpush1.bf16.msra.mxu0 0
        %1459 = vmatprep.subr.bf16.mxu0 0
        %1460 = vmatpush1.bf16.msra.mxu0 0
        %1461 = vmatprep.subr.bf16.mxu0 0
        %1462 = vmatpush1.bf16.msra.mxu0 0
        %1463 = vmatprep.subr.bf16.mxu0 0
        %1464 = vmatpush1.bf16.msra.mxu0 0
        %1465 = vmatprep.subr.bf16.mxu0 0
        %1466 = vmatpush1.bf16.msra.mxu0 0
        %1467 = vmatprep.subr.bf16.mxu0 0
        %1468 = vmatpush1.bf16.msra.mxu0 0
        %1469 = vmatprep.subr.bf16.mxu0 0
        %1470 = vmatpush1.bf16.msra.mxu0 0
        %1471 = vmatprep.subr.bf16.mxu0 0
        %1472 = vmatpush1.bf16.msra.mxu0 0
        %1473 = vmatprep.subr.bf16.mxu0 0
        %1474 = vmatpush1.bf16.msra.mxu0 0
        %1475 = vmatprep.subr.bf16.mxu0 0
        %1476 = vmatpush1.bf16.msra.mxu0 0
        %1477 = vmatprep.subr.bf16.mxu0 0
        %1478 = vmatpush1.bf16.msra.mxu0 0
        %1479 = vmatprep.mubr.bf16.mxu0 0
        %1480 = vmatmul.mubr.bf16.gmra.mrb[0].mxu0 %v1424
        %v1481 = vpop.f32.mrb[0].mxu0
        %v1482 = vadd.f32 0.0, %v1481
        %v1483 = vpop.f32.mrb[0].mxu0
        %v1484 = vpop.f32.mrb[0].mxu0
        %v1485 = vadd.f32 0.0, %v1484
        %v1486 = vpop.f32.mrb[0].mxu0
        %1487 = vmatprep.mubr.bf16.mxu0 0
        %1488 = vmatmul.mubr.bf16.gmra.mrb[0].mxu0 %v1427
        %v1489 = vpop.f32.mrb[0].mxu0
        %v1490 = vadd.f32 0.0, %v1489
        %v1491 = vpop.f32.mrb[0].mxu0
        %v1492 = vpop.f32.mrb[0].mxu0
        %v1493 = vadd.f32 0.0, %v1492
        %v1494 = vpop.f32.mrb[0].mxu0
        %1495 = vmatprep.mubr.bf16.mxu0 0
        %1496 = vmatmul.mubr.bf16.gmra.mrb[0].mxu0 %v1430
        %v1497 = vpop.f32.mrb[0].mxu0
        %v1498 = vadd.f32 0.0, %v1497
        %v1499 = vpop.f32.mrb[0].mxu0
        %v1500 = vpop.f32.mrb[0].mxu0
        %v1501 = vadd.f32 0.0, %v1500
        %v1502 = vpop.f32.mrb[0].mxu0
        %1503 = vmatprep.mubr.bf16.mxu0 0
        %1504 = vmatmul.mubr.bf16.gmra.mrb[0].mxu0 %v1433
        %v1505 = vpop.f32.mrb[0].mxu0
        %v1506 = vadd.f32 0.0, %v1505
        %v1507 = vpop.f32.mrb[0].mxu0
        %v1508 = vpop.f32.mrb[0].mxu0
        %v1509 = vadd.f32 0.0, %v1508
        %v1510 = vpop.f32.mrb[0].mxu0
        %1511 = vmatprep.mubr.bf16.mxu0 0
        %1512 = vmatmul.mubr.bf16.gmra.mrb[0].mxu0 %v1436
        %v1513 = vpop.f32.mrb[0].mxu0
        %v1514 = vadd.f32 0.0, %v1513
        %v1515 = vpop.f32.mrb[0].mxu0
        %v1516 = vpop.f32.mrb[0].mxu0
        %v1517 = vadd.f32 0.0, %v1516
        %v1518 = vpop.f32.mrb[0].mxu0
        %1519 = vmatprep.mubr.bf16.mxu0 0
        %1520 = vmatmul.mubr.bf16.gmra.mrb[0].mxu0 %v1439
        %v1521 = vpop.f32.mrb[0].mxu0
        %v1522 = vadd.f32 0.0, %v1521
        %v1523 = vpop.f32.mrb[0].mxu0
        %v1524 = vpop.f32.mrb[0].mxu0
        %v1525 = vadd.f32 0.0, %v1524
        %v1526 = vpop.f32.mrb[0].mxu0
        %1527 = vmatprep.mubr.bf16.mxu0 0
        %1528 = vmatmul.mubr.bf16.gmra.mrb[0].mxu0 %v1442
        %v1529 = vpop.f32.mrb[0].mxu0
        %v1530 = vadd.f32 0.0, %v1529
        %v1531 = vpop.f32.mrb[0].mxu0
        %v1532 = vpop.f32.mrb[0].mxu0
        %v1533 = vadd.f32 0.0, %v1532
        %v1534 = vpop.f32.mrb[0].mxu0
        %1535 = vmatprep.mubr.bf16.mxu0 0
        %1536 = vmatmul.mubr.bf16.gmra.mrb[0].mxu0 %v1445
        %v1537 = vpop.f32.mrb[0].mxu0
        %v1538 = vadd.f32 0.0, %v1537
        %v1539 = vpop.f32.mrb[0].mxu0
        %v1540 = vpop.f32.mrb[0].mxu0
        %v1541 = vadd.f32 0.0, %v1540
        %v1542 = vpop.f32.mrb[0].mxu0
        %1543 = vdwg.mxu0
        %v1544 = vsel %vm1164, %v1482, 0.0
        %v1545 = vsel %vm1164, %v1485, 0.0
        %v1546 = vadd.f32 %v1544, %v1545
        %v1547 = vsel %vm1164, %v1490, 0.0
        %v1548 = vadd.f32 %v1546, %v1547
        %v1549 = vsel %vm1164, %v1493, 0.0
        %v1550 = vadd.f32 %v1548, %v1549
        %v1551 = vsel %vm1164, %v1498, 0.0
        %v1552 = vadd.f32 %v1550, %v1551
        %v1553 = vsel %vm1164, %v1501, 0.0
        %v1554 = vadd.f32 %v1552, %v1553
        %v1555 = vsel %vm1164, %v1506, 0.0
        %v1556 = vadd.f32 %v1554, %v1555
        %v1557 = vsel %vm1164, %v1509, 0.0
        %v1558 = vadd.f32 %v1556, %v1557
        %v1559 = vrot.slane %v1558, 4
        %v1560 = vadd.f32 %v1558, %v1559
        %v1561 = vrot.slane %v1560, 2
        %v1562 = vadd.f32 %v1560, %v1561
        %v1563 = vrot.slane %v1562, 1
        %v1564 = vadd.f32 %v1562, %v1563
        %v1565 = vsel %vm1164, %v1514, 0.0
        %v1566 = vsel %vm1164, %v1517, 0.0
        %v1567 = vadd.f32 %v1565, %v1566
        %v1568 = vsel %vm1164, %v1522, 0.0
        %v1569 = vadd.f32 %v1567, %v1568
        %v1570 = vsel %vm1164, %v1525, 0.0
        %v1571 = vadd.f32 %v1569, %v1570
        %v1572 = vsel %vm1164, %v1530, 0.0
        %v1573 = vadd.f32 %v1571, %v1572
        %v1574 = vsel %vm1164, %v1533, 0.0
        %v1575 = vadd.f32 %v1573, %v1574
        %v1576 = vsel %vm1164, %v1538, 0.0
        %v1577 = vadd.f32 %v1575, %v1576
        %v1578 = vsel %vm1164, %v1541, 0.0
        %v1579 = vadd.f32 %v1577, %v1578
        %v1580 = vrot.slane %v1579, 4
        %v1581 = vadd.f32 %v1579, %v1580
        %v1582 = vrot.slane %v1581, 2
        %v1583 = vadd.f32 %v1581, %v1582
        %v1584 = vrot.slane %v1583, 1
        %v1585 = vadd.f32 %v1583, %v1584
        %v1586 = vrcp.pop 64.0
        %v1587 = vmul.f32 %v1564, %v1586
        %v1588 = vmul.f32 %v1585, %v1586
        %v1589 = vsel %vm1164, %v1587, -inf
        %1590 = vmax.xlane.f32.xlu0 %v1589
        %v1591 = vpop.xlane.xlu0 %1590
        %v1592 = vsel %vm1164, %v1588, -inf
        %1593 = vmax.xlane.f32.xlu0 %v1592
        %v1594 = vpop.xlane.xlu0 %1593
        %v1595 = vsub.f32 %v1587, %v1591
        %v1596 = vsub.f32 %v1588, %v1594
        %v1597 = vmul.f32 %v1595, 1.442695
        %v1598 = vpow.pop %v1597
        %v1599 = vmul.f32 %v1596, 1.442695
        %v1600 = vpow.pop %v1599
        %v1601 = vsel %vm1164, %v1598, 0.0
        %1602 = vadd.xlane.f32.xlu0 %v1601
        %v1603 = vpop.xlane.xlu0 %1602
        %v1604 = vsel %vm1164, %v1600, 0.0
        %1605 = vadd.xlane.f32.xlu0 %v1604
        %v1606 = vpop.xlane.xlu0 %1605
        %v1607 = vrcp.pop %v1603
        %v1608 = vrcp.pop %v1606
        %v1609 = vmul.f32 %v1598, %v1607
        %v1610 = vmul.f32 %v1600, %v1608
        %v1611 = vld [vmem:[%s7] sm:$0xf]
        %v1612 = vld [vmem:[%s7 + $0x4] sm:$0xf]
        %v1615 = vunpack.c.l.b16 %v1611
        %v1616 = vunpack.c.l.b16 %v1612
        %v1617 = vpack.c.b16 %v1616, %v1615
        %1619 = vmatprep.subr.bf16.mxu0 0
        %1620 = vmatpush1.bf16.msra.mxu0 %v1617
        %1621 = vmatprep.subr.bf16.mxu0 0
        %1622 = vmatpush1.bf16.msra.mxu0 0
        %1623 = vmatprep.subr.bf16.mxu0 0
        %1624 = vmatpush1.bf16.msra.mxu0 0
        %1625 = vmatprep.subr.bf16.mxu0 0
        %1626 = vmatpush1.bf16.msra.mxu0 0
        %1627 = vmatprep.subr.bf16.mxu0 0
        %1628 = vmatpush1.bf16.msra.mxu0 0
        %1629 = vmatprep.subr.bf16.mxu0 0
        %1630 = vmatpush1.bf16.msra.mxu0 0
        %1631 = vmatprep.subr.bf16.mxu0 0
        %1632 = vmatpush1.bf16.msra.mxu0 0
        %1633 = vmatprep.subr.bf16.mxu0 0
        %1634 = vmatpush1.bf16.msra.mxu0 0
        %1635 = vmatprep.subr.bf16.mxu0 0
        %1636 = vmatpush1.bf16.msra.mxu0 0
        %1637 = vmatprep.subr.bf16.mxu0 0
        %1638 = vmatpush1.bf16.msra.mxu0 0
        %1639 = vmatprep.subr.bf16.mxu0 0
        %1640 = vmatpush1.bf16.msra.mxu0 0
        %1641 = vmatprep.subr.bf16.mxu0 0
        %1642 = vmatpush1.bf16.msra.mxu0 0
        %1643 = vmatprep.subr.bf16.mxu0 0
        %1644 = vmatpush1.bf16.msra.mxu0 0
        %1645 = vmatprep.subr.bf16.mxu0 0
        %1646 = vmatpush1.bf16.msra.mxu0 0
        %1647 = vmatprep.subr.bf16.mxu0 0
        %1648 = vmatpush1.bf16.msra.mxu0 0
        %1649 = vmatprep.subr.bf16.mxu0 0
        %1650 = vmatpush1.bf16.msra.mxu0 0
        %1651 = vmatprep.mubr.bf16.mxu0 0
        %1652 = vmatmul.mubr.bf16.gmra.mrb[0].mxu0 %v1424
        %v1653 = vpop.f32.mrb[0].mxu0
        %v1654 = vadd.f32 0.0, %v1653
        %v1655 = vpop.f32.mrb[0].mxu0
        %v1656 = vpop.f32.mrb[0].mxu0
        %v1657 = vadd.f32 0.0, %v1656
        %v1658 = vpop.f32.mrb[0].mxu0
        %1659 = vmatprep.mubr.bf16.mxu0 0
        %1660 = vmatmul.mubr.bf16.gmra.mrb[0].mxu0 %v1427
        %v1661 = vpop.f32.mrb[0].mxu0
        %v1662 = vadd.f32 0.0, %v1661
        %v1663 = vpop.f32.mrb[0].mxu0
        %v1664 = vpop.f32.mrb[0].mxu0
        %v1665 = vadd.f32 0.0, %v1664
        %v1666 = vpop.f32.mrb[0].mxu0
        %1667 = vmatprep.mubr.bf16.mxu0 0
        %1668 = vmatmul.mubr.bf16.gmra.mrb[0].mxu0 %v1430
        %v1669 = vpop.f32.mrb[0].mxu0
        %v1670 = vadd.f32 0.0, %v1669
        %v1671 = vpop.f32.mrb[0].mxu0
        %v1672 = vpop.f32.mrb[0].mxu0
        %v1673 = vadd.f32 0.0, %v1672
        %v1674 = vpop.f32.mrb[0].mxu0
        %1675 = vmatprep.mubr.bf16.mxu0 0
        %1676 = vmatmul.mubr.bf16.gmra.mrb[0].mxu0 %v1433
        %v1677 = vpop.f32.mrb[0].mxu0
        %v1678 = vadd.f32 0.0, %v1677
        %v1679 = vpop.f32.mrb[0].mxu0
        %v1680 = vpop.f32.mrb[0].mxu0
        %v1681 = vadd.f32 0.0, %v1680
        %v1682 = vpop.f32.mrb[0].mxu0
        %1683 = vmatprep.mubr.bf16.mxu0 0
        %1684 = vmatmul.mubr.bf16.gmra.mrb[0].mxu0 %v1436
        %v1685 = vpop.f32.mrb[0].mxu0
        %v1686 = vadd.f32 0.0, %v1685
        %v1687 = vpop.f32.mrb[0].mxu0
        %v1688 = vpop.f32.mrb[0].mxu0
        %v1689 = vadd.f32 0.0, %v1688
        %v1690 = vpop.f32.mrb[0].mxu0
        %1691 = vmatprep.mubr.bf16.mxu0 0
        %1692 = vmatmul.mubr.bf16.gmra.mrb[0].mxu0 %v1439
        %v1693 = vpop.f32.mrb[0].mxu0
        %v1694 = vadd.f32 0.0, %v1693
        %v1695 = vpop.f32.mrb[0].mxu0
        %v1696 = vpop.f32.mrb[0].mxu0
        %v1697 = vadd.f32 0.0, %v1696
        %v1698 = vpop.f32.mrb[0].mxu0
        %1699 = vmatprep.mubr.bf16.mxu0 0
        %1700 = vmatmul.mubr.bf16.gmra.mrb[0].mxu0 %v1442
        %v1701 = vpop.f32.mrb[0].mxu0
        %v1702 = vadd.f32 0.0, %v1701
        %v1703 = vpop.f32.mrb[0].mxu0
        %v1704 = vpop.f32.mrb[0].mxu0
        %v1705 = vadd.f32 0.0, %v1704
        %v1706 = vpop.f32.mrb[0].mxu0
        %1707 = vmatprep.mubr.bf16.mxu0 0
        %1708 = vmatmul.mubr.bf16.gmra.mrb[0].mxu0 %v1445
        %v1709 = vpop.f32.mrb[0].mxu0
        %v1710 = vadd.f32 0.0, %v1709
        %v1711 = vpop.f32.mrb[0].mxu0
        %v1712 = vpop.f32.mrb[0].mxu0
        %v1713 = vadd.f32 0.0, %v1712
        %v1714 = vpop.f32.mrb[0].mxu0
        %1715 = vdwg.mxu0
        %v1716 = vpack.c.bf16 %v1657, %v1654
        %v1717 = vpack.c.bf16 %v1665, %v1662
        %v1718 = vpack.c.bf16 %v1673, %v1670
        %v1719 = vpack.c.bf16 %v1681, %v1678
        %v1720 = vpack.c.bf16 %v1689, %v1686
        %v1721 = vpack.c.bf16 %v1697, %v1694
        %v1722 = vpack.c.bf16 %v1705, %v1702
        %v1723 = vpack.c.bf16 %v1713, %v1710
        %v1724 = vpack.c.bf16 %v1609, %v1609
        %v1725 = vpack.c.bf16 %v1610, %v1610
        %v1727 = vsel %vm1164, %v1716, 0
        %v1730 = vsel %vm1164, %v1717, 0
        %v1733 = vsel %vm1164, %v1718, 0
        %v1736 = vsel %vm1164, %v1719, 0
        %v1739 = vsel %vm1164, %v1724, 0
        %1741 = vmatprep.subr.bf16.mxu0 0
        %1742 = vmatpush1.bf16.xpose.msra.mxu0 %v1739
        %1743 = vmatprep.subr.bf16.mxu0 0
        %1744 = vmatpush1.bf16.xpose.msra.mxu0 0
        %1745 = vmatprep.subr.bf16.mxu0 0
        %1746 = vmatpush1.bf16.xpose.msra.mxu0 0
        %1747 = vmatprep.subr.bf16.mxu0 0
        %1748 = vmatpush1.bf16.xpose.msra.mxu0 0
        %1749 = vmatprep.subr.bf16.mxu0 0
        %1750 = vmatpush1.bf16.xpose.msra.mxu0 0
        %1751 = vmatprep.subr.bf16.mxu0 0
        %1752 = vmatpush1.bf16.xpose.msra.mxu0 0
        %1753 = vmatprep.subr.bf16.mxu0 0
        %1754 = vmatpush1.bf16.xpose.msra.mxu0 0
        %1755 = vmatprep.subr.bf16.mxu0 0
        %1756 = vmatpush1.bf16.xpose.msra.mxu0 0
        %1757 = vmatprep.subr.bf16.mxu0 0
        %1758 = vmatpush1.bf16.xpose.msra.mxu0 0
        %1759 = vmatprep.subr.bf16.mxu0 0
        %1760 = vmatpush1.bf16.xpose.msra.mxu0 0
        %1761 = vmatprep.subr.bf16.mxu0 0
        %1762 = vmatpush1.bf16.xpose.msra.mxu0 0
        %1763 = vmatprep.subr.bf16.mxu0 0
        %1764 = vmatpush1.bf16.xpose.msra.mxu0 0
        %1765 = vmatprep.subr.bf16.mxu0 0
        %1766 = vmatpush1.bf16.xpose.msra.mxu0 0
        %1767 = vmatprep.subr.bf16.mxu0 0
        %1768 = vmatpush1.bf16.xpose.msra.mxu0 0
        %1769 = vmatprep.subr.bf16.mxu0 0
        %1770 = vmatpush1.bf16.xpose.msra.mxu0 0
        %1771 = vmatprep.subr.bf16.mxu0 0
        %1772 = vmatpush1.bf16.xpose.msra.mxu0 0
        %1773 = vmatprep.mubr.bf16.mxu0 0
        %1774 = vmatmul.mubr.bf16.gmra.mrb[0].mxu0 %v1727
        %v1775 = vpop.f32.mrb[0].mxu0
        %v1776 = vadd.f32 0.0, %v1775
        %v1777 = vpop.f32.mrb[0].mxu0
        %v1778 = vpop.f32.mrb[0].mxu0
        %v1779 = vadd.f32 0.0, %v1778
        %v1780 = vpop.f32.mrb[0].mxu0
        %1781 = vmatprep.mubr.bf16.mxu0 0
        %1782 = vmatmul.mubr.bf16.gmra.mrb[0].mxu0 %v1730
        %v1783 = vpop.f32.mrb[0].mxu0
        %v1784 = vadd.f32 0.0, %v1783
        %v1785 = vpop.f32.mrb[0].mxu0
        %v1786 = vpop.f32.mrb[0].mxu0
        %v1787 = vadd.f32 0.0, %v1786
        %v1788 = vpop.f32.mrb[0].mxu0
        %1789 = vmatprep.mubr.bf16.mxu0 0
        %1790 = vmatmul.mubr.bf16.gmra.mrb[0].mxu0 %v1733
        %v1791 = vpop.f32.mrb[0].mxu0
        %v1792 = vadd.f32 0.0, %v1791
        %v1793 = vpop.f32.mrb[0].mxu0
        %v1794 = vpop.f32.mrb[0].mxu0
        %v1795 = vadd.f32 0.0, %v1794
        %v1796 = vpop.f32.mrb[0].mxu0
        %1797 = vmatprep.mubr.bf16.mxu0 0
        %1798 = vmatmul.mubr.bf16.gmra.mrb[0].mxu0 %v1736
        %v1799 = vpop.f32.mrb[0].mxu0
        %v1800 = vadd.f32 0.0, %v1799
        %v1801 = vpop.f32.mrb[0].mxu0
        %v1802 = vpop.f32.mrb[0].mxu0
        %v1803 = vadd.f32 0.0, %v1802
        %v1804 = vpop.f32.mrb[0].mxu0
        %1805 = vdwg.mxu0
        %v1807 = vsel %vm1164, %v1720, 0
        %v1810 = vsel %vm1164, %v1721, 0
        %v1813 = vsel %vm1164, %v1722, 0
        %v1816 = vsel %vm1164, %v1723, 0
        %v1819 = vsel %vm1164, %v1725, 0
        %1821 = vmatprep.subr.bf16.mxu0 0
        %1822 = vmatpush1.bf16.xpose.msra.mxu0 %v1819
        %1823 = vmatprep.subr.bf16.mxu0 0
        %1824 = vmatpush1.bf16.xpose.msra.mxu0 0
        %1825 = vmatprep.subr.bf16.mxu0 0
        %1826 = vmatpush1.bf16.xpose.msra.mxu0 0
        %1827 = vmatprep.subr.bf16.mxu0 0
        %1828 = vmatpush1.bf16.xpose.msra.mxu0 0
        %1829 = vmatprep.subr.bf16.mxu0 0
        %1830 = vmatpush1.bf16.xpose.msra.mxu0 0
        %1831 = vmatprep.subr.bf16.mxu0 0
        %1832 = vmatpush1.bf16.xpose.msra.mxu0 0
        %1833 = vmatprep.subr.bf16.mxu0 0
        %1834 = vmatpush1.bf16.xpose.msra.mxu0 0
        %1835 = vmatprep.subr.bf16.mxu0 0
        %1836 = vmatpush1.bf16.xpose.msra.mxu0 0
        %1837 = vmatprep.subr.bf16.mxu0 0
        %1838 = vmatpush1.bf16.xpose.msra.mxu0 0
        %1839 = vmatprep.subr.bf16.mxu0 0
        %1840 = vmatpush1.bf16.xpose.msra.mxu0 0
        %1841 = vmatprep.subr.bf16.mxu0 0
        %1842 = vmatpush1.bf16.xpose.msra.mxu0 0
        %1843 = vmatprep.subr.bf16.mxu0 0
        %1844 = vmatpush1.bf16.xpose.msra.mxu0 0
        %1845 = vmatprep.subr.bf16.mxu0 0
        %1846 = vmatpush1.bf16.xpose.msra.mxu0 0
        %1847 = vmatprep.subr.bf16.mxu0 0
        %1848 = vmatpush1.bf16.xpose.msra.mxu0 0
        %1849 = vmatprep.subr.bf16.mxu0 0
        %1850 = vmatpush1.bf16.xpose.msra.mxu0 0
        %1851 = vmatprep.subr.bf16.mxu0 0
        %1852 = vmatpush1.bf16.xpose.msra.mxu0 0
        %1853 = vmatprep.mubr.bf16.mxu0 0
        %1854 = vmatmul.mubr.bf16.gmra.mrb[0].mxu0 %v1807
        %v1855 = vpop.f32.mrb[0].mxu0
        %v1856 = vadd.f32 0.0, %v1855
        %v1857 = vpop.f32.mrb[0].mxu0
        %v1858 = vpop.f32.mrb[0].mxu0
        %v1859 = vadd.f32 0.0, %v1858
        %v1860 = vpop.f32.mrb[0].mxu0
        %1861 = vmatprep.mubr.bf16.mxu0 0
        %1862 = vmatmul.mubr.bf16.gmra.mrb[0].mxu0 %v1810
        %v1863 = vpop.f32.mrb[0].mxu0
        %v1864 = vadd.f32 0.0, %v1863
        %v1865 = vpop.f32.mrb[0].mxu0
        %v1866 = vpop.f32.mrb[0].mxu0
        %v1867 = vadd.f32 0.0, %v1866
        %v1868 = vpop.f32.mrb[0].mxu0
        %1869 = vmatprep.mubr.bf16.mxu0 0
        %1870 = vmatmul.mubr.bf16.gmra.mrb[0].mxu0 %v1813
        %v1871 = vpop.f32.mrb[0].mxu0
        %v1872 = vadd.f32 0.0, %v1871
        %v1873 = vpop.f32.mrb[0].mxu0
        %v1874 = vpop.f32.mrb[0].mxu0
        %v1875 = vadd.f32 0.0, %v1874
        %v1876 = vpop.f32.mrb[0].mxu0
        %1877 = vmatprep.mubr.bf16.mxu0 0
        %1878 = vmatmul.mubr.bf16.gmra.mrb[0].mxu0 %v1816
        %v1879 = vpop.f32.mrb[0].mxu0
        %v1880 = vadd.f32 0.0, %v1879
        %v1881 = vpop.f32.mrb[0].mxu0
        %v1882 = vpop.f32.mrb[0].mxu0
        %v1883 = vadd.f32 0.0, %v1882
        %v1884 = vpop.f32.mrb[0].mxu0
        %1885 = vdwg.mxu0
        %v1886 = vxor.u32 %v1776, 2147483648
        %v1887 = vxor.u32 %v1779, 2147483648
        %v1888 = vxor.u32 %v1784, 2147483648
        %v1889 = vxor.u32 %v1787, 2147483648
        %v1890 = vxor.u32 %v1792, 2147483648
        %v1891 = vxor.u32 %v1795, 2147483648
        %v1892 = vxor.u32 %v1800, 2147483648
        %v1893 = vxor.u32 %v1803, 2147483648
        %v1894 = vxor.u32 %v1856, 2147483648
        %v1895 = vxor.u32 %v1859, 2147483648
        %v1896 = vxor.u32 %v1864, 2147483648
        %v1897 = vxor.u32 %v1867, 2147483648
        %v1898 = vxor.u32 %v1872, 2147483648
        %v1899 = vxor.u32 %v1875, 2147483648
        %v1900 = vxor.u32 %v1880, 2147483648
        %v1901 = vxor.u32 %v1883, 2147483648
        %v1902 = vmul.f32 %v1886, 1.442695
        %v1903 = vpow.pop %v1902
        %v1904 = vmul.f32 %v1887, 1.442695
        %v1905 = vpow.pop %v1904
        %v1906 = vmul.f32 %v1888, 1.442695
        %v1907 = vpow.pop %v1906
        %v1908 = vmul.f32 %v1889, 1.442695
        %v1909 = vpow.pop %v1908
        %v1910 = vmul.f32 %v1890, 1.442695
        %v1911 = vpow.pop %v1910
        %v1912 = vmul.f32 %v1891, 1.442695
        %v1913 = vpow.pop %v1912
        %v1914 = vmul.f32 %v1892, 1.442695
        %v1915 = vpow.pop %v1914
        %v1916 = vmul.f32 %v1893, 1.442695
        %v1917 = vpow.pop %v1916
        %v1918 = vmul.f32 %v1894, 1.442695
        %v1919 = vpow.pop %v1918
        %v1920 = vmul.f32 %v1895, 1.442695
        %v1921 = vpow.pop %v1920
        %v1922 = vmul.f32 %v1896, 1.442695
        %v1923 = vpow.pop %v1922
        %v1924 = vmul.f32 %v1897, 1.442695
        %v1925 = vpow.pop %v1924
        %v1926 = vmul.f32 %v1898, 1.442695
        %v1927 = vpow.pop %v1926
        %v1928 = vmul.f32 %v1899, 1.442695
        %v1929 = vpow.pop %v1928
        %v1930 = vmul.f32 %v1900, 1.442695
        %v1931 = vpow.pop %v1930
        %v1932 = vmul.f32 %v1901, 1.442695
        %v1933 = vpow.pop %v1932
        %v1934 = vadd.f32 %v1903, 1.0
        %v1935 = vadd.f32 %v1905, 1.0
        %v1936 = vadd.f32 %v1907, 1.0
        %v1937 = vadd.f32 %v1909, 1.0
        %v1938 = vadd.f32 %v1911, 1.0
        %v1939 = vadd.f32 %v1913, 1.0
        %v1940 = vadd.f32 %v1915, 1.0
        %v1941 = vadd.f32 %v1917, 1.0
        %v1942 = vadd.f32 %v1919, 1.0
        %v1943 = vadd.f32 %v1921, 1.0
        %v1944 = vadd.f32 %v1923, 1.0
        %v1945 = vadd.f32 %v1925, 1.0
        %v1946 = vadd.f32 %v1927, 1.0
        %v1947 = vadd.f32 %v1929, 1.0
        %v1948 = vadd.f32 %v1931, 1.0
        %v1949 = vadd.f32 %v1933, 1.0
        %v1950 = vrcp.pop %v1934
        %v1951 = vmul.f32 1.0, %v1950
        %v1952 = vrcp.pop %v1935
        %v1953 = vmul.f32 1.0, %v1952
        %v1954 = vrcp.pop %v1936
        %v1955 = vmul.f32 1.0, %v1954
        %v1956 = vrcp.pop %v1937
        %v1957 = vmul.f32 1.0, %v1956
        %v1958 = vrcp.pop %v1938
        %v1959 = vmul.f32 1.0, %v1958
        %v1960 = vrcp.pop %v1939
        %v1961 = vmul.f32 1.0, %v1960
        %v1962 = vrcp.pop %v1940
        %v1963 = vmul.f32 1.0, %v1962
        %v1964 = vrcp.pop %v1941
        %v1965 = vmul.f32 1.0, %v1964
        %v1966 = vrcp.pop %v1942
        %v1967 = vmul.f32 1.0, %v1966
        %v1968 = vrcp.pop %v1943
        %v1969 = vmul.f32 1.0, %v1968
        %v1970 = vrcp.pop %v1944
        %v1971 = vmul.f32 1.0, %v1970
        %v1972 = vrcp.pop %v1945
        %v1973 = vmul.f32 1.0, %v1972
        %v1974 = vrcp.pop %v1946
        %v1975 = vmul.f32 1.0, %v1974
        %v1976 = vrcp.pop %v1947
        %v1977 = vmul.f32 1.0, %v1976
        %v1978 = vrcp.pop %v1948
        %v1979 = vmul.f32 1.0, %v1978
        %v1980 = vrcp.pop %v1949
        %v1981 = vmul.f32 1.0, %v1980
        %1983 = vset.pattern.permute.xlu0 0
        %1984 = vperm.xlu0 %1983, %v1951
        %v1985 = vpop.permute.xlu0 %1984
        %1988 = vset.pattern.permute.xlu0 0
        %1989 = vperm.xlu0 %1988, %v1953
        %v1990 = vpop.permute.xlu0 %1989
        %1993 = vset.pattern.permute.xlu0 0
        %1994 = vperm.xlu0 %1993, %v1955
        %v1995 = vpop.permute.xlu0 %1994
        %1998 = vset.pattern.permute.xlu0 0
        %1999 = vperm.xlu0 %1998, %v1957
        %v2000 = vpop.permute.xlu0 %1999
        %2003 = vset.pattern.permute.xlu0 0
        %2004 = vperm.xlu0 %2003, %v1959
        %v2005 = vpop.permute.xlu0 %2004
        %2008 = vset.pattern.permute.xlu0 0
        %2009 = vperm.xlu0 %2008, %v1961
        %v2010 = vpop.permute.xlu0 %2009
        %2013 = vset.pattern.permute.xlu0 0
        %2014 = vperm.xlu0 %2013, %v1963
        %v2015 = vpop.permute.xlu0 %2014
        %2018 = vset.pattern.permute.xlu0 0
        %2019 = vperm.xlu0 %2018, %v1965
        %v2020 = vpop.permute.xlu0 %2019
        %2023 = vset.pattern.permute.xlu0 0
        %2024 = vperm.xlu0 %2023, %v1967
        %v2025 = vpop.permute.xlu0 %2024
        %2028 = vset.pattern.permute.xlu0 0
        %2029 = vperm.xlu0 %2028, %v1969
        %v2030 = vpop.permute.xlu0 %2029
        %2033 = vset.pattern.permute.xlu0 0
        %2034 = vperm.xlu0 %2033, %v1971
        %v2035 = vpop.permute.xlu0 %2034
        %2038 = vset.pattern.permute.xlu0 0
        %2039 = vperm.xlu0 %2038, %v1973
        %v2040 = vpop.permute.xlu0 %2039
        %2043 = vset.pattern.permute.xlu0 0
        %2044 = vperm.xlu0 %2043, %v1975
        %v2045 = vpop.permute.xlu0 %2044
        %2048 = vset.pattern.permute.xlu0 0
        %2049 = vperm.xlu0 %2048, %v1977
        %v2050 = vpop.permute.xlu0 %2049
        %2053 = vset.pattern.permute.xlu0 0
        %2054 = vperm.xlu0 %2053, %v1979
        %v2055 = vpop.permute.xlu0 %2054
        %2058 = vset.pattern.permute.xlu0 0
        %2059 = vperm.xlu0 %2058, %v1981
        %v2060 = vpop.permute.xlu0 %2059
        %v2062 = vmul.f32 %v1391, %v1985
        %v2063 = vmul.f32 %v1392, %v1990
        %v2064 = vmul.f32 %v1393, %v1995
        %v2065 = vmul.f32 %v1394, %v2000
        %v2066 = vmul.f32 %v1395, %v2005
        %v2067 = vmul.f32 %v1396, %v2010
        %v2068 = vmul.f32 %v1397, %v2015
        %v2069 = vmul.f32 %v1398, %v2020
        %v2070 = vmul.f32 %v1399, %v2025
        %v2071 = vmul.f32 %v1400, %v2030
        %v2072 = vmul.f32 %v1401, %v2035
        %v2073 = vmul.f32 %v1402, %v2040
        %v2074 = vmul.f32 %v1403, %v2045
        %v2075 = vmul.f32 %v1404, %v2050
        %v2076 = vmul.f32 %v1405, %v2055
        %v2077 = vmul.f32 %v1406, %v2060
        %v2078 = vpack.c.bf16 %v2063, %v2062
        %v2079 = vpack.c.bf16 %v2065, %v2064
        %v2080 = vpack.c.bf16 %v2067, %v2066
        %v2081 = vpack.c.bf16 %v2069, %v2068
        %v2082 = vpack.c.bf16 %v2071, %v2070
        %v2083 = vpack.c.bf16 %v2073, %v2072
        %v2084 = vpack.c.bf16 %v2075, %v2074
        %v2085 = vpack.c.bf16 %v2077, %v2076
        %v2086 = vld [vmem:[%s8] sm:$0xf]
        %v2087 = vld [vmem:[%s8 + $0x4] sm:$0xf]
        %v2088 = vld [vmem:[%s9 + $0x2] sm:$0x1]
        %v2089 = vlaneseq
        %v2090 = vshrl.u32 %v2089, 7
        %v2091 = vsub.s32 0, %v2090
        %v2092 = vrot.slane %v2088, %v2091
        %v2095 = vunpack.c.l.b16 %v2086
        %v2096 = vunpack.c.l.b16 %v2087
        %v2097 = vpack.c.b16 %v2096, %v2095
        %v2100 = vsel %vm504, %v2078, 0
        %v2103 = vsel %vm504, %v2079, 0
        %v2106 = vsel %vm504, %v2080, 0
        %v2109 = vsel %vm504, %v2081, 0
        %v2112 = vsel %vm504, %v2082, 0
        %v2115 = vsel %vm504, %v2083, 0
        %v2118 = vsel %vm504, %v2084, 0
        %v2121 = vsel %vm504, %v2085, 0
        %2123 = vmatprep.subr.bf16.mxu0 0
        %2124 = vmatpush1.bf16.msra.mxu0 %v2097
        %2125 = vmatprep.subr.bf16.mxu0 0
        %2126 = vmatpush1.bf16.msra.mxu0 0
        %2127 = vmatprep.subr.bf16.mxu0 0
        %2128 = vmatpush1.bf16.msra.mxu0 0
        %2129 = vmatprep.subr.bf16.mxu0 0
        %2130 = vmatpush1.bf16.msra.mxu0 0
        %2131 = vmatprep.subr.bf16.mxu0 0
        %2132 = vmatpush1.bf16.msra.mxu0 0
        %2133 = vmatprep.subr.bf16.mxu0 0
        %2134 = vmatpush1.bf16.msra.mxu0 0
        %2135 = vmatprep.subr.bf16.mxu0 0
        %2136 = vmatpush1.bf16.msra.mxu0 0
        %2137 = vmatprep.subr.bf16.mxu0 0
        %2138 = vmatpush1.bf16.msra.mxu0 0
        %2139 = vmatprep.subr.bf16.mxu0 0
        %2140 = vmatpush1.bf16.msra.mxu0 0
        %2141 = vmatprep.subr.bf16.mxu0 0
        %2142 = vmatpush1.bf16.msra.mxu0 0
        %2143 = vmatprep.subr.bf16.mxu0 0
        %2144 = vmatpush1.bf16.msra.mxu0 0
        %2145 = vmatprep.subr.bf16.mxu0 0
        %2146 = vmatpush1.bf16.msra.mxu0 0
        %2147 = vmatprep.subr.bf16.mxu0 0
        %2148 = vmatpush1.bf16.msra.mxu0 0
        %2149 = vmatprep.subr.bf16.mxu0 0
        %2150 = vmatpush1.bf16.msra.mxu0 0
        %2151 = vmatprep.subr.bf16.mxu0 0
        %2152 = vmatpush1.bf16.msra.mxu0 0
        %2153 = vmatprep.subr.bf16.mxu0 0
        %2154 = vmatpush1.bf16.msra.mxu0 0
        %2155 = vmatprep.mubr.bf16.mxu0 0
        %2156 = vmatmul.mubr.bf16.gmra.mrb[0].mxu0 %v2100
        %v2157 = vpop.f32.mrb[0].mxu0
        %v2158 = vadd.f32 %v2092, %v2157
        %v2159 = vpop.f32.mrb[0].mxu0
        %v2160 = vpop.f32.mrb[0].mxu0
        %v2161 = vadd.f32 %v2092, %v2160
        %v2162 = vpop.f32.mrb[0].mxu0
        %2163 = vmatprep.mubr.bf16.mxu0 0
        %2164 = vmatmul.mubr.bf16.gmra.mrb[0].mxu0 %v2103
        %v2165 = vpop.f32.mrb[0].mxu0
        %v2166 = vadd.f32 %v2092, %v2165
        %v2167 = vpop.f32.mrb[0].mxu0
        %v2168 = vpop.f32.mrb[0].mxu0
        %v2169 = vadd.f32 %v2092, %v2168
        %v2170 = vpop.f32.mrb[0].mxu0
        %2171 = vmatprep.mubr.bf16.mxu0 0
        %2172 = vmatmul.mubr.bf16.gmra.mrb[0].mxu0 %v2106
        %v2173 = vpop.f32.mrb[0].mxu0
        %v2174 = vadd.f32 %v2092, %v2173
        %v2175 = vpop.f32.mrb[0].mxu0
        %v2176 = vpop.f32.mrb[0].mxu0
        %v2177 = vadd.f32 %v2092, %v2176
        %v2178 = vpop.f32.mrb[0].mxu0
        %2179 = vmatprep.mubr.bf16.mxu0 0
        %2180 = vmatmul.mubr.bf16.gmra.mrb[0].mxu0 %v2109
        %v2181 = vpop.f32.mrb[0].mxu0
        %v2182 = vadd.f32 %v2092, %v2181
        %v2183 = vpop.f32.mrb[0].mxu0
        %v2184 = vpop.f32.mrb[0].mxu0
        %v2185 = vadd.f32 %v2092, %v2184
        %v2186 = vpop.f32.mrb[0].mxu0
        %2187 = vmatprep.mubr.bf16.mxu0 0
        %2188 = vmatmul.mubr.bf16.gmra.mrb[0].mxu0 %v2112
        %v2189 = vpop.f32.mrb[0].mxu0
        %v2190 = vadd.f32 %v2092, %v2189
        %v2191 = vpop.f32.mrb[0].mxu0
        %v2192 = vpop.f32.mrb[0].mxu0
        %v2193 = vadd.f32 %v2092, %v2192
        %v2194 = vpop.f32.mrb[0].mxu0
        %2195 = vmatprep.mubr.bf16.mxu0 0
        %2196 = vmatmul.mubr.bf16.gmra.mrb[0].mxu0 %v2115
        %v2197 = vpop.f32.mrb[0].mxu0
        %v2198 = vadd.f32 %v2092, %v2197
        %v2199 = vpop.f32.mrb[0].mxu0
        %v2200 = vpop.f32.mrb[0].mxu0
        %v2201 = vadd.f32 %v2092, %v2200
        %v2202 = vpop.f32.mrb[0].mxu0
        %2203 = vmatprep.mubr.bf16.mxu0 0
        %2204 = vmatmul.mubr.bf16.gmra.mrb[0].mxu0 %v2118
        %v2205 = vpop.f32.mrb[0].mxu0
        %v2206 = vadd.f32 %v2092, %v2205
        %v2207 = vpop.f32.mrb[0].mxu0
        %v2208 = vpop.f32.mrb[0].mxu0
        %v2209 = vadd.f32 %v2092, %v2208
        %v2210 = vpop.f32.mrb[0].mxu0
        %2211 = vmatprep.mubr.bf16.mxu0 0
        %2212 = vmatmul.mubr.bf16.gmra.mrb[0].mxu0 %v2121
        %v2213 = vpop.f32.mrb[0].mxu0
        %v2214 = vadd.f32 %v2092, %v2213
        %v2215 = vpop.f32.mrb[0].mxu0
        %v2216 = vpop.f32.mrb[0].mxu0
        %v2217 = vadd.f32 %v2092, %v2216
        %v2218 = vpop.f32.mrb[0].mxu0
        %2219 = vdwg.mxu0
        %vm2220 = vcmp.ge.f32.partialorder %v2158, 0.0
        %vm2221 = vcmp.ge.f32.partialorder %v2161, 0.0
        %vm2222 = vcmp.ge.f32.partialorder %v2166, 0.0
        %vm2223 = vcmp.ge.f32.partialorder %v2169, 0.0
        %vm2224 = vcmp.ge.f32.partialorder %v2174, 0.0
        %vm2225 = vcmp.ge.f32.partialorder %v2177, 0.0
        %vm2226 = vcmp.ge.f32.partialorder %v2182, 0.0
        %vm2227 = vcmp.ge.f32.partialorder %v2185, 0.0
        %vm2228 = vcmp.ge.f32.partialorder %v2190, 0.0
        %vm2229 = vcmp.ge.f32.partialorder %v2193, 0.0
        %vm2230 = vcmp.ge.f32.partialorder %v2198, 0.0
        %vm2231 = vcmp.ge.f32.partialorder %v2201, 0.0
        %vm2232 = vcmp.ge.f32.partialorder %v2206, 0.0
        %vm2233 = vcmp.ge.f32.partialorder %v2209, 0.0
        %vm2234 = vcmp.ge.f32.partialorder %v2214, 0.0
        %vm2235 = vcmp.ge.f32.partialorder %v2217, 0.0
        %v2236 = vstv %s434
        %v2237 = vmul.f32 %v2236, %v2158
        %v2238 = vmul.f32 %v2236, %v2161
        %v2239 = vmul.f32 %v2236, %v2166
        %v2240 = vmul.f32 %v2236, %v2169
        %v2241 = vmul.f32 %v2236, %v2174
        %v2242 = vmul.f32 %v2236, %v2177
        %v2243 = vmul.f32 %v2236, %v2182
        %v2244 = vmul.f32 %v2236, %v2185
        %v2245 = vmul.f32 %v2236, %v2190
        %v2246 = vmul.f32 %v2236, %v2193
        %v2247 = vmul.f32 %v2236, %v2198
        %v2248 = vmul.f32 %v2236, %v2201
        %v2249 = vmul.f32 %v2236, %v2206
        %v2250 = vmul.f32 %v2236, %v2209
        %v2251 = vmul.f32 %v2236, %v2214
        %v2252 = vmul.f32 %v2236, %v2217
        %v2253 = vsel %vm2220, %v2158, %v2237
        %v2254 = vsel %vm2221, %v2161, %v2238
        %v2255 = vsel %vm2222, %v2166, %v2239
        %v2256 = vsel %vm2223, %v2169, %v2240
        %v2257 = vsel %vm2224, %v2174, %v2241
        %v2258 = vsel %vm2225, %v2177, %v2242
        %v2259 = vsel %vm2226, %v2182, %v2243
        %v2260 = vsel %vm2227, %v2185, %v2244
        %v2261 = vsel %vm2228, %v2190, %v2245
        %v2262 = vsel %vm2229, %v2193, %v2246
        %v2263 = vsel %vm2230, %v2198, %v2247
        %v2264 = vsel %vm2231, %v2201, %v2248
        %v2265 = vsel %vm2232, %v2206, %v2249
        %v2266 = vsel %vm2233, %v2209, %v2250
        %v2267 = vsel %vm2234, %v2214, %v2251
        %v2268 = vsel %vm2235, %v2217, %v2252
        %v2269 = vsel %vm504, %v2253, 0.0
        %v2270 = vsel %vm504, %v2254, 0.0
        %v2271 = vadd.f32 %v2269, %v2270
        %v2272 = vsel %vm504, %v2255, 0.0
        %v2273 = vadd.f32 %v2271, %v2272
        %v2274 = vsel %vm504, %v2256, 0.0
        %v2275 = vadd.f32 %v2273, %v2274
        %v2276 = vsel %vm504, %v2257, 0.0
        %v2277 = vadd.f32 %v2275, %v2276
        %v2278 = vsel %vm504, %v2258, 0.0
        %v2279 = vadd.f32 %v2277, %v2278
        %v2280 = vsel %vm504, %v2259, 0.0
        %v2281 = vadd.f32 %v2279, %v2280
        %v2282 = vsel %vm504, %v2260, 0.0
        %v2283 = vadd.f32 %v2281, %v2282
        %v2284 = vrot.slane %v2283, 4
        %v2285 = vadd.f32 %v2283, %v2284
        %v2286 = vrot.slane %v2285, 2
        %v2287 = vadd.f32 %v2285, %v2286
        %v2288 = vrot.slane %v2287, 1
        %v2289 = vadd.f32 %v2287, %v2288
        %v2290 = vsel %vm504, %v2261, 0.0
        %v2291 = vsel %vm504, %v2262, 0.0
        %v2292 = vadd.f32 %v2290, %v2291
        %v2293 = vsel %vm504, %v2263, 0.0
        %v2294 = vadd.f32 %v2292, %v2293
        %v2295 = vsel %vm504, %v2264, 0.0
        %v2296 = vadd.f32 %v2294, %v2295
        %v2297 = vsel %vm504, %v2265, 0.0
        %v2298 = vadd.f32 %v2296, %v2297
        %v2299 = vsel %vm504, %v2266, 0.0
        %v2300 = vadd.f32 %v2298, %v2299
        %v2301 = vsel %vm504, %v2267, 0.0
        %v2302 = vadd.f32 %v2300, %v2301
        %v2303 = vsel %vm504, %v2268, 0.0
        %v2304 = vadd.f32 %v2302, %v2303
        %v2305 = vrot.slane %v2304, 4
        %v2306 = vadd.f32 %v2304, %v2305
        %v2307 = vrot.slane %v2306, 2
        %v2308 = vadd.f32 %v2306, %v2307
        %v2309 = vrot.slane %v2308, 1
        %v2310 = vadd.f32 %v2308, %v2309
        %v2311 = vmul.f32 %v2289, %v1586
        %v2312 = vmul.f32 %v2310, %v1586
        %v2313 = vpack.c.bf16 %v2311, %v2311
        %v2314 = vpack.c.bf16 %v2312, %v2312
        %vm2315 = vcmask 122880
        %vm2316 = vsmask.f32 256
        %vm2317 = vmand %vm2315, %vm2316
        %v2318 = vld [vmem:[%s430] sm:$0x1]
        %v2319 = vsel %vm2317, %v2313, %v2318
        %2320 = vst [vmem:[%s430] sm:$0x1] %v2319
        %v2321 = vld [vmem:[%s430 + $0x1] sm:$0x1]
        %v2322 = vsel %vm2317, %v2314, %v2321
        %2323 = vst [vmem:[%s430 + $0x1] sm:$0x1] %v2322
        %s2324 = smul.u32 2, %s24
        %p2325 = scmp.lt.s32.totalorder %s2324, 3
        %s2326 = scalar_select %p2325, %s2324, 3
        %s2327 = scalar_lea.vmem %s12, %s2326
        // Predicated region
        $region73: #{psan_forward.2} parent=67 // pred_check
          %p2328 = pneg %p299
        $region74: #{psan_forward.2} parent=67 // pred_check_branch
          %2330 = sbr.rel (%p2328) target = $region76
        $region75: #{psan_forward.2} parent=67 // pred_region
          %s2331 = smul.u32 2, %s24
        $region76: #{psan_forward.2} parent=67 // pred_fallthru
          _
      $region68: #{psan_forward.2} parent=5 // pred_fallthru
        _
      %p2332 = scmp.le.s32.totalorder 2, %s19
      // Predicated region
      $region77: #{psan_forward.2} parent=5 // pred_check
        %p2333 = pneg %p2332
      $region78: #{psan_forward.2} parent=5 // pred_check_branch
        %2335 = sbr.rel (%p2333) target = $region80
      $region79: #{psan_forward.2} parent=5 // pred_region
        %s2336 = ssub.s32 %s19, 2
        // Predicated region
        $region81: #{psan_forward.2} parent=79 // pred_check
          %p2337 = pneg %p305
        $region82: #{psan_forward.2} parent=79 // pred_check_branch
          %2339 = sbr.rel (%p2337) target = $region84
        $region83: #{psan_forward.2} parent=79 // pred_region
          %s2340 = smul.u32 2, %s25
          %p2341 = scmp.lt.s32.totalorder %s2340, 3
          %s2342 = scalar_select %p2341, %s2340, 3
          %s2343 = scalar_lea.vmem %s12, %s2342
        $region84: #{psan_forward.2} parent=79 // pred_fallthru
          _
      $region80: #{psan_forward.2} parent=5 // pred_fallthru
        _
    $region6: #{psan_forward.2} parent=1 // loop_footer
      %s23 = sadd.s32 1, %s19
    $region7: #{psan_forward.2} parent=1 // loop_footer_branch
      %18 = sbr.rel target = $region3
    $region8: #{psan_forward.2} parent=1 // loop_exit
      _
    %2344 = vsyncpa [#allocation3], 1
    %s2345 = scalar_lea.sflag [#allocation3], 1
    %2346 = vsyncpa %s2345, 1

</llo_original>
